<compile_context>
chip_gen: v6e
topology: v6e:2x2x1
jax: 0.10.0
libtpu: 0.0.40
codegen_flags: <defaults>
</compile_context>

<pallas_src>
import functools

import numpy as np
import jax
import jax.numpy as jnp
from jax import lax
from jax.experimental import pallas as pl
from jax.experimental.pallas import tpu as pltpu

SIGMA_D = 1.0
D_MODEL = 2
# SinusoidalPositionalEmbedding(d_model=2): div_term = exp([0] * -ln(1e4)/2) = [1.0]
DIV_TERM = float(np.exp(0.0 * (-np.log(10000.0) / D_MODEL)))


def _geom_emb_kernel(p0_ref, p1t_ref, o0_ref, o1t_ref, acc0_ref, acc1_ref,
                     *, n_total, m_total, tn, tm,
                     need_row_mask, need_col_mask, compute_dtype):
    i = pl.program_id(1)            # N-tile index (reduction axis for out1)
    j = pl.program_id(2)            # M-tile index (innermost; reduction for out0)
    ni = pl.num_programs(1)
    nj = pl.num_programs(2)

    p0 = p0_ref[...]                # (tn, 2): columns [x | y]
    p1t = p1t_ref[...]              # (2, tm): row0 = x, row1 = y (lane dense)

    # Pairwise dot products via VPU outer product; the MXU stays idle on purpose.
    xy = p0[:, 0:1] * p1t[0:1, :] + p0[:, 1:2] * p1t[1:2, :]        # (tn, tm)

    sq_dist = jnp.maximum(2.0 - 2.0 * xy, 0.0)                      # clamp(min=0)
    omegas = (jnp.sqrt(sq_dist) * (DIV_TERM / SIGMA_D)).astype(compute_dtype)

    # Ragged edge tiles: zero the contributions of out-of-range rows/cols.
    mask = None
    if need_row_mask:
        row_ids = i * tn + lax.broadcasted_iota(jnp.int32, (tn, 1), 0)
        mask = row_ids < n_total
    if need_col_mask:
        col_ids = j * tm + lax.broadcasted_iota(jnp.int32, (1, tm), 1)
        col_ok = col_ids < m_total
        mask = col_ok if mask is None else jnp.logical_and(mask, col_ok)

    # sin first, reduce, then cos (its buffer can reuse sin's) -> <=2 live tiles.
    sin_t = jnp.sin(omegas)
    if mask is not None:
        sin_t = jnp.where(mask, sin_t, 0.0)
    row_sin = jnp.sum(sin_t, axis=1, keepdims=True, dtype=jnp.float32)   # (tn, 1)
    col_sin = jnp.sum(sin_t, axis=0, keepdims=True, dtype=jnp.float32)   # (1, tm)

    cos_t = jnp.cos(omegas)
    if mask is not None:
        cos_t = jnp.where(mask, cos_t, 0.0)
    row_cos = jnp.sum(cos_t, axis=1, keepdims=True, dtype=jnp.float32)
    col_cos = jnp.sum(cos_t, axis=0, keepdims=True, dtype=jnp.float32)

    row_sums = jnp.concatenate([row_sin, row_cos], axis=1)   # (tn, 2): c0=sin, c1=cos
    col_sums = jnp.concatenate([col_sin, col_cos], axis=0)   # (2, tm): r0=sin, r1=cos

    # ---- out0: accumulate row sums over the (innermost) M-tile axis ----
    @pl.when(j == 0)
    def _():
        acc0_ref[...] = row_sums

    @pl.when(j > 0)
    def _():
        acc0_ref[...] = acc0_ref[...] + row_sums

    @pl.when(j == nj - 1)
    def _():
        o0_ref[...] = (p0 * acc0_ref[...]).astype(o0_ref.dtype)

    # ---- out1: accumulate col sums over the (outer) N-tile axis, one scratch
    # slot per M-tile (its reduction axis is not innermost) ----
    @pl.when(i == 0)
    def _():
        acc1_ref[j] = col_sums

    @pl.when(i > 0)
    def _():
        acc1_ref[j] = acc1_ref[j] + col_sums

    # Write the current partial every visit; the last visit (i == ni-1) is the
    # last writeback of this block, so HBM ends up with the complete sum.
    o1t_ref[...] = (p1t * acc1_ref[j]).astype(o1t_ref.dtype)


def _round_up(x, m):
    return ((x + m - 1) // m) * m


def geometric_embedding(points0, points1, *, tile_n=512, tile_m=1024,
                        compute_dtype=jnp.float32):
    """points0: (B, N, 2) f32, points1: (B, M, 2) f32 -> ((B, N, 2), (B, M, 2))."""
    B, N, C = points0.shape
    Bq, M, Cq = points1.shape
    assert C == 2 and Cq == 2 and Bq == B

    # Tile sizes: respect (8, 128) granularity and never exceed (padded) extents.
    # v7x guidance: keep tn*tm <= ~512*1024 f32 so a few live temps stay well
    # under the 64 MiB physical VMEM; v5e/v6e tolerate larger tiles.
    tn = min(_round_up(tile_n, 8), _round_up(N, 8))
    tm = min(_round_up(tile_m, 128), _round_up(M, 128))
    ni = pl.cdiv(N, tn)
    nj = pl.cdiv(M, tm)

    # Lane-dense RHS / out1 layout; the tiny transposes live in the wrapper.
    p1t = jnp.swapaxes(points1, 1, 2)                 # (B, 2, M)

    kernel = functools.partial(
        _geom_emb_kernel,
        n_total=N, m_total=M, tn=tn, tm=tm,
        need_row_mask=(N % tn) != 0,
        need_col_mask=(M % tm) != 0,
        compute_dtype=compute_dtype,
    )

    grid_spec = pltpu.PrefetchScalarGridSpec(
        num_scalar_prefetch=0,
        grid=(B, ni, nj),
        in_specs=[
            pl.BlockSpec((pl.Squeezed(), tn, 2), lambda b, i, j: (b, i, 0)),
            pl.BlockSpec((pl.Squeezed(), 2, tm), lambda b, i, j: (b, 0, j)),
        ],
        out_specs=(
            pl.BlockSpec((pl.Squeezed(), tn, 2), lambda b, i, j: (b, i, 0)),
            pl.BlockSpec((pl.Squeezed(), 2, tm), lambda b, i, j: (b, 0, j)),
        ),
        scratch_shapes=[
            pltpu.VMEM((tn, 2), jnp.float32),         # out0 row-sum accumulator
            pltpu.VMEM((nj, 2, tm), jnp.float32),     # out1 col-sum accumulators
        ],
    )

    # Scoped-VMEM budget derived from the actual tile sizes (default scoped
    # limits of 16/32 MiB are the binding constraint otherwise).
    bpe = 4  # temporaries are at most f32
    vmem_est = (
        6 * tn * tm * bpe                 # live (tn, tm) temporaries (generous)
        + tn * 128 * bpe                  # acc0, lane-padded
        + nj * 8 * tm * bpe               # acc1, sublane-padded
        + 4 * (tn * 128 + 8 * tm) * bpe   # double-buffered in/out blocks, padded
        + (2 << 20)                       # headroom
    )
    vmem_limit = int(min(max(vmem_est, 32 << 20), 64 << 20))

    nm = B * N * M
    cost = pl.CostEstimate(
        flops=10 * nm,                    # outer product + clamp + reductions
        transcendentals=3 * nm,           # sqrt, sin, cos per (n, m) pair
        bytes_accessed=2 * bpe * (points0.size + points1.size),
    )

    out0, out1t = pl.pallas_call(
        kernel,
        grid_spec=grid_spec,
        out_shape=(
            jax.ShapeDtypeStruct((B, N, 2), points0.dtype),
            jax.ShapeDtypeStruct((B, 2, M), points1.dtype),
        ),
        compiler_params=pltpu.CompilerParams(
            # Batch is parallel (v7x megacore); both tile axes carry reductions
            # (out0 over M-tiles, out1 over N-tiles) so they must be arbitrary.
            dimension_semantics=("parallel", "arbitrary", "arbitrary"),
            vmem_limit_bytes=vmem_limit,
        ),
        cost_estimate=cost,
    )(points0, p1t)

    return out0, jnp.swapaxes(out1t, 1, 2)


def _reference(points0, points1):
    """Pure-JAX reference mirroring the PyTorch module (full f32, no MXU)."""
    xy = jnp.sum(points0[:, :, None, :] * points1[:, None, :, :], axis=-1)
    sq_dist = jnp.maximum(2.0 - 2.0 * xy, 0.0)
    d_indices = jnp.sqrt(sq_dist) / SIGMA_D
    omegas = d_indices * DIV_TERM
    d_emb = jnp.stack([jnp.sin(omegas), jnp.cos(omegas)], axis=-1)   # (B,N,M,2)
    p0_emb = points0 * jnp.sum(d_emb, axis=2)                        # sum over m
    p1_emb = points1 * jnp.sum(d_emb, axis=1)                        # sum over n
    return p0_emb, p1_emb


if __name__ == "__main__":
    key = jax.random.PRNGKey(0)
    k0, k1 = jax.random.split(key)
    # Small keypoint-like shapes; 128-sized tiles force a multi-tile grid with
    # ragged edge tiles on both axes so every kernel path is exercised.
    B, N, M = 2, 200, 264
    p0 = jax.random.normal(k0, (B, N, 2), dtype=jnp.float32)
    p1 = jax.random.normal(k1, (B, M, 2), dtype=jnp.float32)
    # points_normlize=True path assumes unit-normalized 2D points.
    p0 = p0 / jnp.linalg.norm(p0, axis=-1, keepdims=True)
    p1 = p1 / jnp.linalg.norm(p1, axis=-1, keepdims=True)

    out0, out1 = geometric_embedding(p0, p1, tile_n=128, tile_m=128)
    jax.block_until_ready((out0, out1))

    ref0, ref1 = _reference(p0, p1)
    assert np.allclose(np.asarray(out0), np.asarray(ref0), atol=1e-4, rtol=1e-4)
    assert np.allclose(np.asarray(out1), np.asarray(ref1), atol=1e-4, rtol=1e-4)

    print("KERNEL_OK")
</pallas_src>

<mosaic_0001>
module attributes {stable_mosaic.version = 11 : i64} {
  func.func @_geom_emb_kernel(%arg0: i32, %arg1: i32, %arg2: i32, %arg3: memref<1x128x2xf32, #tpu.memory_space<vmem>>, %arg4: memref<1x2x128xf32, #tpu.memory_space<vmem>>, %arg5: memref<1x128x2xf32, #tpu.memory_space<vmem>>, %arg6: memref<1x2x128xf32, #tpu.memory_space<vmem>>, %arg7: memref<128x2xf32, #tpu.memory_space<vmem>>, %arg8: memref<3x2x128xf32, #tpu.memory_space<vmem>>) attributes {dimension_semantics = [#tpu.dimension_semantics<parallel>, #tpu.dimension_semantics<arbitrary>, #tpu.dimension_semantics<arbitrary>], iteration_bounds = array<i64: 2, 2, 3>, scalar_prefetch = 0 : i64, scratch_operands = 2 : i64, tpu.core_type = #tpu.core_type<tc>, window_params = [{transform_indices = @transform_0, window_bounds = array<i64: 1, 128, 2>}, {transform_indices = @transform_1, window_bounds = array<i64: 1, 2, 128>}, {transform_indices = @transform_2, window_bounds = array<i64: 1, 128, 2>}, {transform_indices = @transform_3, window_bounds = array<i64: 1, 2, 128>}]} {
    %c0 = arith.constant 0 : index
    %c0_0 = arith.constant 0 : index
    %c0_1 = arith.constant 0 : index
    %0 = vector.load %arg3[%c0, %c0_0, %c0_1] : memref<1x128x2xf32, #tpu.memory_space<vmem>>, vector<1x128x2xf32>
    %1 = vector.shape_cast %0 : vector<1x128x2xf32> to vector<128x2xf32>
    %c0_2 = arith.constant 0 : index
    %c0_3 = arith.constant 0 : index
    %c0_4 = arith.constant 0 : index
    %2 = vector.load %arg4[%c0_2, %c0_3, %c0_4] : memref<1x2x128xf32, #tpu.memory_space<vmem>>, vector<1x2x128xf32>
    %3 = vector.shape_cast %2 : vector<1x2x128xf32> to vector<2x128xf32>
    %4 = vector.extract_strided_slice %1 {offsets = [0, 0], sizes = [128, 1], strides = [1, 1]} : vector<128x2xf32> to vector<128x1xf32>
    %5 = vector.extract_strided_slice %3 {offsets = [0, 0], sizes = [1, 128], strides = [1, 1]} : vector<2x128xf32> to vector<1x128xf32>
    %6 = vector.broadcast %4 : vector<128x1xf32> to vector<128x128xf32>
    %7 = vector.broadcast %5 : vector<1x128xf32> to vector<128x128xf32>
    %8 = arith.mulf %6, %7 : vector<128x128xf32>
    %9 = vector.extract_strided_slice %1 {offsets = [0, 1], sizes = [128, 1], strides = [1, 1]} : vector<128x2xf32> to vector<128x1xf32>
    %10 = vector.extract_strided_slice %3 {offsets = [1, 0], sizes = [1, 128], strides = [1, 1]} : vector<2x128xf32> to vector<1x128xf32>
    %11 = vector.broadcast %9 : vector<128x1xf32> to vector<128x128xf32>
    %12 = vector.broadcast %10 : vector<1x128xf32> to vector<128x128xf32>
    %13 = arith.mulf %11, %12 : vector<128x128xf32>
    %14 = arith.addf %8, %13 : vector<128x128xf32>
    %cst = arith.constant 2.000000e+00 : f32
    %15 = vector.broadcast %cst : f32 to vector<128x128xf32>
    %16 = arith.mulf %15, %14 : vector<128x128xf32>
    %cst_5 = arith.constant 2.000000e+00 : f32
    %17 = vector.broadcast %cst_5 : f32 to vector<128x128xf32>
    %18 = arith.subf %17, %16 : vector<128x128xf32>
    %cst_6 = arith.constant 0.000000e+00 : f32
    %19 = vector.broadcast %cst_6 : f32 to vector<128x128xf32>
    %20 = arith.maximumf %18, %19 : vector<128x128xf32>
    %21 = math.sqrt %20 : vector<128x128xf32>
    %cst_7 = arith.constant 1.000000e+00 : f32
    %22 = vector.broadcast %cst_7 : f32 to vector<128x128xf32>
    %23 = arith.mulf %21, %22 : vector<128x128xf32>
    %c128_i32 = arith.constant 128 : i32
    %24 = arith.muli %arg1, %c128_i32 : i32
    %25 = tpu.iota {dimensions = array<i32: 0>} : vector<128x1xi32>
    %26 = vector.broadcast %24 : i32 to vector<128x1xi32>
    %27 = arith.addi %26, %25 : vector<128x1xi32>
    %c200_i32 = arith.constant 200 : i32
    %28 = vector.broadcast %c200_i32 : i32 to vector<128x1xi32>
    %29 = arith.cmpi slt, %27, %28 : vector<128x1xi32>
    %c128_i32_8 = arith.constant 128 : i32
    %30 = arith.muli %arg2, %c128_i32_8 : i32
    %31 = tpu.iota {dimensions = array<i32: 1>} : vector<1x128xi32>
    %32 = vector.broadcast %30 : i32 to vector<1x128xi32>
    %33 = arith.addi %32, %31 : vector<1x128xi32>
    %c264_i32 = arith.constant 264 : i32
    %34 = vector.broadcast %c264_i32 : i32 to vector<1x128xi32>
    %35 = arith.cmpi slt, %33, %34 : vector<1x128xi32>
    %36 = vector.broadcast %29 : vector<128x1xi1> to vector<128x128xi1>
    %37 = vector.broadcast %35 : vector<1x128xi1> to vector<128x128xi1>
    %38 = arith.andi %36, %37 : vector<128x128xi1>
    %39 = math.sin %23 : vector<128x128xf32>
    %cst_9 = arith.constant 0.000000e+00 : f32
    %40 = vector.broadcast %cst_9 : f32 to vector<128x128xf32>
    %41 = arith.select %38, %39, %40 : vector<128x128xi1>, vector<128x128xf32>
    %cst_10 = arith.constant dense<0.000000e+00> : vector<128xf32>
    %42 = vector.multi_reduction <add>, %41, %cst_10 [1] : vector<128x128xf32> to vector<128xf32>
    %43 = vector.shape_cast %42 : vector<128xf32> to vector<128x1xf32>
    %cst_11 = arith.constant dense<0.000000e+00> : vector<128xf32>
    %44 = vector.multi_reduction <add>, %41, %cst_11 [0] : vector<128x128xf32> to vector<128xf32>
    %45 = vector.shape_cast %44 : vector<128xf32> to vector<1x128xf32>
    %46 = math.cos %23 : vector<128x128xf32>
    %cst_12 = arith.constant 0.000000e+00 : f32
    %47 = vector.broadcast %cst_12 : f32 to vector<128x128xf32>
    %48 = arith.select %38, %46, %47 : vector<128x128xi1>, vector<128x128xf32>
    %cst_13 = arith.constant dense<0.000000e+00> : vector<128xf32>
    %49 = vector.multi_reduction <add>, %48, %cst_13 [1] : vector<128x128xf32> to vector<128xf32>
    %50 = vector.shape_cast %49 : vector<128xf32> to vector<128x1xf32>
    %cst_14 = arith.constant dense<0.000000e+00> : vector<128xf32>
    %51 = vector.multi_reduction <add>, %48, %cst_14 [0] : vector<128x128xf32> to vector<128xf32>
    %52 = vector.shape_cast %51 : vector<128xf32> to vector<1x128xf32>
    %53 = tpu.concatenate %43, %50 in 1 : vector<128x1xf32>, vector<128x1xf32> -> vector<128x2xf32>
    %54 = tpu.concatenate %45, %52 in 0 : vector<1x128xf32>, vector<1x128xf32> -> vector<2x128xf32>
    %c0_i32 = arith.constant 0 : i32
    %55 = arith.cmpi eq, %arg2, %c0_i32 : i32
    %56 = arith.extui %55 : i1 to i32
    %c0_i32_15 = arith.constant 0 : i32
    %57 = arith.cmpi ne, %56, %c0_i32_15 : i32
    scf.if %57 {
      %c0_28 = arith.constant 0 : index
      %c0_29 = arith.constant 0 : index
      %77 = vector.load %arg7[%c0_28, %c0_29] : memref<128x2xf32, #tpu.memory_space<vmem>>, vector<128x2xf32>
      tpu.vector_store %arg7[%c0_28, %c0_29], %53 {strides = array<i32>} : memref<128x2xf32, #tpu.memory_space<vmem>>, vector<128x2xf32>,
    } else {
    }
    %c0_i32_16 = arith.constant 0 : i32
    %58 = arith.cmpi sgt, %arg2, %c0_i32_16 : i32
    %59 = arith.extui %58 : i1 to i32
    %c0_i32_17 = arith.constant 0 : i32
    %60 = arith.cmpi ne, %59, %c0_i32_17 : i32
    scf.if %60 {
      %c0_28 = arith.constant 0 : index
      %c0_29 = arith.constant 0 : index
      %77 = vector.load %arg7[%c0_28, %c0_29] : memref<128x2xf32, #tpu.memory_space<vmem>>, vector<128x2xf32>
      %78 = arith.addf %77, %53 : vector<128x2xf32>
      %c0_30 = arith.constant 0 : index
      %c0_31 = arith.constant 0 : index
      %79 = vector.load %arg7[%c0_30, %c0_31] : memref<128x2xf32, #tpu.memory_space<vmem>>, vector<128x2xf32>
      tpu.vector_store %arg7[%c0_30, %c0_31], %78 {strides = array<i32>} : memref<128x2xf32, #tpu.memory_space<vmem>>, vector<128x2xf32>,
    } else {
    }
    %c2_i32 = arith.constant 2 : i32
    %61 = arith.cmpi eq, %arg2, %c2_i32 : i32
    %62 = arith.extui %61 : i1 to i32
    %c0_i32_18 = arith.constant 0 : i32
    %63 = arith.cmpi ne, %62, %c0_i32_18 : i32
    scf.if %63 {
      %c0_28 = arith.constant 0 : index
      %c0_29 = arith.constant 0 : index
      %77 = vector.load %arg7[%c0_28, %c0_29] : memref<128x2xf32, #tpu.memory_space<vmem>>, vector<128x2xf32>
      %78 = arith.mulf %1, %77 : vector<128x2xf32>
      %c0_30 = arith.constant 0 : index
      %c0_31 = arith.constant 0 : index
      %c0_32 = arith.constant 0 : index
      %79 = vector.load %arg5[%c0_30, %c0_31, %c0_32] : memref<1x128x2xf32, #tpu.memory_space<vmem>>, vector<1x128x2xf32>
      %80 = vector.shape_cast %79 : vector<1x128x2xf32> to vector<128x2xf32>
      %81 = vector.shape_cast %78 : vector<128x2xf32> to vector<1x128x2xf32>
      tpu.vector_store %arg5[%c0_30, %c0_31, %c0_32], %81 {strides = array<i32>} : memref<1x128x2xf32, #tpu.memory_space<vmem>>, vector<1x128x2xf32>,
    } else {
    }
    %c0_i32_19 = arith.constant 0 : i32
    %64 = arith.cmpi eq, %arg1, %c0_i32_19 : i32
    %65 = arith.extui %64 : i1 to i32
    %c0_i32_20 = arith.constant 0 : i32
    %66 = arith.cmpi ne, %65, %c0_i32_20 : i32
    scf.if %66 {
      %77 = arith.index_cast %arg2 : i32 to index
      %c0_28 = arith.constant 0 : index
      %c0_29 = arith.constant 0 : index
      %78 = vector.load %arg8[%77, %c0_28, %c0_29] : memref<3x2x128xf32, #tpu.memory_space<vmem>>, vector<1x2x128xf32>
      %79 = vector.shape_cast %78 : vector<1x2x128xf32> to vector<2x128xf32>
      %80 = vector.shape_cast %54 : vector<2x128xf32> to vector<1x2x128xf32>
      tpu.vector_store %arg8[%77, %c0_28, %c0_29], %80 {strides = array<i32>} : memref<3x2x128xf32, #tpu.memory_space<vmem>>, vector<1x2x128xf32>,
    } else {
    }
    %c0_i32_21 = arith.constant 0 : i32
    %67 = arith.cmpi sgt, %arg1, %c0_i32_21 : i32
    %68 = arith.extui %67 : i1 to i32
    %c0_i32_22 = arith.constant 0 : i32
    %69 = arith.cmpi ne, %68, %c0_i32_22 : i32
    scf.if %69 {
      %77 = arith.index_cast %arg2 : i32 to index
      %c0_28 = arith.constant 0 : index
      %c0_29 = arith.constant 0 : index
      %78 = vector.load %arg8[%77, %c0_28, %c0_29] : memref<3x2x128xf32, #tpu.memory_space<vmem>>, vector<1x2x128xf32>
      %79 = vector.shape_cast %78 : vector<1x2x128xf32> to vector<2x128xf32>
      %80 = arith.addf %79, %54 : vector<2x128xf32>
      %81 = arith.index_cast %arg2 : i32 to index
      %c0_30 = arith.constant 0 : index
      %c0_31 = arith.constant 0 : index
      %82 = vector.load %arg8[%81, %c0_30, %c0_31] : memref<3x2x128xf32, #tpu.memory_space<vmem>>, vector<1x2x128xf32>
      %83 = vector.shape_cast %82 : vector<1x2x128xf32> to vector<2x128xf32>
      %84 = vector.shape_cast %80 : vector<2x128xf32> to vector<1x2x128xf32>
      tpu.vector_store %arg8[%81, %c0_30, %c0_31], %84 {strides = array<i32>} : memref<3x2x128xf32, #tpu.memory_space<vmem>>, vector<1x2x128xf32>,
    } else {
    }
    %70 = arith.index_cast %arg2 : i32 to index
    %c0_23 = arith.constant 0 : index
    %c0_24 = arith.constant 0 : index
    %71 = vector.load %arg8[%70, %c0_23, %c0_24] : memref<3x2x128xf32, #tpu.memory_space<vmem>>, vector<1x2x128xf32>
    %72 = vector.shape_cast %71 : vector<1x2x128xf32> to vector<2x128xf32>
    %73 = arith.mulf %3, %72 : vector<2x128xf32>
    %c0_25 = arith.constant 0 : index
    %c0_26 = arith.constant 0 : index
    %c0_27 = arith.constant 0 : index
    %74 = vector.load %arg6[%c0_25, %c0_26, %c0_27] : memref<1x2x128xf32, #tpu.memory_space<vmem>>, vector<1x2x128xf32>
    %75 = vector.shape_cast %74 : vector<1x2x128xf32> to vector<2x128xf32>
    %76 = vector.shape_cast %73 : vector<2x128xf32> to vector<1x2x128xf32>
    tpu.vector_store %arg6[%c0_25, %c0_26, %c0_27], %76 {strides = array<i32>} : memref<1x2x128xf32, #tpu.memory_space<vmem>>, vector<1x2x128xf32>,
    return
  }
  func.func @transform_0(%arg0: i32, %arg1: i32, %arg2: i32) -> (i32, i32, i32) {
    %c0_i32 = arith.constant 0 : i32
    %c0_i32_0 = arith.constant 0 : i32
    return %arg0, %arg1, %c0_i32 : i32, i32, i32
  }
  func.func @transform_1(%arg0: i32, %arg1: i32, %arg2: i32) -> (i32, i32, i32) {
    %c0_i32 = arith.constant 0 : i32
    %c0_i32_0 = arith.constant 0 : i32
    return %arg0, %c0_i32, %arg2 : i32, i32, i32
  }
  func.func @transform_2(%arg0: i32, %arg1: i32, %arg2: i32) -> (i32, i32, i32) {
    %c0_i32 = arith.constant 0 : i32
    %c0_i32_0 = arith.constant 0 : i32
    return %arg0, %arg1, %c0_i32 : i32, i32, i32
  }
  func.func @transform_3(%arg0: i32, %arg1: i32, %arg2: i32) -> (i32, i32, i32) {
    %c0_i32 = arith.constant 0 : i32
    %c0_i32_0 = arith.constant 0 : i32
    return %arg0, %c0_i32, %arg2 : i32, i32, i32
  }
}

</mosaic_0001>

<llo_original>
// kernel: tpu_custom_call.1
$region0: #{tpu_custom_call.1}
  #allocation0 [shape = 'u32[]', space=smem, size = 0x4, offset = 0x4, fixed_abs, tag = 'smem constant byte address 0x4 - core index']
  #allocation1 [shape = 'u32[144,128]{1,0:T(1,128)}', space=vmem, size = 0x12000, scoped, tag = 'internal scratch']
  #allocation2 [shape = 'f32[128,2]{1,0:T(8,128)}', space=vmem, size = 0x10000, scoped, tag = 'scratch operand']
  #allocation3 [shape = 'f32[3,2,128]{2,1,0:T(2,128)}', space=vmem, size = 0xc00, scoped, tag = 'scratch operand']
  %s0 = inlined_call_operand.vmem [shape: f32[2,200,2], index: 0, kind: input, shape index: {}]
  %s1 = inlined_call_operand.vmem [shape: f32[2,2,264], index: 1, kind: input, shape index: {}]
  %s2 = inlined_call_operand.vmem [shape: f32[2,200,2], index: 2, kind: output, shape index: {0}]
  %s3 = inlined_call_operand.hbm [shape: f32[2,2,264], index: 3, kind: output, shape index: {1}]
  %4 = xla_tuple %s2, %s3
  %s5 = sld [smem:[#allocation0]]
  $region117: #{tpu_custom_call.1} parent=0
    _
  %s7 = ssub.s32 1, %s5
  %s8 = scalar_select 0, %s7, %s5
  $region1: #{tpu_custom_call.1} parent=0
    #allocation4 [shape = 'u8[131072]{0}', space=vmem, size = 0x20000, scoped, tag = 'output window, operand 0']
    #allocation5 [shape = 'u8[2048]{0}', space=vmem, size = 0x800, scoped, tag = 'output window, operand 1']
    #allocation6 [shape = 's32[2]{0}', space=sflag, size = 0x8, scoped, tag = 'scoped memory for tpu_custom_call.1']
    %9 = vsyncpa [#allocation6], 0
    %s10 = scalar_lea.sflag [#allocation6], 1
    %11 = vsyncpa %s10, 0
    loop: start=0, step=1, limit=14
    $region2: #{tpu_custom_call.1} parent=1 // loop_pre_header
      _
    $region3: #{tpu_custom_call.1} parent=1 // loop_header
      %s13 = sphi 0, %s17
      %p14 = scmp.ge.s32.totalorder %s13, 14
      %s20 = sphi 0, %s39
      %s21 = sphi 0, %s35
      %s22 = sphi 0, %s31
      %s23 = sphi 0, %s20
      %s24 = sphi 0, %s21
      %s25 = sphi 0, %s22
      %s26 = sphi 0, %s23
      %s27 = sphi 0, %s24
      %s28 = sphi 0, %s25
      %s44 = sphi 0, %s46
      %s47 = sphi 0, %s44
      %s48 = sphi 0, %s47
      %s64 = sphi 0, %s48
      %s72 = sphi 0, %s74
      %s75 = sphi 0, %s72
      %s76 = sphi 0, %s75
      %s92 = sphi 0, %s76
      %s100 = sphi 0, %s102
      %s103 = sphi 0, %s100
      %s104 = sphi 0, %s103
      %s120 = sphi 0, %s104
      %s128 = sphi 0, %s130
      %s131 = sphi 0, %s128
      %s132 = sphi 0, %s131
      %s148 = sphi 0, %s132
    $region4: #{tpu_custom_call.1} parent=1 // loop_header_branch
      %16 = sbr.rel (%p14) target = $region8
    $region5: #{tpu_custom_call.1} parent=1 // loop_body
      %s18 = ssub.s32 %s13, 1
      %s19 = ssub.s32 %s13, 2
      %s29 = sadd.s32 1, %s22
      %p30 = scmp.ge.s32.totalorder %s29, 3
      %s31 = scalar_select %p30, 0, %s29
      %s32 = sadd.s32 1, %s21
      %s33 = scalar_select %p30, %s32, %s21
      %p34 = scmp.ge.s32.totalorder %s33, 2
      %s35 = scalar_select %p34, 0, %s33
      %s36 = sadd.s32 1, %s20
      %s37 = scalar_select %p34, %s36, %s20
      %p38 = scmp.ge.s32.totalorder %s37, 2
      %s39 = scalar_select %p38, 0, %s37
      %s40 = ssub.s32 %s20, %s39
      %s41 = ssub.s32 %s21, %s35
      %s42 = sor.u32 %s40, %s41
      %p43 = scmp.eq.s32.totalorder %s42, 0
      %s45 = sadd.s32 %s44, 1
      %s46 = scalar_select %p43, %s44, %s45
      %p49 = pneg %p43
      %p50 = scmp.eq.s32.totalorder %s13, 11
      %p51 = por %p49, %p50
      %p52 = scmp.ne.s32.totalorder %s44, %s47
      %p53 = scmp.eq.s32.totalorder %s13, 0
      %p54 = por %p52, %p53
      %p55 = scmp.ne.s32.totalorder %s44, %s47
      %p56 = scmp.eq.s32.totalorder %s18, 11
      %p57 = por %p55, %p56
      %p58 = scmp.ne.s32.totalorder %s47, %s48
      %p59 = scmp.eq.s32.totalorder %s18, 0
      %p60 = por %p58, %p59
      %p61 = scmp.ne.s32.totalorder %s47, %s48
      %p62 = scmp.eq.s32.totalorder %s19, 11
      %p63 = por %p61, %p62
      %p65 = scmp.ne.s32.totalorder %s48, %s64
      %p66 = scmp.eq.s32.totalorder %s19, 0
      %p67 = por %p65, %p66
      %s68 = ssub.s32 %s20, %s39
      %s69 = ssub.s32 %s22, %s31
      %s70 = sor.u32 %s68, %s69
      %p71 = scmp.eq.s32.totalorder %s70, 0
      %s73 = sadd.s32 %s72, 1
      %s74 = scalar_select %p71, %s72, %s73
      %p77 = pneg %p71
      %p78 = scmp.eq.s32.totalorder %s13, 11
      %p79 = por %p77, %p78
      %p80 = scmp.ne.s32.totalorder %s72, %s75
      %p81 = scmp.eq.s32.totalorder %s13, 0
      %p82 = por %p80, %p81
      %p83 = scmp.ne.s32.totalorder %s72, %s75
      %p84 = scmp.eq.s32.totalorder %s18, 11
      %p85 = por %p83, %p84
      %p86 = scmp.ne.s32.totalorder %s75, %s76
      %p87 = scmp.eq.s32.totalorder %s18, 0
      %p88 = por %p86, %p87
      %p89 = scmp.ne.s32.totalorder %s75, %s76
      %p90 = scmp.eq.s32.totalorder %s19, 11
      %p91 = por %p89, %p90
      %p93 = scmp.ne.s32.totalorder %s76, %s92
      %p94 = scmp.eq.s32.totalorder %s19, 0
      %p95 = por %p93, %p94
      %s96 = ssub.s32 %s20, %s39
      %s97 = ssub.s32 %s21, %s35
      %s98 = sor.u32 %s96, %s97
      %p99 = scmp.eq.s32.totalorder %s98, 0
      %s101 = sadd.s32 %s100, 1
      %s102 = scalar_select %p99, %s100, %s101
      %p105 = pneg %p99
      %p106 = scmp.eq.s32.totalorder %s13, 11
      %p107 = por %p105, %p106
      %p108 = scmp.ne.s32.totalorder %s100, %s103
      %p109 = scmp.eq.s32.totalorder %s13, 0
      %p110 = por %p108, %p109
      %p111 = scmp.ne.s32.totalorder %s100, %s103
      %p112 = scmp.eq.s32.totalorder %s18, 11
      %p113 = por %p111, %p112
      %p114 = scmp.ne.s32.totalorder %s103, %s104
      %p115 = scmp.eq.s32.totalorder %s18, 0
      %p116 = por %p114, %p115
      %p117 = scmp.ne.s32.totalorder %s103, %s104
      %p118 = scmp.eq.s32.totalorder %s19, 11
      %p119 = por %p117, %p118
      %p121 = scmp.ne.s32.totalorder %s104, %s120
      %p122 = scmp.eq.s32.totalorder %s19, 0
      %p123 = por %p121, %p122
      %s124 = ssub.s32 %s20, %s39
      %s125 = ssub.s32 %s22, %s31
      %s126 = sor.u32 %s124, %s125
      %p127 = scmp.eq.s32.totalorder %s126, 0
      %s129 = sadd.s32 %s128, 1
      %s130 = scalar_select %p127, %s128, %s129
      %p133 = pneg %p127
      %p134 = scmp.eq.s32.totalorder %s13, 11
      %p135 = por %p133, %p134
      %p136 = scmp.ne.s32.totalorder %s128, %s131
      %p137 = scmp.eq.s32.totalorder %s13, 0
      %p138 = por %p136, %p137
      %p139 = scmp.ne.s32.totalorder %s128, %s131
      %p140 = scmp.eq.s32.totalorder %s18, 11
      %p141 = por %p139, %p140
      %p142 = scmp.ne.s32.totalorder %s131, %s132
      %p143 = scmp.eq.s32.totalorder %s18, 0
      %p144 = por %p142, %p143
      %p145 = scmp.ne.s32.totalorder %s131, %s132
      %p146 = scmp.eq.s32.totalorder %s19, 11
      %p147 = por %p145, %p146
      %p149 = scmp.ne.s32.totalorder %s132, %s148
      %p150 = scmp.eq.s32.totalorder %s19, 0
      %p151 = por %p149, %p150
      %p152 = scmp.le.s32.totalorder 1, %s13
      %p153 = scmp.lt.s32.totalorder %s13, 13
      %p154 = pnand %p152, %p153
      %p155 = pneg %p154
      // Predicated region
      $region9: #{tpu_custom_call.1} parent=5 // pred_check
        _
      $region10: #{tpu_custom_call.1} parent=5 // pred_check_branch
        %157 = sbr.rel (%p154) target = $region12
      $region11: #{tpu_custom_call.1} parent=5 // pred_region
        %s158 = ssub.s32 %s13, 1
      $region12: #{tpu_custom_call.1} parent=5 // pred_fallthru
        _
      %p159 = scmp.lt.s32.totalorder %s13, 12
      // Predicated region
      $region13: #{tpu_custom_call.1} parent=5 // pred_check
        %p160 = pneg %p159
      $region14: #{tpu_custom_call.1} parent=5 // pred_check_branch
        %162 = sbr.rel (%p160) target = $region16
      $region15: #{tpu_custom_call.1} parent=5 // pred_region
        // Predicated region
        $region17: #{tpu_custom_call.1} parent=15 // pred_check
          %p163 = pneg %p54
        $region18: #{tpu_custom_call.1} parent=15 // pred_check_branch
          %165 = sbr.rel (%p163) target = $region20
        $region19: #{tpu_custom_call.1} parent=15 // pred_region
          %s166 = smul.u32 16, %s21
          %s167 = ssub.s32 25, %s166
          %p168 = scmp.lt.s32.totalorder %s167, 16
          %s169 = scalar_select %p168, %s167, 16
          %s170 = smul.u32 128, %s169
          %p171 = scmp.lt.s32.totalorder %s20, 1
          %s172 = scalar_select %p171, %s20, 1
          %p173 = scmp.lt.s32.totalorder %s166, 24
          %s174 = scalar_select %p173, %s166, 24
          %s175 = smul.addr %s172, 25
          %s176 = sadd.s32 %s174, %s175
          %s177 = smul.addr %s176, 8
          %s178 = scalar_lea.vmem %s0, %s177
          %s179 = smul.u32 16, %s21
          %s180 = ssub.s32 25, %s179
          %p181 = scmp.lt.s32.totalorder %s180, 16
          %s182 = scalar_select %p181, %s180, 16
          %s183 = smul.u32 128, %s182
        $region20: #{tpu_custom_call.1} parent=15 // pred_fallthru
          _
        // Predicated region
        $region21: #{tpu_custom_call.1} parent=15 // pred_check
          %p184 = pneg %p82
        $region22: #{tpu_custom_call.1} parent=15 // pred_check_branch
          %186 = sbr.rel (%p184) target = $region24
        $region23: #{tpu_custom_call.1} parent=15 // pred_region
          %p187 = scmp.lt.s32.totalorder %s20, 1
          %s188 = scalar_select %p187, %s20, 1
          %p189 = scmp.lt.s32.totalorder %s22, 2
          %s190 = scalar_select %p189, %s22, 2
          %s191 = smul.addr %s188, 3
          %s192 = sadd.s32 %s190, %s191
          %s193 = smul.addr %s192, 2
          %s194 = scalar_lea.vmem %s1, %s193
        $region24: #{tpu_custom_call.1} parent=15 // pred_fallthru
          _
      $region16: #{tpu_custom_call.1} parent=5 // pred_fallthru
        _
      %p195 = scmp.le.s32.totalorder 1, %s13
      %p196 = scmp.lt.s32.totalorder %s13, 13
      %p197 = pnand %p195, %p196
      %p198 = pneg %p197
      // Predicated region
      $region25: #{tpu_custom_call.1} parent=5 // pred_check
        _
      $region26: #{tpu_custom_call.1} parent=5 // pred_check_branch
        %200 = sbr.rel (%p197) target = $region28
      $region27: #{tpu_custom_call.1} parent=5 // pred_region
        %s201 = ssub.s32 %s13, 1
        %s202 = smul.u32 16, %s24
        %s203 = ssub.s32 25, %s202
        %p204 = scmp.lt.s32.totalorder %s203, 16
        %s205 = scalar_select %p204, %s203, 16
        %s206 = smul.u32 128, %s205
        %p207 = scmp.lt.s32.totalorder %s23, 1
        %s208 = scalar_select %p207, %s23, 1
        %p209 = scmp.lt.s32.totalorder %s202, 24
        %s210 = scalar_select %p209, %s202, 24
        %s211 = smul.addr %s208, 25
        %s212 = sadd.s32 %s210, %s211
        %s213 = smul.addr %s212, 8
        %s214 = scalar_lea.vmem %s0, %s213
        %p215 = pneg %p60
        %p216 = pneg %p57
        %p217 = scmp.lt.s32.totalorder %s23, 1
        %s218 = scalar_select %p217, %s23, 1
        %p219 = scmp.lt.s32.totalorder %s25, 2
        %s220 = scalar_select %p219, %s25, 2
        %s221 = smul.addr %s218, 3
        %s222 = sadd.s32 %s220, %s221
        %s223 = smul.addr %s222, 2
        %s224 = scalar_lea.vmem %s1, %s223
        %p225 = pneg %p88
        %p226 = pneg %p85
        %p227 = pneg %p116
        %p228 = pneg %p113
        %s229 = sand.u32 %s103, 1
        %s230 = sand.u32 %s103, 1
        %s231 = smul.addr %s230, 128
        %s232 = scalar_lea.vmem [#allocation4], %s231
        %p233 = pneg %p144
        %p234 = pneg %p141
        %s235 = sand.u32 %s131, 1
        %s236 = scalar_lea.sflag [#allocation6], %s235
        %s237 = sand.u32 %s131, 1
        %s238 = smul.addr %s237, 2
        %s239 = scalar_lea.vmem [#allocation5], %s238
        %s240 = smul.u32 16, %s24
        %s241 = ssub.s32 25, %s240
        %p242 = scmp.lt.s32.totalorder %s241, 16
        %s243 = scalar_select %p242, %s241, 16
        %s244 = smul.u32 128, %s243
        %p245 = scmp.lt.s32.totalorder %s23, 1
        %s246 = scalar_select %p245, %s23, 1
        %p247 = scmp.lt.s32.totalorder %s240, 24
        %s248 = scalar_select %p247, %s240, 24
        %s249 = smul.addr %s246, 25
        %s250 = sadd.s32 %s248, %s249
        %s251 = smul.addr %s250, 8
        %s252 = scalar_lea.vmem %s0, %s251
        %s253 = smul.u32 16, %s24
        %s254 = ssub.s32 25, %s253
        %p255 = scmp.lt.s32.totalorder %s254, 16
        %s256 = scalar_select %p255, %s254, 16
        %s257 = smul.u32 128, %s256
        %p258 = scmp.lt.s32.totalorder %s23, 1
        %s259 = scalar_select %p258, %s23, 1
        %p260 = scmp.lt.s32.totalorder %s25, 2
        %s261 = scalar_select %p260, %s25, 2
        %s262 = smul.addr %s259, 3
        %s263 = sadd.s32 %s261, %s262
        %s264 = smul.addr %s263, 2
        %s265 = scalar_lea.vmem %s1, %s264
        %s266 = smul.u32 16, %s24
        %s267 = ssub.s32 25, %s266
        %p268 = scmp.lt.s32.totalorder %s267, 16
        %s269 = scalar_select %p268, %s267, 16
        %s270 = smul.u32 128, %s269
        %v271 = vld [vmem:[%s252] sm:$0xff]
        %v272 = vld [vmem:[%s252 + $0x8] sm:$0xff]
        %v273 = vld [vmem:[%s252 + $0x10] sm:$0xff]
        %v274 = vld [vmem:[%s252 + $0x18] sm:$0xff]
        %v275 = vld [vmem:[%s252 + $0x20] sm:$0xff]
        %v276 = vld [vmem:[%s252 + $0x28] sm:$0xff]
        %v277 = vld [vmem:[%s252 + $0x30] sm:$0xff]
        %v278 = vld [vmem:[%s252 + $0x38] sm:$0xff]
        %v279 = vld [vmem:[%s252 + $0x40] sm:$0xff]
        %v280 = vld [vmem:[%s252 + $0x48] sm:$0xff]
        %v281 = vld [vmem:[%s252 + $0x50] sm:$0xff]
        %v282 = vld [vmem:[%s252 + $0x58] sm:$0xff]
        %v283 = vld [vmem:[%s252 + $0x60] sm:$0xff]
        %v284 = vld [vmem:[%s252 + $0x68] sm:$0xff]
        %v285 = vld [vmem:[%s252 + $0x70] sm:$0xff]
        %v286 = vld [vmem:[%s252 + $0x78] sm:$0xff]
        %v287 = vld [vmem:[%s265] sm:$0x3]
        %289 = vset.pattern.permute.xlu0 0
        %290 = vperm.xlu0 %289, %v271
        %v291 = vpop.permute.xlu0 %290
        %294 = vset.pattern.permute.xlu0 0
        %295 = vperm.xlu0 %294, %v272
        %v296 = vpop.permute.xlu0 %295
        %299 = vset.pattern.permute.xlu0 0
        %300 = vperm.xlu0 %299, %v273
        %v301 = vpop.permute.xlu0 %300
        %304 = vset.pattern.permute.xlu0 0
        %305 = vperm.xlu0 %304, %v274
        %v306 = vpop.permute.xlu0 %305
        %309 = vset.pattern.permute.xlu0 0
        %310 = vperm.xlu0 %309, %v275
        %v311 = vpop.permute.xlu0 %310
        %314 = vset.pattern.permute.xlu0 0
        %315 = vperm.xlu0 %314, %v276
        %v316 = vpop.permute.xlu0 %315
        %319 = vset.pattern.permute.xlu0 0
        %320 = vperm.xlu0 %319, %v277
        %v321 = vpop.permute.xlu0 %320
        %324 = vset.pattern.permute.xlu0 0
        %325 = vperm.xlu0 %324, %v278
        %v326 = vpop.permute.xlu0 %325
        %329 = vset.pattern.permute.xlu0 0
        %330 = vperm.xlu0 %329, %v279
        %v331 = vpop.permute.xlu0 %330
        %334 = vset.pattern.permute.xlu0 0
        %335 = vperm.xlu0 %334, %v280
        %v336 = vpop.permute.xlu0 %335
        %339 = vset.pattern.permute.xlu0 0
        %340 = vperm.xlu0 %339, %v281
        %v341 = vpop.permute.xlu0 %340
        %344 = vset.pattern.permute.xlu0 0
        %345 = vperm.xlu0 %344, %v282
        %v346 = vpop.permute.xlu0 %345
        %349 = vset.pattern.permute.xlu0 0
        %350 = vperm.xlu0 %349, %v283
        %v351 = vpop.permute.xlu0 %350
        %354 = vset.pattern.permute.xlu0 0
        %355 = vperm.xlu0 %354, %v284
        %v356 = vpop.permute.xlu0 %355
        %359 = vset.pattern.permute.xlu0 0
        %360 = vperm.xlu0 %359, %v285
        %v361 = vpop.permute.xlu0 %360
        %364 = vset.pattern.permute.xlu0 0
        %365 = vperm.xlu0 %364, %v286
        %v366 = vpop.permute.xlu0 %365
        %v368 = vlaneseq
        %v369 = vshrl.u32 %v368, 7
        %v370 = vsub.s32 0, %v369
        %v371 = vrot.slane %v287, %v370
        %v372 = vmul.f32 %v291, %v371
        %v373 = vmul.f32 %v296, %v371
        %v374 = vmul.f32 %v301, %v371
        %v375 = vmul.f32 %v306, %v371
        %v376 = vmul.f32 %v311, %v371
        %v377 = vmul.f32 %v316, %v371
        %v378 = vmul.f32 %v321, %v371
        %v379 = vmul.f32 %v326, %v371
        %v380 = vmul.f32 %v331, %v371
        %v381 = vmul.f32 %v336, %v371
        %v382 = vmul.f32 %v341, %v371
        %v383 = vmul.f32 %v346, %v371
        %v384 = vmul.f32 %v351, %v371
        %v385 = vmul.f32 %v356, %v371
        %v386 = vmul.f32 %v361, %v371
        %v387 = vmul.f32 %v366, %v371
        %388 = vset.pattern.permute.xlu0 1
        %389 = vperm.xlu0 %388, %v271
        %v390 = vpop.permute.xlu0 %389
        %392 = vset.pattern.permute.xlu0 1
        %393 = vperm.xlu0 %392, %v272
        %v394 = vpop.permute.xlu0 %393
        %396 = vset.pattern.permute.xlu0 1
        %397 = vperm.xlu0 %396, %v273
        %v398 = vpop.permute.xlu0 %397
        %400 = vset.pattern.permute.xlu0 1
        %401 = vperm.xlu0 %400, %v274
        %v402 = vpop.permute.xlu0 %401
        %404 = vset.pattern.permute.xlu0 1
        %405 = vperm.xlu0 %404, %v275
        %v406 = vpop.permute.xlu0 %405
        %408 = vset.pattern.permute.xlu0 1
        %409 = vperm.xlu0 %408, %v276
        %v410 = vpop.permute.xlu0 %409
        %412 = vset.pattern.permute.xlu0 1
        %413 = vperm.xlu0 %412, %v277
        %v414 = vpop.permute.xlu0 %413
        %416 = vset.pattern.permute.xlu0 1
        %417 = vperm.xlu0 %416, %v278
        %v418 = vpop.permute.xlu0 %417
        %420 = vset.pattern.permute.xlu0 1
        %421 = vperm.xlu0 %420, %v279
        %v422 = vpop.permute.xlu0 %421
        %424 = vset.pattern.permute.xlu0 1
        %425 = vperm.xlu0 %424, %v280
        %v426 = vpop.permute.xlu0 %425
        %428 = vset.pattern.permute.xlu0 1
        %429 = vperm.xlu0 %428, %v281
        %v430 = vpop.permute.xlu0 %429
        %432 = vset.pattern.permute.xlu0 1
        %433 = vperm.xlu0 %432, %v282
        %v434 = vpop.permute.xlu0 %433
        %436 = vset.pattern.permute.xlu0 1
        %437 = vperm.xlu0 %436, %v283
        %v438 = vpop.permute.xlu0 %437
        %440 = vset.pattern.permute.xlu0 1
        %441 = vperm.xlu0 %440, %v284
        %v442 = vpop.permute.xlu0 %441
        %444 = vset.pattern.permute.xlu0 1
        %445 = vperm.xlu0 %444, %v285
        %v446 = vpop.permute.xlu0 %445
        %448 = vset.pattern.permute.xlu0 1
        %449 = vperm.xlu0 %448, %v286
        %v450 = vpop.permute.xlu0 %449
        %v452 = vlaneseq
        %v453 = vshrl.u32 %v452, 7
        %v454 = vsub.s32 1, %v453
        %v455 = vrot.slane %v287, %v454
        %v456 = vmul.f32 %v390, %v455
        %v457 = vmul.f32 %v394, %v455
        %v458 = vmul.f32 %v398, %v455
        %v459 = vmul.f32 %v402, %v455
        %v460 = vmul.f32 %v406, %v455
        %v461 = vmul.f32 %v410, %v455
        %v462 = vmul.f32 %v414, %v455
        %v463 = vmul.f32 %v418, %v455
        %v464 = vmul.f32 %v422, %v455
        %v465 = vmul.f32 %v426, %v455
        %v466 = vmul.f32 %v430, %v455
        %v467 = vmul.f32 %v434, %v455
        %v468 = vmul.f32 %v438, %v455
        %v469 = vmul.f32 %v442, %v455
        %v470 = vmul.f32 %v446, %v455
        %v471 = vmul.f32 %v450, %v455
        %v472 = vadd.f32 %v372, %v456
        %v473 = vadd.f32 %v373, %v457
        %v474 = vadd.f32 %v374, %v458
        %v475 = vadd.f32 %v375, %v459
        %v476 = vadd.f32 %v376, %v460
        %v477 = vadd.f32 %v377, %v461
        %v478 = vadd.f32 %v378, %v462
        %v479 = vadd.f32 %v379, %v463
        %v480 = vadd.f32 %v380, %v464
        %v481 = vadd.f32 %v381, %v465
        %v482 = vadd.f32 %v382, %v466
        %v483 = vadd.f32 %v383, %v467
        %v484 = vadd.f32 %v384, %v468
        %v485 = vadd.f32 %v385, %v469
        %v486 = vadd.f32 %v386, %v470
        %v487 = vadd.f32 %v387, %v471
        %v488 = vmul.f32 %v472, 2.0
        %v489 = vmul.f32 %v473, 2.0
        %v490 = vmul.f32 %v474, 2.0
        %v491 = vmul.f32 %v475, 2.0
        %v492 = vmul.f32 %v476, 2.0
        %v493 = vmul.f32 %v477, 2.0
        %v494 = vmul.f32 %v478, 2.0
        %v495 = vmul.f32 %v479, 2.0
        %v496 = vmul.f32 %v480, 2.0
        %v497 = vmul.f32 %v481, 2.0
        %v498 = vmul.f32 %v482, 2.0
        %v499 = vmul.f32 %v483, 2.0
        %v500 = vmul.f32 %v484, 2.0
        %v501 = vmul.f32 %v485, 2.0
        %v502 = vmul.f32 %v486, 2.0
        %v503 = vmul.f32 %v487, 2.0
        %v504 = vsub.f32 2.0, %v488
        %v505 = vsub.f32 2.0, %v489
        %v506 = vsub.f32 2.0, %v490
        %v507 = vsub.f32 2.0, %v491
        %v508 = vsub.f32 2.0, %v492
        %v509 = vsub.f32 2.0, %v493
        %v510 = vsub.f32 2.0, %v494
        %v511 = vsub.f32 2.0, %v495
        %v512 = vsub.f32 2.0, %v496
        %v513 = vsub.f32 2.0, %v497
        %v514 = vsub.f32 2.0, %v498
        %v515 = vsub.f32 2.0, %v499
        %v516 = vsub.f32 2.0, %v500
        %v517 = vsub.f32 2.0, %v501
        %v518 = vsub.f32 2.0, %v502
        %v519 = vsub.f32 2.0, %v503
        %v520 = vmax.f32 %v504, 0.0
        %v521 = vmax.f32 %v505, 0.0
        %v522 = vmax.f32 %v506, 0.0
        %v523 = vmax.f32 %v507, 0.0
        %v524 = vmax.f32 %v508, 0.0
        %v525 = vmax.f32 %v509, 0.0
        %v526 = vmax.f32 %v510, 0.0
        %v527 = vmax.f32 %v511, 0.0
        %v528 = vmax.f32 %v512, 0.0
        %v529 = vmax.f32 %v513, 0.0
        %v530 = vmax.f32 %v514, 0.0
        %v531 = vmax.f32 %v515, 0.0
        %v532 = vmax.f32 %v516, 0.0
        %v533 = vmax.f32 %v517, 0.0
        %v534 = vmax.f32 %v518, 0.0
        %v535 = vmax.f32 %v519, 0.0
        %v536 = vrsqrt.pop %v520
        %v537 = vmul.f32 %v520, %v536
        %vm538 = vcmp.eq.f32.partialorder %v520, inf
        %v539 = vsel %vm538, %v520, %v537
        %vm540 = vcmp.eq.f32.partialorder %v520, 0.0
        %v541 = vand.u32 %v520, 2147483648
        %v542 = vsel %vm540, %v541, %v539
        %v543 = vrsqrt.pop %v521
        %v544 = vmul.f32 %v521, %v543
        %vm545 = vcmp.eq.f32.partialorder %v521, inf
        %v546 = vsel %vm545, %v521, %v544
        %vm547 = vcmp.eq.f32.partialorder %v521, 0.0
        %v548 = vand.u32 %v521, 2147483648
        %v549 = vsel %vm547, %v548, %v546
        %v550 = vrsqrt.pop %v522
        %v551 = vmul.f32 %v522, %v550
        %vm552 = vcmp.eq.f32.partialorder %v522, inf
        %v553 = vsel %vm552, %v522, %v551
        %vm554 = vcmp.eq.f32.partialorder %v522, 0.0
        %v555 = vand.u32 %v522, 2147483648
        %v556 = vsel %vm554, %v555, %v553
        %v557 = vrsqrt.pop %v523
        %v558 = vmul.f32 %v523, %v557
        %vm559 = vcmp.eq.f32.partialorder %v523, inf
        %v560 = vsel %vm559, %v523, %v558
        %vm561 = vcmp.eq.f32.partialorder %v523, 0.0
        %v562 = vand.u32 %v523, 2147483648
        %v563 = vsel %vm561, %v562, %v560
        %v564 = vrsqrt.pop %v524
        %v565 = vmul.f32 %v524, %v564
        %vm566 = vcmp.eq.f32.partialorder %v524, inf
        %v567 = vsel %vm566, %v524, %v565
        %vm568 = vcmp.eq.f32.partialorder %v524, 0.0
        %v569 = vand.u32 %v524, 2147483648
        %v570 = vsel %vm568, %v569, %v567
        %v571 = vrsqrt.pop %v525
        %v572 = vmul.f32 %v525, %v571
        %vm573 = vcmp.eq.f32.partialorder %v525, inf
        %v574 = vsel %vm573, %v525, %v572
        %vm575 = vcmp.eq.f32.partialorder %v525, 0.0
        %v576 = vand.u32 %v525, 2147483648
        %v577 = vsel %vm575, %v576, %v574
        %v578 = vrsqrt.pop %v526
        %v579 = vmul.f32 %v526, %v578
        %vm580 = vcmp.eq.f32.partialorder %v526, inf
        %v581 = vsel %vm580, %v526, %v579
        %vm582 = vcmp.eq.f32.partialorder %v526, 0.0
        %v583 = vand.u32 %v526, 2147483648
        %v584 = vsel %vm582, %v583, %v581
        %v585 = vrsqrt.pop %v527
        %v586 = vmul.f32 %v527, %v585
        %vm587 = vcmp.eq.f32.partialorder %v527, inf
        %v588 = vsel %vm587, %v527, %v586
        %vm589 = vcmp.eq.f32.partialorder %v527, 0.0
        %v590 = vand.u32 %v527, 2147483648
        %v591 = vsel %vm589, %v590, %v588
        %v592 = vrsqrt.pop %v528
        %v593 = vmul.f32 %v528, %v592
        %vm594 = vcmp.eq.f32.partialorder %v528, inf
        %v595 = vsel %vm594, %v528, %v593
        %vm596 = vcmp.eq.f32.partialorder %v528, 0.0
        %v597 = vand.u32 %v528, 2147483648
        %v598 = vsel %vm596, %v597, %v595
        %v599 = vrsqrt.pop %v529
        %v600 = vmul.f32 %v529, %v599
        %vm601 = vcmp.eq.f32.partialorder %v529, inf
        %v602 = vsel %vm601, %v529, %v600
        %vm603 = vcmp.eq.f32.partialorder %v529, 0.0
        %v604 = vand.u32 %v529, 2147483648
        %v605 = vsel %vm603, %v604, %v602
        %v606 = vrsqrt.pop %v530
        %v607 = vmul.f32 %v530, %v606
        %vm608 = vcmp.eq.f32.partialorder %v530, inf
        %v609 = vsel %vm608, %v530, %v607
        %vm610 = vcmp.eq.f32.partialorder %v530, 0.0
        %v611 = vand.u32 %v530, 2147483648
        %v612 = vsel %vm610, %v611, %v609
        %v613 = vrsqrt.pop %v531
        %v614 = vmul.f32 %v531, %v613
        %vm615 = vcmp.eq.f32.partialorder %v531, inf
        %v616 = vsel %vm615, %v531, %v614
        %vm617 = vcmp.eq.f32.partialorder %v531, 0.0
        %v618 = vand.u32 %v531, 2147483648
        %v619 = vsel %vm617, %v618, %v616
        %v620 = vrsqrt.pop %v532
        %v621 = vmul.f32 %v532, %v620
        %vm622 = vcmp.eq.f32.partialorder %v532, inf
        %v623 = vsel %vm622, %v532, %v621
        %vm624 = vcmp.eq.f32.partialorder %v532, 0.0
        %v625 = vand.u32 %v532, 2147483648
        %v626 = vsel %vm624, %v625, %v623
        %v627 = vrsqrt.pop %v533
        %v628 = vmul.f32 %v533, %v627
        %vm629 = vcmp.eq.f32.partialorder %v533, inf
        %v630 = vsel %vm629, %v533, %v628
        %vm631 = vcmp.eq.f32.partialorder %v533, 0.0
        %v632 = vand.u32 %v533, 2147483648
        %v633 = vsel %vm631, %v632, %v630
        %v634 = vrsqrt.pop %v534
        %v635 = vmul.f32 %v534, %v634
        %vm636 = vcmp.eq.f32.partialorder %v534, inf
        %v637 = vsel %vm636, %v534, %v635
        %vm638 = vcmp.eq.f32.partialorder %v534, 0.0
        %v639 = vand.u32 %v534, 2147483648
        %v640 = vsel %vm638, %v639, %v637
        %v641 = vrsqrt.pop %v535
        %v642 = vmul.f32 %v535, %v641
        %vm643 = vcmp.eq.f32.partialorder %v535, inf
        %v644 = vsel %vm643, %v535, %v642
        %vm645 = vcmp.eq.f32.partialorder %v535, 0.0
        %v646 = vand.u32 %v535, 2147483648
        %v647 = vsel %vm645, %v646, %v644
        %s648 = smul.u32 %s24, 128
        %v649 = vlaneseq
        %v650 = vshrl.u32 %v649, 7
        %v651 = vadd.s32 %v650, 8
        %v652 = vadd.s32 %v650, 16
        %v653 = vadd.s32 %v650, 24
        %v654 = vadd.s32 %v650, 32
        %v655 = vadd.s32 %v650, 40
        %v656 = vadd.s32 %v650, 48
        %v657 = vadd.s32 %v650, 56
        %v658 = vadd.s32 %v650, 64
        %v659 = vadd.s32 %v650, 72
        %v660 = vadd.s32 %v650, 80
        %v661 = vadd.s32 %v650, 88
        %v662 = vadd.s32 %v650, 96
        %v663 = vadd.s32 %v650, 104
        %v664 = vadd.s32 %v650, 112
        %v665 = vadd.s32 %v650, 120
        %v666 = vstv %s648
        %v667 = vadd.s32 %v666, %v650
        %v668 = vadd.s32 %v666, %v651
        %v669 = vadd.s32 %v666, %v652
        %v670 = vadd.s32 %v666, %v653
        %v671 = vadd.s32 %v666, %v654
        %v672 = vadd.s32 %v666, %v655
        %v673 = vadd.s32 %v666, %v656
        %v674 = vadd.s32 %v666, %v657
        %v675 = vadd.s32 %v666, %v658
        %v676 = vadd.s32 %v666, %v659
        %v677 = vadd.s32 %v666, %v660
        %v678 = vadd.s32 %v666, %v661
        %v679 = vadd.s32 %v666, %v662
        %v680 = vadd.s32 %v666, %v663
        %v681 = vadd.s32 %v666, %v664
        %v682 = vadd.s32 %v666, %v665
        %vm683 = vcmp.lt.s32.totalorder %v667, 200
        %vm684 = vcmp.lt.s32.totalorder %v668, 200
        %vm685 = vcmp.lt.s32.totalorder %v669, 200
        %vm686 = vcmp.lt.s32.totalorder %v670, 200
        %vm687 = vcmp.lt.s32.totalorder %v671, 200
        %vm688 = vcmp.lt.s32.totalorder %v672, 200
        %vm689 = vcmp.lt.s32.totalorder %v673, 200
        %vm690 = vcmp.lt.s32.totalorder %v674, 200
        %vm691 = vcmp.lt.s32.totalorder %v675, 200
        %vm692 = vcmp.lt.s32.totalorder %v676, 200
        %vm693 = vcmp.lt.s32.totalorder %v677, 200
        %vm694 = vcmp.lt.s32.totalorder %v678, 200
        %vm695 = vcmp.lt.s32.totalorder %v679, 200
        %vm696 = vcmp.lt.s32.totalorder %v680, 200
        %vm697 = vcmp.lt.s32.totalorder %v681, 200
        %vm698 = vcmp.lt.s32.totalorder %v682, 200
        %s699 = smul.u32 %s25, 128
        %v700 = vlaneseq
        %v701 = vand.u32 %v700, 127
        %v702 = vstv %s699
        %v703 = vadd.s32 %v702, %v701
        %vm704 = vcmp.lt.s32.totalorder %v703, 264
        %v705 = vsel %vm683, 1, 0
        %v706 = vsel %vm684, 1, 0
        %v707 = vsel %vm685, 1, 0
        %v708 = vsel %vm686, 1, 0
        %v709 = vsel %vm687, 1, 0
        %v710 = vsel %vm688, 1, 0
        %v711 = vsel %vm689, 1, 0
        %v712 = vsel %vm690, 1, 0
        %v713 = vsel %vm691, 1, 0
        %v714 = vsel %vm692, 1, 0
        %v715 = vsel %vm693, 1, 0
        %v716 = vsel %vm694, 1, 0
        %v717 = vsel %vm695, 1, 0
        %v718 = vsel %vm696, 1, 0
        %v719 = vsel %vm697, 1, 0
        %v720 = vsel %vm698, 1, 0
        %vm721 = vcmp.eq.s32.totalorder %v705, 1
        %vm722 = vcmp.eq.s32.totalorder %v706, 1
        %vm723 = vcmp.eq.s32.totalorder %v707, 1
        %vm724 = vcmp.eq.s32.totalorder %v708, 1
        %vm725 = vcmp.eq.s32.totalorder %v709, 1
        %vm726 = vcmp.eq.s32.totalorder %v710, 1
        %vm727 = vcmp.eq.s32.totalorder %v711, 1
        %vm728 = vcmp.eq.s32.totalorder %v712, 1
        %vm729 = vcmp.eq.s32.totalorder %v713, 1
        %vm730 = vcmp.eq.s32.totalorder %v714, 1
        %vm731 = vcmp.eq.s32.totalorder %v715, 1
        %vm732 = vcmp.eq.s32.totalorder %v716, 1
        %vm733 = vcmp.eq.s32.totalorder %v717, 1
        %vm734 = vcmp.eq.s32.totalorder %v718, 1
        %vm735 = vcmp.eq.s32.totalorder %v719, 1
        %vm736 = vcmp.eq.s32.totalorder %v720, 1
        %v737 = vsel %vm704, 1, 0
        %vm738 = vcmp.eq.s32.totalorder %v737, 1
        %vm739 = vmand %vm721, %vm738
        %vm740 = vmand %vm722, %vm738
        %vm741 = vmand %vm723, %vm738
        %vm742 = vmand %vm724, %vm738
        %vm743 = vmand %vm725, %vm738
        %vm744 = vmand %vm726, %vm738
        %vm745 = vmand %vm727, %vm738
        %vm746 = vmand %vm728, %vm738
        %vm747 = vmand %vm729, %vm738
        %vm748 = vmand %vm730, %vm738
        %vm749 = vmand %vm731, %vm738
        %vm750 = vmand %vm732, %vm738
        %vm751 = vmand %vm733, %vm738
        %vm752 = vmand %vm734, %vm738
        %vm753 = vmand %vm735, %vm738
        %vm754 = vmand %vm736, %vm738
        %v755 = vand.u32 2147483647, %v542
        %vm756 = vcmp.le.f32.partialorder %v755, 0.7853982
        %vm757 = vcmp.lt.s32.totalorder %v542, 0
        %v758 = vand.u32 %v542, 2139095040
        %v759 = vshrl.u32 %v758, 23
        %v760 = vsub.s32 %v759, 127
        %v761 = vand.u32 2147483647, %v542
        %v762 = vand.u32 %v761, 8388607
        %v763 = vor.u32 %v762, 8388608
        %v764 = vsub.s32 0, %v763
        %v765 = vadd.s32 %v760, 1
        %vm766 = vcmp.gt.s32.totalorder %v765, 0
        %v767 = vsel %vm766, %v765, 0
        %v768 = vshrl.u32 %v767, 5
        %v769 = vand.u32 %v767, 31
        %v770 = vsub.s32 32, %v769
        %v771 = vshrl.u32 683565275, %v770
        %v772 = vshll.u32 683565275, %v769
        %v773 = vshrl.u32 2475754826, %v770
        %v774 = vor.u32 %v772, %v773
        %v775 = vshll.u32 2475754826, %v769
        %v776 = vshrl.u32 2131351028, %v770
        %v777 = vor.u32 %v775, %v776
        %v778 = vshll.u32 2131351028, %v769
        %v779 = vshrl.u32 2102212464, %v770
        %v780 = vor.u32 %v778, %v779
        %v781 = vshll.u32 2102212464, %v769
        %v782 = vshrl.u32 920167782, %v770
        %v783 = vor.u32 %v781, %v782
        %v784 = vshll.u32 920167782, %v769
        %v785 = vshrl.u32 1326507024, %v770
        %v786 = vor.u32 %v784, %v785
        %vm787 = vcmp.lt.s32.totalorder %v768, 1
        %vm788 = vcmp.lt.s32.totalorder %v768, 2
        %vm789 = vcmp.lt.s32.totalorder %v768, 3
        %vm790 = vcmp.lt.s32.totalorder %v768, 4
        %v791 = vsel %vm787, %v771, %v774
        %v792 = vsel %vm790, %v780, 2102212464
        %v793 = vsel %vm789, %v777, %v792
        %v794 = vsel %vm788, %v791, %v793
        %v795 = vsel %vm787, %v774, %v777
        %v796 = vsel %vm790, %v783, 920167782
        %v797 = vsel %vm789, %v780, %v796
        %v798 = vsel %vm788, %v795, %v797
        %v799 = vsel %vm787, %v777, %v780
        %v800 = vsel %vm790, %v786, 1326507024
        %v801 = vsel %vm789, %v783, %v800
        %v802 = vsel %vm788, %v799, %v801
        %v803 = vshll.u32 %v763, 8
        %v804 = vmul.u32.u64.compose %v803, %v802
        %v805 = vextract.low.u32 %v804
        %v806 = vextract.high.u32 %v804
        %v807 = vmul.u32.u64.compose %v803, %v798
        %v808 = vextract.low.u32 %v807
        %v809 = vextract.high.u32 %v807
        %v810 = vmul.u32 %v803, %v794
        %v811 = vadd.s32 %v806, %v808
        %vm812 = vc.u32 %v806, %v808
        %v813 = vadd.s32 %v809, 1
        %v814 = vsel %vm812, %v813, %v809
        %v815 = vadd.s32 %v810, %v814
        %v816 = vadd.s32 %v815, 536870912
        %v817 = vshrl.u32 %v816, 30
        %v818 = vshll.u32 %v817, 30
        %v819 = vsub.s32 %v815, %v818
        %vm820 = vcmp.lt.s32.totalorder %v819, 0
        %v821 = vsub.s32 0, %v819
        %v822 = vsel %vm820, %v821, %v819
        %v823 = vclz %v822
        %v824 = vsub.s32 %v823, 2
        %vm825 = vcmp.gt.s32.totalorder 0, %v824
        %v826 = vsel %vm825, 0, %v824
        %v827 = vsub.s32 32, %v826
        %v828 = vshll.u32 %v819, %v826
        %v829 = vshrl.u32 %v811, %v827
        %v830 = vor.u32 %v828, %v829
        %v831 = vsub.s32 4294967266, %v826
        %v832 = vadd.s32 %v831, 127
        %v833 = vshll.u32 %v832, 23
        %v834 = vor.u32 4788187, %v833
        %v835 = vand.u32 2147483647, %v834
        %v837 = vcvt.s32.f32 %v830
        %v838 = vmul.f32 %v837, %v835
        %v839 = vxor.u32 %v838, 2147483648
        %v840 = vsel %vm757, %v839, %v838
        %v841 = vsub.s32 4, %v817
        %v842 = vsel %vm757, %v841, %v817
        %v843 = vsel %vm756, %v542, %v840
        %v844 = vsel %vm756, 0, %v842
        %v845 = vcosq.f32.pop %v843
        %v846 = vsinq.f32.pop %v843
        %vm847 = vweird.f32 %v542
        %v848 = vadd.s32 %v844, 3
        %v849 = vand.u32 %v848, 3
        %vm850 = vcmp.lt.s32.totalorder %v849, 2
        %vm851 = vcmp.eq.s32.totalorder %v849, 0
        %v852 = vxor.u32 %v846, 2147483648
        %v853 = vsel %vm851, %v845, %v852
        %vm854 = vcmp.eq.s32.totalorder %v849, 2
        %v855 = vxor.u32 %v845, 2147483648
        %v856 = vsel %vm854, %v855, %v846
        %v857 = vsel %vm850, %v853, %v856
        %v858 = vsel %vm847, nan, %v857
        %v859 = vand.u32 2147483647, %v549
        %vm860 = vcmp.le.f32.partialorder %v859, 0.7853982
        %vm861 = vcmp.lt.s32.totalorder %v549, 0
        %v862 = vand.u32 %v549, 2139095040
        %v863 = vshrl.u32 %v862, 23
        %v864 = vsub.s32 %v863, 127
        %v865 = vand.u32 2147483647, %v549
        %v866 = vand.u32 %v865, 8388607
        %v867 = vor.u32 %v866, 8388608
        %v868 = vsub.s32 0, %v867
        %v869 = vadd.s32 %v864, 1
        %vm870 = vcmp.gt.s32.totalorder %v869, 0
        %v871 = vsel %vm870, %v869, 0
        %v872 = vshrl.u32 %v871, 5
        %v873 = vand.u32 %v871, 31
        %v874 = vsub.s32 32, %v873
        %v875 = vshrl.u32 683565275, %v874
        %v876 = vshll.u32 683565275, %v873
        %v877 = vshrl.u32 2475754826, %v874
        %v878 = vor.u32 %v876, %v877
        %v879 = vshll.u32 2475754826, %v873
        %v880 = vshrl.u32 2131351028, %v874
        %v881 = vor.u32 %v879, %v880
        %v882 = vshll.u32 2131351028, %v873
        %v883 = vshrl.u32 2102212464, %v874
        %v884 = vor.u32 %v882, %v883
        %v885 = vshll.u32 2102212464, %v873
        %v886 = vshrl.u32 920167782, %v874
        %v887 = vor.u32 %v885, %v886
        %v888 = vshll.u32 920167782, %v873
        %v889 = vshrl.u32 1326507024, %v874
        %v890 = vor.u32 %v888, %v889
        %vm891 = vcmp.lt.s32.totalorder %v872, 1
        %vm892 = vcmp.lt.s32.totalorder %v872, 2
        %vm893 = vcmp.lt.s32.totalorder %v872, 3
        %vm894 = vcmp.lt.s32.totalorder %v872, 4
        %v895 = vsel %vm891, %v875, %v878
        %v896 = vsel %vm894, %v884, 2102212464
        %v897 = vsel %vm893, %v881, %v896
        %v898 = vsel %vm892, %v895, %v897
        %v899 = vsel %vm891, %v878, %v881
        %v900 = vsel %vm894, %v887, 920167782
        %v901 = vsel %vm893, %v884, %v900
        %v902 = vsel %vm892, %v899, %v901
        %v903 = vsel %vm891, %v881, %v884
        %v904 = vsel %vm894, %v890, 1326507024
        %v905 = vsel %vm893, %v887, %v904
        %v906 = vsel %vm892, %v903, %v905
        %v907 = vshll.u32 %v867, 8
        %v908 = vmul.u32.u64.compose %v907, %v906
        %v909 = vextract.low.u32 %v908
        %v910 = vextract.high.u32 %v908
        %v911 = vmul.u32.u64.compose %v907, %v902
        %v912 = vextract.low.u32 %v911
        %v913 = vextract.high.u32 %v911
        %v914 = vmul.u32 %v907, %v898
        %v915 = vadd.s32 %v910, %v912
        %vm916 = vc.u32 %v910, %v912
        %v917 = vadd.s32 %v913, 1
        %v918 = vsel %vm916, %v917, %v913
        %v919 = vadd.s32 %v914, %v918
        %v920 = vadd.s32 %v919, 536870912
        %v921 = vshrl.u32 %v920, 30
        %v922 = vshll.u32 %v921, 30
        %v923 = vsub.s32 %v919, %v922
        %vm924 = vcmp.lt.s32.totalorder %v923, 0
        %v925 = vsub.s32 0, %v923
        %v926 = vsel %vm924, %v925, %v923
        %v927 = vclz %v926
        %v928 = vsub.s32 %v927, 2
        %vm929 = vcmp.gt.s32.totalorder 0, %v928
        %v930 = vsel %vm929, 0, %v928
        %v931 = vsub.s32 32, %v930
        %v932 = vshll.u32 %v923, %v930
        %v933 = vshrl.u32 %v915, %v931
        %v934 = vor.u32 %v932, %v933
        %v935 = vsub.s32 4294967266, %v930
        %v936 = vadd.s32 %v935, 127
        %v937 = vshll.u32 %v936, 23
        %v938 = vor.u32 4788187, %v937
        %v939 = vand.u32 2147483647, %v938
        %v941 = vcvt.s32.f32 %v934
        %v942 = vmul.f32 %v941, %v939
        %v943 = vxor.u32 %v942, 2147483648
        %v944 = vsel %vm861, %v943, %v942
        %v945 = vsub.s32 4, %v921
        %v946 = vsel %vm861, %v945, %v921
        %v947 = vsel %vm860, %v549, %v944
        %v948 = vsel %vm860, 0, %v946
        %v949 = vcosq.f32.pop %v947
        %v950 = vsinq.f32.pop %v947
        %vm951 = vweird.f32 %v549
        %v952 = vadd.s32 %v948, 3
        %v953 = vand.u32 %v952, 3
        %vm954 = vcmp.lt.s32.totalorder %v953, 2
        %vm955 = vcmp.eq.s32.totalorder %v953, 0
        %v956 = vxor.u32 %v950, 2147483648
        %v957 = vsel %vm955, %v949, %v956
        %vm958 = vcmp.eq.s32.totalorder %v953, 2
        %v959 = vxor.u32 %v949, 2147483648
        %v960 = vsel %vm958, %v959, %v950
        %v961 = vsel %vm954, %v957, %v960
        %v962 = vsel %vm951, nan, %v961
        %v963 = vand.u32 2147483647, %v556
        %vm964 = vcmp.le.f32.partialorder %v963, 0.7853982
        %vm965 = vcmp.lt.s32.totalorder %v556, 0
        %v966 = vand.u32 %v556, 2139095040
        %v967 = vshrl.u32 %v966, 23
        %v968 = vsub.s32 %v967, 127
        %v969 = vand.u32 2147483647, %v556
        %v970 = vand.u32 %v969, 8388607
        %v971 = vor.u32 %v970, 8388608
        %v972 = vsub.s32 0, %v971
        %v973 = vadd.s32 %v968, 1
        %vm974 = vcmp.gt.s32.totalorder %v973, 0
        %v975 = vsel %vm974, %v973, 0
        %v976 = vshrl.u32 %v975, 5
        %v977 = vand.u32 %v975, 31
        %v978 = vsub.s32 32, %v977
        %v979 = vshrl.u32 683565275, %v978
        %v980 = vshll.u32 683565275, %v977
        %v981 = vshrl.u32 2475754826, %v978
        %v982 = vor.u32 %v980, %v981
        %v983 = vshll.u32 2475754826, %v977
        %v984 = vshrl.u32 2131351028, %v978
        %v985 = vor.u32 %v983, %v984
        %v986 = vshll.u32 2131351028, %v977
        %v987 = vshrl.u32 2102212464, %v978
        %v988 = vor.u32 %v986, %v987
        %v989 = vshll.u32 2102212464, %v977
        %v990 = vshrl.u32 920167782, %v978
        %v991 = vor.u32 %v989, %v990
        %v992 = vshll.u32 920167782, %v977
        %v993 = vshrl.u32 1326507024, %v978
        %v994 = vor.u32 %v992, %v993
        %vm995 = vcmp.lt.s32.totalorder %v976, 1
        %vm996 = vcmp.lt.s32.totalorder %v976, 2
        %vm997 = vcmp.lt.s32.totalorder %v976, 3
        %vm998 = vcmp.lt.s32.totalorder %v976, 4
        %v999 = vsel %vm995, %v979, %v982
        %v1000 = vsel %vm998, %v988, 2102212464
        %v1001 = vsel %vm997, %v985, %v1000
        %v1002 = vsel %vm996, %v999, %v1001
        %v1003 = vsel %vm995, %v982, %v985
        %v1004 = vsel %vm998, %v991, 920167782
        %v1005 = vsel %vm997, %v988, %v1004
        %v1006 = vsel %vm996, %v1003, %v1005
        %v1007 = vsel %vm995, %v985, %v988
        %v1008 = vsel %vm998, %v994, 1326507024
        %v1009 = vsel %vm997, %v991, %v1008
        %v1010 = vsel %vm996, %v1007, %v1009
        %v1011 = vshll.u32 %v971, 8
        %v1012 = vmul.u32.u64.compose %v1011, %v1010
        %v1013 = vextract.low.u32 %v1012
        %v1014 = vextract.high.u32 %v1012
        %v1015 = vmul.u32.u64.compose %v1011, %v1006
        %v1016 = vextract.low.u32 %v1015
        %v1017 = vextract.high.u32 %v1015
        %v1018 = vmul.u32 %v1011, %v1002
        %v1019 = vadd.s32 %v1014, %v1016
        %vm1020 = vc.u32 %v1014, %v1016
        %v1021 = vadd.s32 %v1017, 1
        %v1022 = vsel %vm1020, %v1021, %v1017
        %v1023 = vadd.s32 %v1018, %v1022
        %v1024 = vadd.s32 %v1023, 536870912
        %v1025 = vshrl.u32 %v1024, 30
        %v1026 = vshll.u32 %v1025, 30
        %v1027 = vsub.s32 %v1023, %v1026
        %vm1028 = vcmp.lt.s32.totalorder %v1027, 0
        %v1029 = vsub.s32 0, %v1027
        %v1030 = vsel %vm1028, %v1029, %v1027
        %v1031 = vclz %v1030
        %v1032 = vsub.s32 %v1031, 2
        %vm1033 = vcmp.gt.s32.totalorder 0, %v1032
        %v1034 = vsel %vm1033, 0, %v1032
        %v1035 = vsub.s32 32, %v1034
        %v1036 = vshll.u32 %v1027, %v1034
        %v1037 = vshrl.u32 %v1019, %v1035
        %v1038 = vor.u32 %v1036, %v1037
        %v1039 = vsub.s32 4294967266, %v1034
        %v1040 = vadd.s32 %v1039, 127
        %v1041 = vshll.u32 %v1040, 23
        %v1042 = vor.u32 4788187, %v1041
        %v1043 = vand.u32 2147483647, %v1042
        %v1045 = vcvt.s32.f32 %v1038
        %v1046 = vmul.f32 %v1045, %v1043
        %v1047 = vxor.u32 %v1046, 2147483648
        %v1048 = vsel %vm965, %v1047, %v1046
        %v1049 = vsub.s32 4, %v1025
        %v1050 = vsel %vm965, %v1049, %v1025
        %v1051 = vsel %vm964, %v556, %v1048
        %v1052 = vsel %vm964, 0, %v1050
        %v1053 = vcosq.f32.pop %v1051
        %v1054 = vsinq.f32.pop %v1051
        %vm1055 = vweird.f32 %v556
        %v1056 = vadd.s32 %v1052, 3
        %v1057 = vand.u32 %v1056, 3
        %vm1058 = vcmp.lt.s32.totalorder %v1057, 2
        %vm1059 = vcmp.eq.s32.totalorder %v1057, 0
        %v1060 = vxor.u32 %v1054, 2147483648
        %v1061 = vsel %vm1059, %v1053, %v1060
        %vm1062 = vcmp.eq.s32.totalorder %v1057, 2
        %v1063 = vxor.u32 %v1053, 2147483648
        %v1064 = vsel %vm1062, %v1063, %v1054
        %v1065 = vsel %vm1058, %v1061, %v1064
        %v1066 = vsel %vm1055, nan, %v1065
        %v1067 = vand.u32 2147483647, %v563
        %vm1068 = vcmp.le.f32.partialorder %v1067, 0.7853982
        %vm1069 = vcmp.lt.s32.totalorder %v563, 0
        %v1070 = vand.u32 %v563, 2139095040
        %v1071 = vshrl.u32 %v1070, 23
        %v1072 = vsub.s32 %v1071, 127
        %v1073 = vand.u32 2147483647, %v563
        %v1074 = vand.u32 %v1073, 8388607
        %v1075 = vor.u32 %v1074, 8388608
        %v1076 = vsub.s32 0, %v1075
        %v1077 = vadd.s32 %v1072, 1
        %vm1078 = vcmp.gt.s32.totalorder %v1077, 0
        %v1079 = vsel %vm1078, %v1077, 0
        %v1080 = vshrl.u32 %v1079, 5
        %v1081 = vand.u32 %v1079, 31
        %v1082 = vsub.s32 32, %v1081
        %v1083 = vshrl.u32 683565275, %v1082
        %v1084 = vshll.u32 683565275, %v1081
        %v1085 = vshrl.u32 2475754826, %v1082
        %v1086 = vor.u32 %v1084, %v1085
        %v1087 = vshll.u32 2475754826, %v1081
        %v1088 = vshrl.u32 2131351028, %v1082
        %v1089 = vor.u32 %v1087, %v1088
        %v1090 = vshll.u32 2131351028, %v1081
        %v1091 = vshrl.u32 2102212464, %v1082
        %v1092 = vor.u32 %v1090, %v1091
        %v1093 = vshll.u32 2102212464, %v1081
        %v1094 = vshrl.u32 920167782, %v1082
        %v1095 = vor.u32 %v1093, %v1094
        %v1096 = vshll.u32 920167782, %v1081
        %v1097 = vshrl.u32 1326507024, %v1082
        %v1098 = vor.u32 %v1096, %v1097
        %vm1099 = vcmp.lt.s32.totalorder %v1080, 1
        %vm1100 = vcmp.lt.s32.totalorder %v1080, 2
        %vm1101 = vcmp.lt.s32.totalorder %v1080, 3
        %vm1102 = vcmp.lt.s32.totalorder %v1080, 4
        %v1103 = vsel %vm1099, %v1083, %v1086
        %v1104 = vsel %vm1102, %v1092, 2102212464
        %v1105 = vsel %vm1101, %v1089, %v1104
        %v1106 = vsel %vm1100, %v1103, %v1105
        %v1107 = vsel %vm1099, %v1086, %v1089
        %v1108 = vsel %vm1102, %v1095, 920167782
        %v1109 = vsel %vm1101, %v1092, %v1108
        %v1110 = vsel %vm1100, %v1107, %v1109
        %v1111 = vsel %vm1099, %v1089, %v1092
        %v1112 = vsel %vm1102, %v1098, 1326507024
        %v1113 = vsel %vm1101, %v1095, %v1112
        %v1114 = vsel %vm1100, %v1111, %v1113
        %v1115 = vshll.u32 %v1075, 8
        %v1116 = vmul.u32.u64.compose %v1115, %v1114
        %v1117 = vextract.low.u32 %v1116
        %v1118 = vextract.high.u32 %v1116
        %v1119 = vmul.u32.u64.compose %v1115, %v1110
        %v1120 = vextract.low.u32 %v1119
        %v1121 = vextract.high.u32 %v1119
        %v1122 = vmul.u32 %v1115, %v1106
        %v1123 = vadd.s32 %v1118, %v1120
        %vm1124 = vc.u32 %v1118, %v1120
        %v1125 = vadd.s32 %v1121, 1
        %v1126 = vsel %vm1124, %v1125, %v1121
        %v1127 = vadd.s32 %v1122, %v1126
        %v1128 = vadd.s32 %v1127, 536870912
        %v1129 = vshrl.u32 %v1128, 30
        %v1130 = vshll.u32 %v1129, 30
        %v1131 = vsub.s32 %v1127, %v1130
        %vm1132 = vcmp.lt.s32.totalorder %v1131, 0
        %v1133 = vsub.s32 0, %v1131
        %v1134 = vsel %vm1132, %v1133, %v1131
        %v1135 = vclz %v1134
        %v1136 = vsub.s32 %v1135, 2
        %vm1137 = vcmp.gt.s32.totalorder 0, %v1136
        %v1138 = vsel %vm1137, 0, %v1136
        %v1139 = vsub.s32 32, %v1138
        %v1140 = vshll.u32 %v1131, %v1138
        %v1141 = vshrl.u32 %v1123, %v1139
        %v1142 = vor.u32 %v1140, %v1141
        %v1143 = vsub.s32 4294967266, %v1138
        %v1144 = vadd.s32 %v1143, 127
        %v1145 = vshll.u32 %v1144, 23
        %v1146 = vor.u32 4788187, %v1145
        %v1147 = vand.u32 2147483647, %v1146
        %v1149 = vcvt.s32.f32 %v1142
        %v1150 = vmul.f32 %v1149, %v1147
        %v1151 = vxor.u32 %v1150, 2147483648
        %v1152 = vsel %vm1069, %v1151, %v1150
        %v1153 = vsub.s32 4, %v1129
        %v1154 = vsel %vm1069, %v1153, %v1129
        %v1155 = vsel %vm1068, %v563, %v1152
        %v1156 = vsel %vm1068, 0, %v1154
        %v1157 = vcosq.f32.pop %v1155
        %v1158 = vsinq.f32.pop %v1155
        %vm1159 = vweird.f32 %v563
        %v1160 = vadd.s32 %v1156, 3
        %v1161 = vand.u32 %v1160, 3
        %vm1162 = vcmp.lt.s32.totalorder %v1161, 2
        %vm1163 = vcmp.eq.s32.totalorder %v1161, 0
        %v1164 = vxor.u32 %v1158, 2147483648
        %v1165 = vsel %vm1163, %v1157, %v1164
        %vm1166 = vcmp.eq.s32.totalorder %v1161, 2
        %v1167 = vxor.u32 %v1157, 2147483648
        %v1168 = vsel %vm1166, %v1167, %v1158
        %v1169 = vsel %vm1162, %v1165, %v1168
        %v1170 = vsel %vm1159, nan, %v1169
        %v1171 = vand.u32 2147483647, %v570
        %vm1172 = vcmp.le.f32.partialorder %v1171, 0.7853982
        %vm1173 = vcmp.lt.s32.totalorder %v570, 0
        %v1174 = vand.u32 %v570, 2139095040
        %v1175 = vshrl.u32 %v1174, 23
        %v1176 = vsub.s32 %v1175, 127
        %v1177 = vand.u32 2147483647, %v570
        %v1178 = vand.u32 %v1177, 8388607
        %v1179 = vor.u32 %v1178, 8388608
        %v1180 = vsub.s32 0, %v1179
        %v1181 = vadd.s32 %v1176, 1
        %vm1182 = vcmp.gt.s32.totalorder %v1181, 0
        %v1183 = vsel %vm1182, %v1181, 0
        %v1184 = vshrl.u32 %v1183, 5
        %v1185 = vand.u32 %v1183, 31
        %v1186 = vsub.s32 32, %v1185
        %v1187 = vshrl.u32 683565275, %v1186
        %v1188 = vshll.u32 683565275, %v1185
        %v1189 = vshrl.u32 2475754826, %v1186
        %v1190 = vor.u32 %v1188, %v1189
        %v1191 = vshll.u32 2475754826, %v1185
        %v1192 = vshrl.u32 2131351028, %v1186
        %v1193 = vor.u32 %v1191, %v1192
        %v1194 = vshll.u32 2131351028, %v1185
        %v1195 = vshrl.u32 2102212464, %v1186
        %v1196 = vor.u32 %v1194, %v1195
        %v1197 = vshll.u32 2102212464, %v1185
        %v1198 = vshrl.u32 920167782, %v1186
        %v1199 = vor.u32 %v1197, %v1198
        %v1200 = vshll.u32 920167782, %v1185
        %v1201 = vshrl.u32 1326507024, %v1186
        %v1202 = vor.u32 %v1200, %v1201
        %vm1203 = vcmp.lt.s32.totalorder %v1184, 1
        %vm1204 = vcmp.lt.s32.totalorder %v1184, 2
        %vm1205 = vcmp.lt.s32.totalorder %v1184, 3
        %vm1206 = vcmp.lt.s32.totalorder %v1184, 4
        %v1207 = vsel %vm1203, %v1187, %v1190
        %v1208 = vsel %vm1206, %v1196, 2102212464
        %v1209 = vsel %vm1205, %v1193, %v1208
        %v1210 = vsel %vm1204, %v1207, %v1209
        %v1211 = vsel %vm1203, %v1190, %v1193
        %v1212 = vsel %vm1206, %v1199, 920167782
        %v1213 = vsel %vm1205, %v1196, %v1212
        %v1214 = vsel %vm1204, %v1211, %v1213
        %v1215 = vsel %vm1203, %v1193, %v1196
        %v1216 = vsel %vm1206, %v1202, 1326507024
        %v1217 = vsel %vm1205, %v1199, %v1216
        %v1218 = vsel %vm1204, %v1215, %v1217
        %v1219 = vshll.u32 %v1179, 8
        %v1220 = vmul.u32.u64.compose %v1219, %v1218
        %v1221 = vextract.low.u32 %v1220
        %v1222 = vextract.high.u32 %v1220
        %v1223 = vmul.u32.u64.compose %v1219, %v1214
        %v1224 = vextract.low.u32 %v1223
        %v1225 = vextract.high.u32 %v1223
        %v1226 = vmul.u32 %v1219, %v1210
        %v1227 = vadd.s32 %v1222, %v1224
        %vm1228 = vc.u32 %v1222, %v1224
        %v1229 = vadd.s32 %v1225, 1
        %v1230 = vsel %vm1228, %v1229, %v1225
        %v1231 = vadd.s32 %v1226, %v1230
        %v1232 = vadd.s32 %v1231, 536870912
        %v1233 = vshrl.u32 %v1232, 30
        %v1234 = vshll.u32 %v1233, 30
        %v1235 = vsub.s32 %v1231, %v1234
        %vm1236 = vcmp.lt.s32.totalorder %v1235, 0
        %v1237 = vsub.s32 0, %v1235
        %v1238 = vsel %vm1236, %v1237, %v1235
        %v1239 = vclz %v1238
        %v1240 = vsub.s32 %v1239, 2
        %vm1241 = vcmp.gt.s32.totalorder 0, %v1240
        %v1242 = vsel %vm1241, 0, %v1240
        %v1243 = vsub.s32 32, %v1242
        %v1244 = vshll.u32 %v1235, %v1242
        %v1245 = vshrl.u32 %v1227, %v1243
        %v1246 = vor.u32 %v1244, %v1245
        %v1247 = vsub.s32 4294967266, %v1242
        %v1248 = vadd.s32 %v1247, 127
        %v1249 = vshll.u32 %v1248, 23
        %v1250 = vor.u32 4788187, %v1249
        %v1251 = vand.u32 2147483647, %v1250
        %v1253 = vcvt.s32.f32 %v1246
        %v1254 = vmul.f32 %v1253, %v1251
        %v1255 = vxor.u32 %v1254, 2147483648
        %v1256 = vsel %vm1173, %v1255, %v1254
        %v1257 = vsub.s32 4, %v1233
        %v1258 = vsel %vm1173, %v1257, %v1233
        %v1259 = vsel %vm1172, %v570, %v1256
        %v1260 = vsel %vm1172, 0, %v1258
        %v1261 = vcosq.f32.pop %v1259
        %v1262 = vsinq.f32.pop %v1259
        %vm1263 = vweird.f32 %v570
        %v1264 = vadd.s32 %v1260, 3
        %v1265 = vand.u32 %v1264, 3
        %vm1266 = vcmp.lt.s32.totalorder %v1265, 2
        %vm1267 = vcmp.eq.s32.totalorder %v1265, 0
        %v1268 = vxor.u32 %v1262, 2147483648
        %v1269 = vsel %vm1267, %v1261, %v1268
        %vm1270 = vcmp.eq.s32.totalorder %v1265, 2
        %v1271 = vxor.u32 %v1261, 2147483648
        %v1272 = vsel %vm1270, %v1271, %v1262
        %v1273 = vsel %vm1266, %v1269, %v1272
        %v1274 = vsel %vm1263, nan, %v1273
        %v1275 = vand.u32 2147483647, %v577
        %vm1276 = vcmp.le.f32.partialorder %v1275, 0.7853982
        %vm1277 = vcmp.lt.s32.totalorder %v577, 0
        %v1278 = vand.u32 %v577, 2139095040
        %v1279 = vshrl.u32 %v1278, 23
        %v1280 = vsub.s32 %v1279, 127
        %v1281 = vand.u32 2147483647, %v577
        %v1282 = vand.u32 %v1281, 8388607
        %v1283 = vor.u32 %v1282, 8388608
        %v1284 = vsub.s32 0, %v1283
        %v1285 = vadd.s32 %v1280, 1
        %vm1286 = vcmp.gt.s32.totalorder %v1285, 0
        %v1287 = vsel %vm1286, %v1285, 0
        %v1288 = vshrl.u32 %v1287, 5
        %v1289 = vand.u32 %v1287, 31
        %v1290 = vsub.s32 32, %v1289
        %v1291 = vshrl.u32 683565275, %v1290
        %v1292 = vshll.u32 683565275, %v1289
        %v1293 = vshrl.u32 2475754826, %v1290
        %v1294 = vor.u32 %v1292, %v1293
        %v1295 = vshll.u32 2475754826, %v1289
        %v1296 = vshrl.u32 2131351028, %v1290
        %v1297 = vor.u32 %v1295, %v1296
        %v1298 = vshll.u32 2131351028, %v1289
        %v1299 = vshrl.u32 2102212464, %v1290
        %v1300 = vor.u32 %v1298, %v1299
        %v1301 = vshll.u32 2102212464, %v1289
        %v1302 = vshrl.u32 920167782, %v1290
        %v1303 = vor.u32 %v1301, %v1302
        %v1304 = vshll.u32 920167782, %v1289
        %v1305 = vshrl.u32 1326507024, %v1290
        %v1306 = vor.u32 %v1304, %v1305
        %vm1307 = vcmp.lt.s32.totalorder %v1288, 1
        %vm1308 = vcmp.lt.s32.totalorder %v1288, 2
        %vm1309 = vcmp.lt.s32.totalorder %v1288, 3
        %vm1310 = vcmp.lt.s32.totalorder %v1288, 4
        %v1311 = vsel %vm1307, %v1291, %v1294
        %v1312 = vsel %vm1310, %v1300, 2102212464
        %v1313 = vsel %vm1309, %v1297, %v1312
        %v1314 = vsel %vm1308, %v1311, %v1313
        %v1315 = vsel %vm1307, %v1294, %v1297
        %v1316 = vsel %vm1310, %v1303, 920167782
        %v1317 = vsel %vm1309, %v1300, %v1316
        %v1318 = vsel %vm1308, %v1315, %v1317
        %v1319 = vsel %vm1307, %v1297, %v1300
        %v1320 = vsel %vm1310, %v1306, 1326507024
        %v1321 = vsel %vm1309, %v1303, %v1320
        %v1322 = vsel %vm1308, %v1319, %v1321
        %v1323 = vshll.u32 %v1283, 8
        %v1324 = vmul.u32.u64.compose %v1323, %v1322
        %v1325 = vextract.low.u32 %v1324
        %v1326 = vextract.high.u32 %v1324
        %v1327 = vmul.u32.u64.compose %v1323, %v1318
        %v1328 = vextract.low.u32 %v1327
        %v1329 = vextract.high.u32 %v1327
        %v1330 = vmul.u32 %v1323, %v1314
        %v1331 = vadd.s32 %v1326, %v1328
        %vm1332 = vc.u32 %v1326, %v1328
        %v1333 = vadd.s32 %v1329, 1
        %v1334 = vsel %vm1332, %v1333, %v1329
        %v1335 = vadd.s32 %v1330, %v1334
        %v1336 = vadd.s32 %v1335, 536870912
        %v1337 = vshrl.u32 %v1336, 30
        %v1338 = vshll.u32 %v1337, 30
        %v1339 = vsub.s32 %v1335, %v1338
        %vm1340 = vcmp.lt.s32.totalorder %v1339, 0
        %v1341 = vsub.s32 0, %v1339
        %v1342 = vsel %vm1340, %v1341, %v1339
        %v1343 = vclz %v1342
        %v1344 = vsub.s32 %v1343, 2
        %vm1345 = vcmp.gt.s32.totalorder 0, %v1344
        %v1346 = vsel %vm1345, 0, %v1344
        %v1347 = vsub.s32 32, %v1346
        %v1348 = vshll.u32 %v1339, %v1346
        %v1349 = vshrl.u32 %v1331, %v1347
        %v1350 = vor.u32 %v1348, %v1349
        %v1351 = vsub.s32 4294967266, %v1346
        %v1352 = vadd.s32 %v1351, 127
        %v1353 = vshll.u32 %v1352, 23
        %v1354 = vor.u32 4788187, %v1353
        %v1355 = vand.u32 2147483647, %v1354
        %v1357 = vcvt.s32.f32 %v1350
        %v1358 = vmul.f32 %v1357, %v1355
        %v1359 = vxor.u32 %v1358, 2147483648
        %v1360 = vsel %vm1277, %v1359, %v1358
        %v1361 = vsub.s32 4, %v1337
        %v1362 = vsel %vm1277, %v1361, %v1337
        %v1363 = vsel %vm1276, %v577, %v1360
        %v1364 = vsel %vm1276, 0, %v1362
        %v1365 = vcosq.f32.pop %v1363
        %v1366 = vsinq.f32.pop %v1363
        %vm1367 = vweird.f32 %v577
        %v1368 = vadd.s32 %v1364, 3
        %v1369 = vand.u32 %v1368, 3
        %vm1370 = vcmp.lt.s32.totalorder %v1369, 2
        %vm1371 = vcmp.eq.s32.totalorder %v1369, 0
        %v1372 = vxor.u32 %v1366, 2147483648
        %v1373 = vsel %vm1371, %v1365, %v1372
        %vm1374 = vcmp.eq.s32.totalorder %v1369, 2
        %v1375 = vxor.u32 %v1365, 2147483648
        %v1376 = vsel %vm1374, %v1375, %v1366
        %v1377 = vsel %vm1370, %v1373, %v1376
        %v1378 = vsel %vm1367, nan, %v1377
        %v1379 = vand.u32 2147483647, %v584
        %vm1380 = vcmp.le.f32.partialorder %v1379, 0.7853982
        %vm1381 = vcmp.lt.s32.totalorder %v584, 0
        %v1382 = vand.u32 %v584, 2139095040
        %v1383 = vshrl.u32 %v1382, 23
        %v1384 = vsub.s32 %v1383, 127
        %v1385 = vand.u32 2147483647, %v584
        %v1386 = vand.u32 %v1385, 8388607
        %v1387 = vor.u32 %v1386, 8388608
        %v1388 = vsub.s32 0, %v1387
        %v1389 = vadd.s32 %v1384, 1
        %vm1390 = vcmp.gt.s32.totalorder %v1389, 0
        %v1391 = vsel %vm1390, %v1389, 0
        %v1392 = vshrl.u32 %v1391, 5
        %v1393 = vand.u32 %v1391, 31
        %v1394 = vsub.s32 32, %v1393
        %v1395 = vshrl.u32 683565275, %v1394
        %v1396 = vshll.u32 683565275, %v1393
        %v1397 = vshrl.u32 2475754826, %v1394
        %v1398 = vor.u32 %v1396, %v1397
        %v1399 = vshll.u32 2475754826, %v1393
        %v1400 = vshrl.u32 2131351028, %v1394
        %v1401 = vor.u32 %v1399, %v1400
        %v1402 = vshll.u32 2131351028, %v1393
        %v1403 = vshrl.u32 2102212464, %v1394
        %v1404 = vor.u32 %v1402, %v1403
        %v1405 = vshll.u32 2102212464, %v1393
        %v1406 = vshrl.u32 920167782, %v1394
        %v1407 = vor.u32 %v1405, %v1406
        %v1408 = vshll.u32 920167782, %v1393
        %v1409 = vshrl.u32 1326507024, %v1394
        %v1410 = vor.u32 %v1408, %v1409
        %vm1411 = vcmp.lt.s32.totalorder %v1392, 1
        %vm1412 = vcmp.lt.s32.totalorder %v1392, 2
        %vm1413 = vcmp.lt.s32.totalorder %v1392, 3
        %vm1414 = vcmp.lt.s32.totalorder %v1392, 4
        %v1415 = vsel %vm1411, %v1395, %v1398
        %v1416 = vsel %vm1414, %v1404, 2102212464
        %v1417 = vsel %vm1413, %v1401, %v1416
        %v1418 = vsel %vm1412, %v1415, %v1417
        %v1419 = vsel %vm1411, %v1398, %v1401
        %v1420 = vsel %vm1414, %v1407, 920167782
        %v1421 = vsel %vm1413, %v1404, %v1420
        %v1422 = vsel %vm1412, %v1419, %v1421
        %v1423 = vsel %vm1411, %v1401, %v1404
        %v1424 = vsel %vm1414, %v1410, 1326507024
        %v1425 = vsel %vm1413, %v1407, %v1424
        %v1426 = vsel %vm1412, %v1423, %v1425
        %v1427 = vshll.u32 %v1387, 8
        %v1428 = vmul.u32.u64.compose %v1427, %v1426
        %v1429 = vextract.low.u32 %v1428
        %v1430 = vextract.high.u32 %v1428
        %v1431 = vmul.u32.u64.compose %v1427, %v1422
        %v1432 = vextract.low.u32 %v1431
        %v1433 = vextract.high.u32 %v1431
        %v1434 = vmul.u32 %v1427, %v1418
        %v1435 = vadd.s32 %v1430, %v1432
        %vm1436 = vc.u32 %v1430, %v1432
        %v1437 = vadd.s32 %v1433, 1
        %v1438 = vsel %vm1436, %v1437, %v1433
        %v1439 = vadd.s32 %v1434, %v1438
        %v1440 = vadd.s32 %v1439, 536870912
        %v1441 = vshrl.u32 %v1440, 30
        %v1442 = vshll.u32 %v1441, 30
        %v1443 = vsub.s32 %v1439, %v1442
        %vm1444 = vcmp.lt.s32.totalorder %v1443, 0
        %v1445 = vsub.s32 0, %v1443
        %v1446 = vsel %vm1444, %v1445, %v1443
        %v1447 = vclz %v1446
        %v1448 = vsub.s32 %v1447, 2
        %vm1449 = vcmp.gt.s32.totalorder 0, %v1448
        %v1450 = vsel %vm1449, 0, %v1448
        %v1451 = vsub.s32 32, %v1450
        %v1452 = vshll.u32 %v1443, %v1450
        %v1453 = vshrl.u32 %v1435, %v1451
        %v1454 = vor.u32 %v1452, %v1453
        %v1455 = vsub.s32 4294967266, %v1450
        %v1456 = vadd.s32 %v1455, 127
        %v1457 = vshll.u32 %v1456, 23
        %v1458 = vor.u32 4788187, %v1457
        %v1459 = vand.u32 2147483647, %v1458
        %v1461 = vcvt.s32.f32 %v1454
        %v1462 = vmul.f32 %v1461, %v1459
        %v1463 = vxor.u32 %v1462, 2147483648
        %v1464 = vsel %vm1381, %v1463, %v1462
        %v1465 = vsub.s32 4, %v1441
        %v1466 = vsel %vm1381, %v1465, %v1441
        %v1467 = vsel %vm1380, %v584, %v1464
        %v1468 = vsel %vm1380, 0, %v1466
        %v1469 = vcosq.f32.pop %v1467
        %v1470 = vsinq.f32.pop %v1467
        %vm1471 = vweird.f32 %v584
        %v1472 = vadd.s32 %v1468, 3
        %v1473 = vand.u32 %v1472, 3
        %vm1474 = vcmp.lt.s32.totalorder %v1473, 2
        %vm1475 = vcmp.eq.s32.totalorder %v1473, 0
        %v1476 = vxor.u32 %v1470, 2147483648
        %v1477 = vsel %vm1475, %v1469, %v1476
        %vm1478 = vcmp.eq.s32.totalorder %v1473, 2
        %v1479 = vxor.u32 %v1469, 2147483648
        %v1480 = vsel %vm1478, %v1479, %v1470
        %v1481 = vsel %vm1474, %v1477, %v1480
        %v1482 = vsel %vm1471, nan, %v1481
        %v1483 = vand.u32 2147483647, %v591
        %vm1484 = vcmp.le.f32.partialorder %v1483, 0.7853982
        %vm1485 = vcmp.lt.s32.totalorder %v591, 0
        %v1486 = vand.u32 %v591, 2139095040
        %v1487 = vshrl.u32 %v1486, 23
        %v1488 = vsub.s32 %v1487, 127
        %v1489 = vand.u32 2147483647, %v591
        %v1490 = vand.u32 %v1489, 8388607
        %v1491 = vor.u32 %v1490, 8388608
        %v1492 = vsub.s32 0, %v1491
        %v1493 = vadd.s32 %v1488, 1
        %vm1494 = vcmp.gt.s32.totalorder %v1493, 0
        %v1495 = vsel %vm1494, %v1493, 0
        %v1496 = vshrl.u32 %v1495, 5
        %v1497 = vand.u32 %v1495, 31
        %v1498 = vsub.s32 32, %v1497
        %v1499 = vshrl.u32 683565275, %v1498
        %v1500 = vshll.u32 683565275, %v1497
        %v1501 = vshrl.u32 2475754826, %v1498
        %v1502 = vor.u32 %v1500, %v1501
        %v1503 = vshll.u32 2475754826, %v1497
        %v1504 = vshrl.u32 2131351028, %v1498
        %v1505 = vor.u32 %v1503, %v1504
        %v1506 = vshll.u32 2131351028, %v1497
        %v1507 = vshrl.u32 2102212464, %v1498
        %v1508 = vor.u32 %v1506, %v1507
        %v1509 = vshll.u32 2102212464, %v1497
        %v1510 = vshrl.u32 920167782, %v1498
        %v1511 = vor.u32 %v1509, %v1510
        %v1512 = vshll.u32 920167782, %v1497
        %v1513 = vshrl.u32 1326507024, %v1498
        %v1514 = vor.u32 %v1512, %v1513
        %vm1515 = vcmp.lt.s32.totalorder %v1496, 1
        %vm1516 = vcmp.lt.s32.totalorder %v1496, 2
        %vm1517 = vcmp.lt.s32.totalorder %v1496, 3
        %vm1518 = vcmp.lt.s32.totalorder %v1496, 4
        %v1519 = vsel %vm1515, %v1499, %v1502
        %v1520 = vsel %vm1518, %v1508, 2102212464
        %v1521 = vsel %vm1517, %v1505, %v1520
        %v1522 = vsel %vm1516, %v1519, %v1521
        %v1523 = vsel %vm1515, %v1502, %v1505
        %v1524 = vsel %vm1518, %v1511, 920167782
        %v1525 = vsel %vm1517, %v1508, %v1524
        %v1526 = vsel %vm1516, %v1523, %v1525
        %v1527 = vsel %vm1515, %v1505, %v1508
        %v1528 = vsel %vm1518, %v1514, 1326507024
        %v1529 = vsel %vm1517, %v1511, %v1528
        %v1530 = vsel %vm1516, %v1527, %v1529
        %v1531 = vshll.u32 %v1491, 8
        %v1532 = vmul.u32.u64.compose %v1531, %v1530
        %v1533 = vextract.low.u32 %v1532
        %v1534 = vextract.high.u32 %v1532
        %v1535 = vmul.u32.u64.compose %v1531, %v1526
        %v1536 = vextract.low.u32 %v1535
        %v1537 = vextract.high.u32 %v1535
        %v1538 = vmul.u32 %v1531, %v1522
        %v1539 = vadd.s32 %v1534, %v1536
        %vm1540 = vc.u32 %v1534, %v1536
        %v1541 = vadd.s32 %v1537, 1
        %v1542 = vsel %vm1540, %v1541, %v1537
        %v1543 = vadd.s32 %v1538, %v1542
        %v1544 = vadd.s32 %v1543, 536870912
        %v1545 = vshrl.u32 %v1544, 30
        %v1546 = vshll.u32 %v1545, 30
        %v1547 = vsub.s32 %v1543, %v1546
        %vm1548 = vcmp.lt.s32.totalorder %v1547, 0
        %v1549 = vsub.s32 0, %v1547
        %v1550 = vsel %vm1548, %v1549, %v1547
        %v1551 = vclz %v1550
        %v1552 = vsub.s32 %v1551, 2
        %vm1553 = vcmp.gt.s32.totalorder 0, %v1552
        %v1554 = vsel %vm1553, 0, %v1552
        %v1555 = vsub.s32 32, %v1554
        %v1556 = vshll.u32 %v1547, %v1554
        %v1557 = vshrl.u32 %v1539, %v1555
        %v1558 = vor.u32 %v1556, %v1557
        %v1559 = vsub.s32 4294967266, %v1554
        %v1560 = vadd.s32 %v1559, 127
        %v1561 = vshll.u32 %v1560, 23
        %v1562 = vor.u32 4788187, %v1561
        %v1563 = vand.u32 2147483647, %v1562
        %v1565 = vcvt.s32.f32 %v1558
        %v1566 = vmul.f32 %v1565, %v1563
        %v1567 = vxor.u32 %v1566, 2147483648
        %v1568 = vsel %vm1485, %v1567, %v1566
        %v1569 = vsub.s32 4, %v1545
        %v1570 = vsel %vm1485, %v1569, %v1545
        %v1571 = vsel %vm1484, %v591, %v1568
        %v1572 = vsel %vm1484, 0, %v1570
        %v1573 = vcosq.f32.pop %v1571
        %v1574 = vsinq.f32.pop %v1571
        %vm1575 = vweird.f32 %v591
        %v1576 = vadd.s32 %v1572, 3
        %v1577 = vand.u32 %v1576, 3
        %vm1578 = vcmp.lt.s32.totalorder %v1577, 2
        %vm1579 = vcmp.eq.s32.totalorder %v1577, 0
        %v1580 = vxor.u32 %v1574, 2147483648
        %v1581 = vsel %vm1579, %v1573, %v1580
        %vm1582 = vcmp.eq.s32.totalorder %v1577, 2
        %v1583 = vxor.u32 %v1573, 2147483648
        %v1584 = vsel %vm1582, %v1583, %v1574
        %v1585 = vsel %vm1578, %v1581, %v1584
        %v1586 = vsel %vm1575, nan, %v1585
        %v1587 = vand.u32 2147483647, %v598
        %vm1588 = vcmp.le.f32.partialorder %v1587, 0.7853982
        %vm1589 = vcmp.lt.s32.totalorder %v598, 0
        %v1590 = vand.u32 %v598, 2139095040
        %v1591 = vshrl.u32 %v1590, 23
        %v1592 = vsub.s32 %v1591, 127
        %v1593 = vand.u32 2147483647, %v598
        %v1594 = vand.u32 %v1593, 8388607
        %v1595 = vor.u32 %v1594, 8388608
        %v1596 = vsub.s32 0, %v1595
        %v1597 = vadd.s32 %v1592, 1
        %vm1598 = vcmp.gt.s32.totalorder %v1597, 0
        %v1599 = vsel %vm1598, %v1597, 0
        %v1600 = vshrl.u32 %v1599, 5
        %v1601 = vand.u32 %v1599, 31
        %v1602 = vsub.s32 32, %v1601
        %v1603 = vshrl.u32 683565275, %v1602
        %v1604 = vshll.u32 683565275, %v1601
        %v1605 = vshrl.u32 2475754826, %v1602
        %v1606 = vor.u32 %v1604, %v1605
        %v1607 = vshll.u32 2475754826, %v1601
        %v1608 = vshrl.u32 2131351028, %v1602
        %v1609 = vor.u32 %v1607, %v1608
        %v1610 = vshll.u32 2131351028, %v1601
        %v1611 = vshrl.u32 2102212464, %v1602
        %v1612 = vor.u32 %v1610, %v1611
        %v1613 = vshll.u32 2102212464, %v1601
        %v1614 = vshrl.u32 920167782, %v1602
        %v1615 = vor.u32 %v1613, %v1614
        %v1616 = vshll.u32 920167782, %v1601
        %v1617 = vshrl.u32 1326507024, %v1602
        %v1618 = vor.u32 %v1616, %v1617
        %vm1619 = vcmp.lt.s32.totalorder %v1600, 1
        %vm1620 = vcmp.lt.s32.totalorder %v1600, 2
        %vm1621 = vcmp.lt.s32.totalorder %v1600, 3
        %vm1622 = vcmp.lt.s32.totalorder %v1600, 4
        %v1623 = vsel %vm1619, %v1603, %v1606
        %v1624 = vsel %vm1622, %v1612, 2102212464
        %v1625 = vsel %vm1621, %v1609, %v1624
        %v1626 = vsel %vm1620, %v1623, %v1625
        %v1627 = vsel %vm1619, %v1606, %v1609
        %v1628 = vsel %vm1622, %v1615, 920167782
        %v1629 = vsel %vm1621, %v1612, %v1628
        %v1630 = vsel %vm1620, %v1627, %v1629
        %v1631 = vsel %vm1619, %v1609, %v1612
        %v1632 = vsel %vm1622, %v1618, 1326507024
        %v1633 = vsel %vm1621, %v1615, %v1632
        %v1634 = vsel %vm1620, %v1631, %v1633
        %v1635 = vshll.u32 %v1595, 8
        %v1636 = vmul.u32.u64.compose %v1635, %v1634
        %v1637 = vextract.low.u32 %v1636
        %v1638 = vextract.high.u32 %v1636
        %v1639 = vmul.u32.u64.compose %v1635, %v1630
        %v1640 = vextract.low.u32 %v1639
        %v1641 = vextract.high.u32 %v1639
        %v1642 = vmul.u32 %v1635, %v1626
        %v1643 = vadd.s32 %v1638, %v1640
        %vm1644 = vc.u32 %v1638, %v1640
        %v1645 = vadd.s32 %v1641, 1
        %v1646 = vsel %vm1644, %v1645, %v1641
        %v1647 = vadd.s32 %v1642, %v1646
        %v1648 = vadd.s32 %v1647, 536870912
        %v1649 = vshrl.u32 %v1648, 30
        %v1650 = vshll.u32 %v1649, 30
        %v1651 = vsub.s32 %v1647, %v1650
        %vm1652 = vcmp.lt.s32.totalorder %v1651, 0
        %v1653 = vsub.s32 0, %v1651
        %v1654 = vsel %vm1652, %v1653, %v1651
        %v1655 = vclz %v1654
        %v1656 = vsub.s32 %v1655, 2
        %vm1657 = vcmp.gt.s32.totalorder 0, %v1656
        %v1658 = vsel %vm1657, 0, %v1656
        %v1659 = vsub.s32 32, %v1658
        %v1660 = vshll.u32 %v1651, %v1658
        %v1661 = vshrl.u32 %v1643, %v1659
        %v1662 = vor.u32 %v1660, %v1661
        %v1663 = vsub.s32 4294967266, %v1658
        %v1664 = vadd.s32 %v1663, 127
        %v1665 = vshll.u32 %v1664, 23
        %v1666 = vor.u32 4788187, %v1665
        %v1667 = vand.u32 2147483647, %v1666
        %v1669 = vcvt.s32.f32 %v1662
        %v1670 = vmul.f32 %v1669, %v1667
        %v1671 = vxor.u32 %v1670, 2147483648
        %v1672 = vsel %vm1589, %v1671, %v1670
        %v1673 = vsub.s32 4, %v1649
        %v1674 = vsel %vm1589, %v1673, %v1649
        %v1675 = vsel %vm1588, %v598, %v1672
        %v1676 = vsel %vm1588, 0, %v1674
        %v1677 = vcosq.f32.pop %v1675
        %v1678 = vsinq.f32.pop %v1675
        %vm1679 = vweird.f32 %v598
        %v1680 = vadd.s32 %v1676, 3
        %v1681 = vand.u32 %v1680, 3
        %vm1682 = vcmp.lt.s32.totalorder %v1681, 2
        %vm1683 = vcmp.eq.s32.totalorder %v1681, 0
        %v1684 = vxor.u32 %v1678, 2147483648
        %v1685 = vsel %vm1683, %v1677, %v1684
        %vm1686 = vcmp.eq.s32.totalorder %v1681, 2
        %v1687 = vxor.u32 %v1677, 2147483648
        %v1688 = vsel %vm1686, %v1687, %v1678
        %v1689 = vsel %vm1682, %v1685, %v1688
        %v1690 = vsel %vm1679, nan, %v1689
        %v1691 = vand.u32 2147483647, %v605
        %vm1692 = vcmp.le.f32.partialorder %v1691, 0.7853982
        %vm1693 = vcmp.lt.s32.totalorder %v605, 0
        %v1694 = vand.u32 %v605, 2139095040
        %v1695 = vshrl.u32 %v1694, 23
        %v1696 = vsub.s32 %v1695, 127
        %v1697 = vand.u32 2147483647, %v605
        %v1698 = vand.u32 %v1697, 8388607
        %v1699 = vor.u32 %v1698, 8388608
        %v1700 = vsub.s32 0, %v1699
        %v1701 = vadd.s32 %v1696, 1
        %vm1702 = vcmp.gt.s32.totalorder %v1701, 0
        %v1703 = vsel %vm1702, %v1701, 0
        %v1704 = vshrl.u32 %v1703, 5
        %v1705 = vand.u32 %v1703, 31
        %v1706 = vsub.s32 32, %v1705
        %v1707 = vshrl.u32 683565275, %v1706
        %v1708 = vshll.u32 683565275, %v1705
        %v1709 = vshrl.u32 2475754826, %v1706
        %v1710 = vor.u32 %v1708, %v1709
        %v1711 = vshll.u32 2475754826, %v1705
        %v1712 = vshrl.u32 2131351028, %v1706
        %v1713 = vor.u32 %v1711, %v1712
        %v1714 = vshll.u32 2131351028, %v1705
        %v1715 = vshrl.u32 2102212464, %v1706
        %v1716 = vor.u32 %v1714, %v1715
        %v1717 = vshll.u32 2102212464, %v1705
        %v1718 = vshrl.u32 920167782, %v1706
        %v1719 = vor.u32 %v1717, %v1718
        %v1720 = vshll.u32 920167782, %v1705
        %v1721 = vshrl.u32 1326507024, %v1706
        %v1722 = vor.u32 %v1720, %v1721
        %vm1723 = vcmp.lt.s32.totalorder %v1704, 1
        %vm1724 = vcmp.lt.s32.totalorder %v1704, 2
        %vm1725 = vcmp.lt.s32.totalorder %v1704, 3
        %vm1726 = vcmp.lt.s32.totalorder %v1704, 4
        %v1727 = vsel %vm1723, %v1707, %v1710
        %v1728 = vsel %vm1726, %v1716, 2102212464
        %v1729 = vsel %vm1725, %v1713, %v1728
        %v1730 = vsel %vm1724, %v1727, %v1729
        %v1731 = vsel %vm1723, %v1710, %v1713
        %v1732 = vsel %vm1726, %v1719, 920167782
        %v1733 = vsel %vm1725, %v1716, %v1732
        %v1734 = vsel %vm1724, %v1731, %v1733
        %v1735 = vsel %vm1723, %v1713, %v1716
        %v1736 = vsel %vm1726, %v1722, 1326507024
        %v1737 = vsel %vm1725, %v1719, %v1736
        %v1738 = vsel %vm1724, %v1735, %v1737
        %v1739 = vshll.u32 %v1699, 8
        %v1740 = vmul.u32.u64.compose %v1739, %v1738
        %v1741 = vextract.low.u32 %v1740
        %v1742 = vextract.high.u32 %v1740
        %v1743 = vmul.u32.u64.compose %v1739, %v1734
        %v1744 = vextract.low.u32 %v1743
        %v1745 = vextract.high.u32 %v1743
        %v1746 = vmul.u32 %v1739, %v1730
        %v1747 = vadd.s32 %v1742, %v1744
        %vm1748 = vc.u32 %v1742, %v1744
        %v1749 = vadd.s32 %v1745, 1
        %v1750 = vsel %vm1748, %v1749, %v1745
        %v1751 = vadd.s32 %v1746, %v1750
        %v1752 = vadd.s32 %v1751, 536870912
        %v1753 = vshrl.u32 %v1752, 30
        %v1754 = vshll.u32 %v1753, 30
        %v1755 = vsub.s32 %v1751, %v1754
        %vm1756 = vcmp.lt.s32.totalorder %v1755, 0
        %v1757 = vsub.s32 0, %v1755
        %v1758 = vsel %vm1756, %v1757, %v1755
        %v1759 = vclz %v1758
        %v1760 = vsub.s32 %v1759, 2
        %vm1761 = vcmp.gt.s32.totalorder 0, %v1760
        %v1762 = vsel %vm1761, 0, %v1760
        %v1763 = vsub.s32 32, %v1762
        %v1764 = vshll.u32 %v1755, %v1762
        %v1765 = vshrl.u32 %v1747, %v1763
        %v1766 = vor.u32 %v1764, %v1765
        %v1767 = vsub.s32 4294967266, %v1762
        %v1768 = vadd.s32 %v1767, 127
        %v1769 = vshll.u32 %v1768, 23
        %v1770 = vor.u32 4788187, %v1769
        %v1771 = vand.u32 2147483647, %v1770
        %v1773 = vcvt.s32.f32 %v1766
        %v1774 = vmul.f32 %v1773, %v1771
        %v1775 = vxor.u32 %v1774, 2147483648
        %v1776 = vsel %vm1693, %v1775, %v1774
        %v1777 = vsub.s32 4, %v1753
        %v1778 = vsel %vm1693, %v1777, %v1753
        %v1779 = vsel %vm1692, %v605, %v1776
        %v1780 = vsel %vm1692, 0, %v1778
        %v1781 = vcosq.f32.pop %v1779
        %v1782 = vsinq.f32.pop %v1779
        %vm1783 = vweird.f32 %v605
        %v1784 = vadd.s32 %v1780, 3
        %v1785 = vand.u32 %v1784, 3
        %vm1786 = vcmp.lt.s32.totalorder %v1785, 2
        %vm1787 = vcmp.eq.s32.totalorder %v1785, 0
        %v1788 = vxor.u32 %v1782, 2147483648
        %v1789 = vsel %vm1787, %v1781, %v1788
        %vm1790 = vcmp.eq.s32.totalorder %v1785, 2
        %v1791 = vxor.u32 %v1781, 2147483648
        %v1792 = vsel %vm1790, %v1791, %v1782
        %v1793 = vsel %vm1786, %v1789, %v1792
        %v1794 = vsel %vm1783, nan, %v1793
        %v1795 = vand.u32 2147483647, %v612
        %vm1796 = vcmp.le.f32.partialorder %v1795, 0.7853982
        %vm1797 = vcmp.lt.s32.totalorder %v612, 0
        %v1798 = vand.u32 %v612, 2139095040
        %v1799 = vshrl.u32 %v1798, 23
        %v1800 = vsub.s32 %v1799, 127
        %v1801 = vand.u32 2147483647, %v612
        %v1802 = vand.u32 %v1801, 8388607
        %v1803 = vor.u32 %v1802, 8388608
        %v1804 = vsub.s32 0, %v1803
        %v1805 = vadd.s32 %v1800, 1
        %vm1806 = vcmp.gt.s32.totalorder %v1805, 0
        %v1807 = vsel %vm1806, %v1805, 0
        %v1808 = vshrl.u32 %v1807, 5
        %v1809 = vand.u32 %v1807, 31
        %v1810 = vsub.s32 32, %v1809
        %v1811 = vshrl.u32 683565275, %v1810
        %v1812 = vshll.u32 683565275, %v1809
        %v1813 = vshrl.u32 2475754826, %v1810
        %v1814 = vor.u32 %v1812, %v1813
        %v1815 = vshll.u32 2475754826, %v1809
        %v1816 = vshrl.u32 2131351028, %v1810
        %v1817 = vor.u32 %v1815, %v1816
        %v1818 = vshll.u32 2131351028, %v1809
        %v1819 = vshrl.u32 2102212464, %v1810
        %v1820 = vor.u32 %v1818, %v1819
        %v1821 = vshll.u32 2102212464, %v1809
        %v1822 = vshrl.u32 920167782, %v1810
        %v1823 = vor.u32 %v1821, %v1822
        %v1824 = vshll.u32 920167782, %v1809
        %v1825 = vshrl.u32 1326507024, %v1810
        %v1826 = vor.u32 %v1824, %v1825
        %vm1827 = vcmp.lt.s32.totalorder %v1808, 1
        %vm1828 = vcmp.lt.s32.totalorder %v1808, 2
        %vm1829 = vcmp.lt.s32.totalorder %v1808, 3
        %vm1830 = vcmp.lt.s32.totalorder %v1808, 4
        %v1831 = vsel %vm1827, %v1811, %v1814
        %v1832 = vsel %vm1830, %v1820, 2102212464
        %v1833 = vsel %vm1829, %v1817, %v1832
        %v1834 = vsel %vm1828, %v1831, %v1833
        %v1835 = vsel %vm1827, %v1814, %v1817
        %v1836 = vsel %vm1830, %v1823, 920167782
        %v1837 = vsel %vm1829, %v1820, %v1836
        %v1838 = vsel %vm1828, %v1835, %v1837
        %v1839 = vsel %vm1827, %v1817, %v1820
        %v1840 = vsel %vm1830, %v1826, 1326507024
        %v1841 = vsel %vm1829, %v1823, %v1840
        %v1842 = vsel %vm1828, %v1839, %v1841
        %v1843 = vshll.u32 %v1803, 8
        %v1844 = vmul.u32.u64.compose %v1843, %v1842
        %v1845 = vextract.low.u32 %v1844
        %v1846 = vextract.high.u32 %v1844
        %v1847 = vmul.u32.u64.compose %v1843, %v1838
        %v1848 = vextract.low.u32 %v1847
        %v1849 = vextract.high.u32 %v1847
        %v1850 = vmul.u32 %v1843, %v1834
        %v1851 = vadd.s32 %v1846, %v1848
        %vm1852 = vc.u32 %v1846, %v1848
        %v1853 = vadd.s32 %v1849, 1
        %v1854 = vsel %vm1852, %v1853, %v1849
        %v1855 = vadd.s32 %v1850, %v1854
        %v1856 = vadd.s32 %v1855, 536870912
        %v1857 = vshrl.u32 %v1856, 30
        %v1858 = vshll.u32 %v1857, 30
        %v1859 = vsub.s32 %v1855, %v1858
        %vm1860 = vcmp.lt.s32.totalorder %v1859, 0
        %v1861 = vsub.s32 0, %v1859
        %v1862 = vsel %vm1860, %v1861, %v1859
        %v1863 = vclz %v1862
        %v1864 = vsub.s32 %v1863, 2
        %vm1865 = vcmp.gt.s32.totalorder 0, %v1864
        %v1866 = vsel %vm1865, 0, %v1864
        %v1867 = vsub.s32 32, %v1866
        %v1868 = vshll.u32 %v1859, %v1866
        %v1869 = vshrl.u32 %v1851, %v1867
        %v1870 = vor.u32 %v1868, %v1869
        %v1871 = vsub.s32 4294967266, %v1866
        %v1872 = vadd.s32 %v1871, 127
        %v1873 = vshll.u32 %v1872, 23
        %v1874 = vor.u32 4788187, %v1873
        %v1875 = vand.u32 2147483647, %v1874
        %v1877 = vcvt.s32.f32 %v1870
        %v1878 = vmul.f32 %v1877, %v1875
        %v1879 = vxor.u32 %v1878, 2147483648
        %v1880 = vsel %vm1797, %v1879, %v1878
        %v1881 = vsub.s32 4, %v1857
        %v1882 = vsel %vm1797, %v1881, %v1857
        %v1883 = vsel %vm1796, %v612, %v1880
        %v1884 = vsel %vm1796, 0, %v1882
        %v1885 = vcosq.f32.pop %v1883
        %v1886 = vsinq.f32.pop %v1883
        %vm1887 = vweird.f32 %v612
        %v1888 = vadd.s32 %v1884, 3
        %v1889 = vand.u32 %v1888, 3
        %vm1890 = vcmp.lt.s32.totalorder %v1889, 2
        %vm1891 = vcmp.eq.s32.totalorder %v1889, 0
        %v1892 = vxor.u32 %v1886, 2147483648
        %v1893 = vsel %vm1891, %v1885, %v1892
        %vm1894 = vcmp.eq.s32.totalorder %v1889, 2
        %v1895 = vxor.u32 %v1885, 2147483648
        %v1896 = vsel %vm1894, %v1895, %v1886
        %v1897 = vsel %vm1890, %v1893, %v1896
        %v1898 = vsel %vm1887, nan, %v1897
        %v1899 = vand.u32 2147483647, %v619
        %vm1900 = vcmp.le.f32.partialorder %v1899, 0.7853982
        %vm1901 = vcmp.lt.s32.totalorder %v619, 0
        %v1902 = vand.u32 %v619, 2139095040
        %v1903 = vshrl.u32 %v1902, 23
        %v1904 = vsub.s32 %v1903, 127
        %v1905 = vand.u32 2147483647, %v619
        %v1906 = vand.u32 %v1905, 8388607
        %v1907 = vor.u32 %v1906, 8388608
        %v1908 = vsub.s32 0, %v1907
        %v1909 = vadd.s32 %v1904, 1
        %vm1910 = vcmp.gt.s32.totalorder %v1909, 0
        %v1911 = vsel %vm1910, %v1909, 0
        %v1912 = vshrl.u32 %v1911, 5
        %v1913 = vand.u32 %v1911, 31
        %v1914 = vsub.s32 32, %v1913
        %v1915 = vshrl.u32 683565275, %v1914
        %v1916 = vshll.u32 683565275, %v1913
        %v1917 = vshrl.u32 2475754826, %v1914
        %v1918 = vor.u32 %v1916, %v1917
        %v1919 = vshll.u32 2475754826, %v1913
        %v1920 = vshrl.u32 2131351028, %v1914
        %v1921 = vor.u32 %v1919, %v1920
        %v1922 = vshll.u32 2131351028, %v1913
        %v1923 = vshrl.u32 2102212464, %v1914
        %v1924 = vor.u32 %v1922, %v1923
        %v1925 = vshll.u32 2102212464, %v1913
        %v1926 = vshrl.u32 920167782, %v1914
        %v1927 = vor.u32 %v1925, %v1926
        %v1928 = vshll.u32 920167782, %v1913
        %v1929 = vshrl.u32 1326507024, %v1914
        %v1930 = vor.u32 %v1928, %v1929
        %vm1931 = vcmp.lt.s32.totalorder %v1912, 1
        %vm1932 = vcmp.lt.s32.totalorder %v1912, 2
        %vm1933 = vcmp.lt.s32.totalorder %v1912, 3
        %vm1934 = vcmp.lt.s32.totalorder %v1912, 4
        %v1935 = vsel %vm1931, %v1915, %v1918
        %v1936 = vsel %vm1934, %v1924, 2102212464
        %v1937 = vsel %vm1933, %v1921, %v1936
        %v1938 = vsel %vm1932, %v1935, %v1937
        %v1939 = vsel %vm1931, %v1918, %v1921
        %v1940 = vsel %vm1934, %v1927, 920167782
        %v1941 = vsel %vm1933, %v1924, %v1940
        %v1942 = vsel %vm1932, %v1939, %v1941
        %v1943 = vsel %vm1931, %v1921, %v1924
        %v1944 = vsel %vm1934, %v1930, 1326507024
        %v1945 = vsel %vm1933, %v1927, %v1944
        %v1946 = vsel %vm1932, %v1943, %v1945
        %v1947 = vshll.u32 %v1907, 8
        %v1948 = vmul.u32.u64.compose %v1947, %v1946
        %v1949 = vextract.low.u32 %v1948
        %v1950 = vextract.high.u32 %v1948
        %v1951 = vmul.u32.u64.compose %v1947, %v1942
        %v1952 = vextract.low.u32 %v1951
        %v1953 = vextract.high.u32 %v1951
        %v1954 = vmul.u32 %v1947, %v1938
        %v1955 = vadd.s32 %v1950, %v1952
        %vm1956 = vc.u32 %v1950, %v1952
        %v1957 = vadd.s32 %v1953, 1
        %v1958 = vsel %vm1956, %v1957, %v1953
        %v1959 = vadd.s32 %v1954, %v1958
        %v1960 = vadd.s32 %v1959, 536870912
        %v1961 = vshrl.u32 %v1960, 30
        %v1962 = vshll.u32 %v1961, 30
        %v1963 = vsub.s32 %v1959, %v1962
        %vm1964 = vcmp.lt.s32.totalorder %v1963, 0
        %v1965 = vsub.s32 0, %v1963
        %v1966 = vsel %vm1964, %v1965, %v1963
        %v1967 = vclz %v1966
        %v1968 = vsub.s32 %v1967, 2
        %vm1969 = vcmp.gt.s32.totalorder 0, %v1968
        %v1970 = vsel %vm1969, 0, %v1968
        %v1971 = vsub.s32 32, %v1970
        %v1972 = vshll.u32 %v1963, %v1970
        %v1973 = vshrl.u32 %v1955, %v1971
        %v1974 = vor.u32 %v1972, %v1973
        %v1975 = vsub.s32 4294967266, %v1970
        %v1976 = vadd.s32 %v1975, 127
        %v1977 = vshll.u32 %v1976, 23
        %v1978 = vor.u32 4788187, %v1977
        %v1979 = vand.u32 2147483647, %v1978
        %v1981 = vcvt.s32.f32 %v1974
        %v1982 = vmul.f32 %v1981, %v1979
        %v1983 = vxor.u32 %v1982, 2147483648
        %v1984 = vsel %vm1901, %v1983, %v1982
        %v1985 = vsub.s32 4, %v1961
        %v1986 = vsel %vm1901, %v1985, %v1961
        %v1987 = vsel %vm1900, %v619, %v1984
        %v1988 = vsel %vm1900, 0, %v1986
        %v1989 = vcosq.f32.pop %v1987
        %v1990 = vsinq.f32.pop %v1987
        %vm1991 = vweird.f32 %v619
        %v1992 = vadd.s32 %v1988, 3
        %v1993 = vand.u32 %v1992, 3
        %vm1994 = vcmp.lt.s32.totalorder %v1993, 2
        %vm1995 = vcmp.eq.s32.totalorder %v1993, 0
        %v1996 = vxor.u32 %v1990, 2147483648
        %v1997 = vsel %vm1995, %v1989, %v1996
        %vm1998 = vcmp.eq.s32.totalorder %v1993, 2
        %v1999 = vxor.u32 %v1989, 2147483648
        %v2000 = vsel %vm1998, %v1999, %v1990
        %v2001 = vsel %vm1994, %v1997, %v2000
        %v2002 = vsel %vm1991, nan, %v2001
        %v2003 = vand.u32 2147483647, %v626
        %vm2004 = vcmp.le.f32.partialorder %v2003, 0.7853982
        %vm2005 = vcmp.lt.s32.totalorder %v626, 0
        %v2006 = vand.u32 %v626, 2139095040
        %v2007 = vshrl.u32 %v2006, 23
        %v2008 = vsub.s32 %v2007, 127
        %v2009 = vand.u32 2147483647, %v626
        %v2010 = vand.u32 %v2009, 8388607
        %v2011 = vor.u32 %v2010, 8388608
        %v2012 = vsub.s32 0, %v2011
        %v2013 = vadd.s32 %v2008, 1
        %vm2014 = vcmp.gt.s32.totalorder %v2013, 0
        %v2015 = vsel %vm2014, %v2013, 0
        %v2016 = vshrl.u32 %v2015, 5
        %v2017 = vand.u32 %v2015, 31
        %v2018 = vsub.s32 32, %v2017
        %v2019 = vshrl.u32 683565275, %v2018
        %v2020 = vshll.u32 683565275, %v2017
        %v2021 = vshrl.u32 2475754826, %v2018
        %v2022 = vor.u32 %v2020, %v2021
        %v2023 = vshll.u32 2475754826, %v2017
        %v2024 = vshrl.u32 2131351028, %v2018
        %v2025 = vor.u32 %v2023, %v2024
        %v2026 = vshll.u32 2131351028, %v2017
        %v2027 = vshrl.u32 2102212464, %v2018
        %v2028 = vor.u32 %v2026, %v2027
        %v2029 = vshll.u32 2102212464, %v2017
        %v2030 = vshrl.u32 920167782, %v2018
        %v2031 = vor.u32 %v2029, %v2030
        %v2032 = vshll.u32 920167782, %v2017
        %v2033 = vshrl.u32 1326507024, %v2018
        %v2034 = vor.u32 %v2032, %v2033
        %vm2035 = vcmp.lt.s32.totalorder %v2016, 1
        %vm2036 = vcmp.lt.s32.totalorder %v2016, 2
        %vm2037 = vcmp.lt.s32.totalorder %v2016, 3
        %vm2038 = vcmp.lt.s32.totalorder %v2016, 4
        %v2039 = vsel %vm2035, %v2019, %v2022
        %v2040 = vsel %vm2038, %v2028, 2102212464
        %v2041 = vsel %vm2037, %v2025, %v2040
        %v2042 = vsel %vm2036, %v2039, %v2041
        %v2043 = vsel %vm2035, %v2022, %v2025
        %v2044 = vsel %vm2038, %v2031, 920167782
        %v2045 = vsel %vm2037, %v2028, %v2044
        %v2046 = vsel %vm2036, %v2043, %v2045
        %v2047 = vsel %vm2035, %v2025, %v2028
        %v2048 = vsel %vm2038, %v2034, 1326507024
        %v2049 = vsel %vm2037, %v2031, %v2048
        %v2050 = vsel %vm2036, %v2047, %v2049
        %v2051 = vshll.u32 %v2011, 8
        %v2052 = vmul.u32.u64.compose %v2051, %v2050
        %v2053 = vextract.low.u32 %v2052
        %v2054 = vextract.high.u32 %v2052
        %v2055 = vmul.u32.u64.compose %v2051, %v2046
        %v2056 = vextract.low.u32 %v2055
        %v2057 = vextract.high.u32 %v2055
        %v2058 = vmul.u32 %v2051, %v2042
        %v2059 = vadd.s32 %v2054, %v2056
        %vm2060 = vc.u32 %v2054, %v2056
        %v2061 = vadd.s32 %v2057, 1
        %v2062 = vsel %vm2060, %v2061, %v2057
        %v2063 = vadd.s32 %v2058, %v2062
        %v2064 = vadd.s32 %v2063, 536870912
        %v2065 = vshrl.u32 %v2064, 30
        %v2066 = vshll.u32 %v2065, 30
        %v2067 = vsub.s32 %v2063, %v2066
        %vm2068 = vcmp.lt.s32.totalorder %v2067, 0
        %v2069 = vsub.s32 0, %v2067
        %v2070 = vsel %vm2068, %v2069, %v2067
        %v2071 = vclz %v2070
        %v2072 = vsub.s32 %v2071, 2
        %vm2073 = vcmp.gt.s32.totalorder 0, %v2072
        %v2074 = vsel %vm2073, 0, %v2072
        %v2075 = vsub.s32 32, %v2074
        %v2076 = vshll.u32 %v2067, %v2074
        %v2077 = vshrl.u32 %v2059, %v2075
        %v2078 = vor.u32 %v2076, %v2077
        %v2079 = vsub.s32 4294967266, %v2074
        %v2080 = vadd.s32 %v2079, 127
        %v2081 = vshll.u32 %v2080, 23
        %v2082 = vor.u32 4788187, %v2081
        %v2083 = vand.u32 2147483647, %v2082
        %v2085 = vcvt.s32.f32 %v2078
        %v2086 = vmul.f32 %v2085, %v2083
        %v2087 = vxor.u32 %v2086, 2147483648
        %v2088 = vsel %vm2005, %v2087, %v2086
        %v2089 = vsub.s32 4, %v2065
        %v2090 = vsel %vm2005, %v2089, %v2065
        %v2091 = vsel %vm2004, %v626, %v2088
        %v2092 = vsel %vm2004, 0, %v2090
        %v2093 = vcosq.f32.pop %v2091
        %v2094 = vsinq.f32.pop %v2091
        %vm2095 = vweird.f32 %v626
        %v2096 = vadd.s32 %v2092, 3
        %v2097 = vand.u32 %v2096, 3
        %vm2098 = vcmp.lt.s32.totalorder %v2097, 2
        %vm2099 = vcmp.eq.s32.totalorder %v2097, 0
        %v2100 = vxor.u32 %v2094, 2147483648
        %v2101 = vsel %vm2099, %v2093, %v2100
        %vm2102 = vcmp.eq.s32.totalorder %v2097, 2
        %v2103 = vxor.u32 %v2093, 2147483648
        %v2104 = vsel %vm2102, %v2103, %v2094
        %v2105 = vsel %vm2098, %v2101, %v2104
        %v2106 = vsel %vm2095, nan, %v2105
        %v2107 = vand.u32 2147483647, %v633
        %vm2108 = vcmp.le.f32.partialorder %v2107, 0.7853982
        %vm2109 = vcmp.lt.s32.totalorder %v633, 0
        %v2110 = vand.u32 %v633, 2139095040
        %v2111 = vshrl.u32 %v2110, 23
        %v2112 = vsub.s32 %v2111, 127
        %v2113 = vand.u32 2147483647, %v633
        %v2114 = vand.u32 %v2113, 8388607
        %v2115 = vor.u32 %v2114, 8388608
        %v2116 = vsub.s32 0, %v2115
        %v2117 = vadd.s32 %v2112, 1
        %vm2118 = vcmp.gt.s32.totalorder %v2117, 0
        %v2119 = vsel %vm2118, %v2117, 0
        %v2120 = vshrl.u32 %v2119, 5
        %v2121 = vand.u32 %v2119, 31
        %v2122 = vsub.s32 32, %v2121
        %v2123 = vshrl.u32 683565275, %v2122
        %v2124 = vshll.u32 683565275, %v2121
        %v2125 = vshrl.u32 2475754826, %v2122
        %v2126 = vor.u32 %v2124, %v2125
        %v2127 = vshll.u32 2475754826, %v2121
        %v2128 = vshrl.u32 2131351028, %v2122
        %v2129 = vor.u32 %v2127, %v2128
        %v2130 = vshll.u32 2131351028, %v2121
        %v2131 = vshrl.u32 2102212464, %v2122
        %v2132 = vor.u32 %v2130, %v2131
        %v2133 = vshll.u32 2102212464, %v2121
        %v2134 = vshrl.u32 920167782, %v2122
        %v2135 = vor.u32 %v2133, %v2134
        %v2136 = vshll.u32 920167782, %v2121
        %v2137 = vshrl.u32 1326507024, %v2122
        %v2138 = vor.u32 %v2136, %v2137
        %vm2139 = vcmp.lt.s32.totalorder %v2120, 1
        %vm2140 = vcmp.lt.s32.totalorder %v2120, 2
        %vm2141 = vcmp.lt.s32.totalorder %v2120, 3
        %vm2142 = vcmp.lt.s32.totalorder %v2120, 4
        %v2143 = vsel %vm2139, %v2123, %v2126
        %v2144 = vsel %vm2142, %v2132, 2102212464
        %v2145 = vsel %vm2141, %v2129, %v2144
        %v2146 = vsel %vm2140, %v2143, %v2145
        %v2147 = vsel %vm2139, %v2126, %v2129
        %v2148 = vsel %vm2142, %v2135, 920167782
        %v2149 = vsel %vm2141, %v2132, %v2148
        %v2150 = vsel %vm2140, %v2147, %v2149
        %v2151 = vsel %vm2139, %v2129, %v2132
        %v2152 = vsel %vm2142, %v2138, 1326507024
        %v2153 = vsel %vm2141, %v2135, %v2152
        %v2154 = vsel %vm2140, %v2151, %v2153
        %v2155 = vshll.u32 %v2115, 8
        %v2156 = vmul.u32.u64.compose %v2155, %v2154
        %v2157 = vextract.low.u32 %v2156
        %v2158 = vextract.high.u32 %v2156
        %v2159 = vmul.u32.u64.compose %v2155, %v2150
        %v2160 = vextract.low.u32 %v2159
        %v2161 = vextract.high.u32 %v2159
        %v2162 = vmul.u32 %v2155, %v2146
        %v2163 = vadd.s32 %v2158, %v2160
        %vm2164 = vc.u32 %v2158, %v2160
        %v2165 = vadd.s32 %v2161, 1
        %v2166 = vsel %vm2164, %v2165, %v2161
        %v2167 = vadd.s32 %v2162, %v2166
        %v2168 = vadd.s32 %v2167, 536870912
        %v2169 = vshrl.u32 %v2168, 30
        %v2170 = vshll.u32 %v2169, 30
        %v2171 = vsub.s32 %v2167, %v2170
        %vm2172 = vcmp.lt.s32.totalorder %v2171, 0
        %v2173 = vsub.s32 0, %v2171
        %v2174 = vsel %vm2172, %v2173, %v2171
        %v2175 = vclz %v2174
        %v2176 = vsub.s32 %v2175, 2
        %vm2177 = vcmp.gt.s32.totalorder 0, %v2176
        %v2178 = vsel %vm2177, 0, %v2176
        %v2179 = vsub.s32 32, %v2178
        %v2180 = vshll.u32 %v2171, %v2178
        %v2181 = vshrl.u32 %v2163, %v2179
        %v2182 = vor.u32 %v2180, %v2181
        %v2183 = vsub.s32 4294967266, %v2178
        %v2184 = vadd.s32 %v2183, 127
        %v2185 = vshll.u32 %v2184, 23
        %v2186 = vor.u32 4788187, %v2185
        %v2187 = vand.u32 2147483647, %v2186
        %v2189 = vcvt.s32.f32 %v2182
        %v2190 = vmul.f32 %v2189, %v2187
        %v2191 = vxor.u32 %v2190, 2147483648
        %v2192 = vsel %vm2109, %v2191, %v2190
        %v2193 = vsub.s32 4, %v2169
        %v2194 = vsel %vm2109, %v2193, %v2169
        %v2195 = vsel %vm2108, %v633, %v2192
        %v2196 = vsel %vm2108, 0, %v2194
        %v2197 = vcosq.f32.pop %v2195
        %v2198 = vsinq.f32.pop %v2195
        %vm2199 = vweird.f32 %v633
        %v2200 = vadd.s32 %v2196, 3
        %v2201 = vand.u32 %v2200, 3
        %vm2202 = vcmp.lt.s32.totalorder %v2201, 2
        %vm2203 = vcmp.eq.s32.totalorder %v2201, 0
        %v2204 = vxor.u32 %v2198, 2147483648
        %v2205 = vsel %vm2203, %v2197, %v2204
        %vm2206 = vcmp.eq.s32.totalorder %v2201, 2
        %v2207 = vxor.u32 %v2197, 2147483648
        %v2208 = vsel %vm2206, %v2207, %v2198
        %v2209 = vsel %vm2202, %v2205, %v2208
        %v2210 = vsel %vm2199, nan, %v2209
        %v2211 = vand.u32 2147483647, %v640
        %vm2212 = vcmp.le.f32.partialorder %v2211, 0.7853982
        %vm2213 = vcmp.lt.s32.totalorder %v640, 0
        %v2214 = vand.u32 %v640, 2139095040
        %v2215 = vshrl.u32 %v2214, 23
        %v2216 = vsub.s32 %v2215, 127
        %v2217 = vand.u32 2147483647, %v640
        %v2218 = vand.u32 %v2217, 8388607
        %v2219 = vor.u32 %v2218, 8388608
        %v2220 = vsub.s32 0, %v2219
        %v2221 = vadd.s32 %v2216, 1
        %vm2222 = vcmp.gt.s32.totalorder %v2221, 0
        %v2223 = vsel %vm2222, %v2221, 0
        %v2224 = vshrl.u32 %v2223, 5
        %v2225 = vand.u32 %v2223, 31
        %v2226 = vsub.s32 32, %v2225
        %v2227 = vshrl.u32 683565275, %v2226
        %v2228 = vshll.u32 683565275, %v2225
        %v2229 = vshrl.u32 2475754826, %v2226
        %v2230 = vor.u32 %v2228, %v2229
        %v2231 = vshll.u32 2475754826, %v2225
        %v2232 = vshrl.u32 2131351028, %v2226
        %v2233 = vor.u32 %v2231, %v2232
        %v2234 = vshll.u32 2131351028, %v2225
        %v2235 = vshrl.u32 2102212464, %v2226
        %v2236 = vor.u32 %v2234, %v2235
        %v2237 = vshll.u32 2102212464, %v2225
        %v2238 = vshrl.u32 920167782, %v2226
        %v2239 = vor.u32 %v2237, %v2238
        %v2240 = vshll.u32 920167782, %v2225
        %v2241 = vshrl.u32 1326507024, %v2226
        %v2242 = vor.u32 %v2240, %v2241
        %vm2243 = vcmp.lt.s32.totalorder %v2224, 1
        %vm2244 = vcmp.lt.s32.totalorder %v2224, 2
        %vm2245 = vcmp.lt.s32.totalorder %v2224, 3
        %vm2246 = vcmp.lt.s32.totalorder %v2224, 4
        %v2247 = vsel %vm2243, %v2227, %v2230
        %v2248 = vsel %vm2246, %v2236, 2102212464
        %v2249 = vsel %vm2245, %v2233, %v2248
        %v2250 = vsel %vm2244, %v2247, %v2249
        %v2251 = vsel %vm2243, %v2230, %v2233
        %v2252 = vsel %vm2246, %v2239, 920167782
        %v2253 = vsel %vm2245, %v2236, %v2252
        %v2254 = vsel %vm2244, %v2251, %v2253
        %v2255 = vsel %vm2243, %v2233, %v2236
        %v2256 = vsel %vm2246, %v2242, 1326507024
        %v2257 = vsel %vm2245, %v2239, %v2256
        %v2258 = vsel %vm2244, %v2255, %v2257
        %v2259 = vshll.u32 %v2219, 8
        %v2260 = vmul.u32.u64.compose %v2259, %v2258
        %v2261 = vextract.low.u32 %v2260
        %v2262 = vextract.high.u32 %v2260
        %v2263 = vmul.u32.u64.compose %v2259, %v2254
        %v2264 = vextract.low.u32 %v2263
        %v2265 = vextract.high.u32 %v2263
        %v2266 = vmul.u32 %v2259, %v2250
        %v2267 = vadd.s32 %v2262, %v2264
        %vm2268 = vc.u32 %v2262, %v2264
        %v2269 = vadd.s32 %v2265, 1
        %v2270 = vsel %vm2268, %v2269, %v2265
        %v2271 = vadd.s32 %v2266, %v2270
        %v2272 = vadd.s32 %v2271, 536870912
        %v2273 = vshrl.u32 %v2272, 30
        %v2274 = vshll.u32 %v2273, 30
        %v2275 = vsub.s32 %v2271, %v2274
        %vm2276 = vcmp.lt.s32.totalorder %v2275, 0
        %v2277 = vsub.s32 0, %v2275
        %v2278 = vsel %vm2276, %v2277, %v2275
        %v2279 = vclz %v2278
        %v2280 = vsub.s32 %v2279, 2
        %vm2281 = vcmp.gt.s32.totalorder 0, %v2280
        %v2282 = vsel %vm2281, 0, %v2280
        %v2283 = vsub.s32 32, %v2282
        %v2284 = vshll.u32 %v2275, %v2282
        %v2285 = vshrl.u32 %v2267, %v2283
        %v2286 = vor.u32 %v2284, %v2285
        %v2287 = vsub.s32 4294967266, %v2282
        %v2288 = vadd.s32 %v2287, 127
        %v2289 = vshll.u32 %v2288, 23
        %v2290 = vor.u32 4788187, %v2289
        %v2291 = vand.u32 2147483647, %v2290
        %v2293 = vcvt.s32.f32 %v2286
        %v2294 = vmul.f32 %v2293, %v2291
        %v2295 = vxor.u32 %v2294, 2147483648
        %v2296 = vsel %vm2213, %v2295, %v2294
        %v2297 = vsub.s32 4, %v2273
        %v2298 = vsel %vm2213, %v2297, %v2273
        %v2299 = vsel %vm2212, %v640, %v2296
        %v2300 = vsel %vm2212, 0, %v2298
        %v2301 = vcosq.f32.pop %v2299
        %v2302 = vsinq.f32.pop %v2299
        %vm2303 = vweird.f32 %v640
        %v2304 = vadd.s32 %v2300, 3
        %v2305 = vand.u32 %v2304, 3
        %vm2306 = vcmp.lt.s32.totalorder %v2305, 2
        %vm2307 = vcmp.eq.s32.totalorder %v2305, 0
        %v2308 = vxor.u32 %v2302, 2147483648
        %v2309 = vsel %vm2307, %v2301, %v2308
        %vm2310 = vcmp.eq.s32.totalorder %v2305, 2
        %v2311 = vxor.u32 %v2301, 2147483648
        %v2312 = vsel %vm2310, %v2311, %v2302
        %v2313 = vsel %vm2306, %v2309, %v2312
        %v2314 = vsel %vm2303, nan, %v2313
        %v2315 = vand.u32 2147483647, %v647
        %vm2316 = vcmp.le.f32.partialorder %v2315, 0.7853982
        %vm2317 = vcmp.lt.s32.totalorder %v647, 0
        %v2318 = vand.u32 %v647, 2139095040
        %v2319 = vshrl.u32 %v2318, 23
        %v2320 = vsub.s32 %v2319, 127
        %v2321 = vand.u32 2147483647, %v647
        %v2322 = vand.u32 %v2321, 8388607
        %v2323 = vor.u32 %v2322, 8388608
        %v2324 = vsub.s32 0, %v2323
        %v2325 = vadd.s32 %v2320, 1
        %vm2326 = vcmp.gt.s32.totalorder %v2325, 0
        %v2327 = vsel %vm2326, %v2325, 0
        %v2328 = vshrl.u32 %v2327, 5
        %v2329 = vand.u32 %v2327, 31
        %v2330 = vsub.s32 32, %v2329
        %v2331 = vshrl.u32 683565275, %v2330
        %v2332 = vshll.u32 683565275, %v2329
        %v2333 = vshrl.u32 2475754826, %v2330
        %v2334 = vor.u32 %v2332, %v2333
        %v2335 = vshll.u32 2475754826, %v2329
        %v2336 = vshrl.u32 2131351028, %v2330
        %v2337 = vor.u32 %v2335, %v2336
        %v2338 = vshll.u32 2131351028, %v2329
        %v2339 = vshrl.u32 2102212464, %v2330
        %v2340 = vor.u32 %v2338, %v2339
        %v2341 = vshll.u32 2102212464, %v2329
        %v2342 = vshrl.u32 920167782, %v2330
        %v2343 = vor.u32 %v2341, %v2342
        %v2344 = vshll.u32 920167782, %v2329
        %v2345 = vshrl.u32 1326507024, %v2330
        %v2346 = vor.u32 %v2344, %v2345
        %vm2347 = vcmp.lt.s32.totalorder %v2328, 1
        %vm2348 = vcmp.lt.s32.totalorder %v2328, 2
        %vm2349 = vcmp.lt.s32.totalorder %v2328, 3
        %vm2350 = vcmp.lt.s32.totalorder %v2328, 4
        %v2351 = vsel %vm2347, %v2331, %v2334
        %v2352 = vsel %vm2350, %v2340, 2102212464
        %v2353 = vsel %vm2349, %v2337, %v2352
        %v2354 = vsel %vm2348, %v2351, %v2353
        %v2355 = vsel %vm2347, %v2334, %v2337
        %v2356 = vsel %vm2350, %v2343, 920167782
        %v2357 = vsel %vm2349, %v2340, %v2356
        %v2358 = vsel %vm2348, %v2355, %v2357
        %v2359 = vsel %vm2347, %v2337, %v2340
        %v2360 = vsel %vm2350, %v2346, 1326507024
        %v2361 = vsel %vm2349, %v2343, %v2360
        %v2362 = vsel %vm2348, %v2359, %v2361
        %v2363 = vshll.u32 %v2323, 8
        %v2364 = vmul.u32.u64.compose %v2363, %v2362
        %v2365 = vextract.low.u32 %v2364
        %v2366 = vextract.high.u32 %v2364
        %v2367 = vmul.u32.u64.compose %v2363, %v2358
        %v2368 = vextract.low.u32 %v2367
        %v2369 = vextract.high.u32 %v2367
        %v2370 = vmul.u32 %v2363, %v2354
        %v2371 = vadd.s32 %v2366, %v2368
        %vm2372 = vc.u32 %v2366, %v2368
        %v2373 = vadd.s32 %v2369, 1
        %v2374 = vsel %vm2372, %v2373, %v2369
        %v2375 = vadd.s32 %v2370, %v2374
        %v2376 = vadd.s32 %v2375, 536870912
        %v2377 = vshrl.u32 %v2376, 30
        %v2378 = vshll.u32 %v2377, 30
        %v2379 = vsub.s32 %v2375, %v2378
        %vm2380 = vcmp.lt.s32.totalorder %v2379, 0
        %v2381 = vsub.s32 0, %v2379
        %v2382 = vsel %vm2380, %v2381, %v2379
        %v2383 = vclz %v2382
        %v2384 = vsub.s32 %v2383, 2
        %vm2385 = vcmp.gt.s32.totalorder 0, %v2384
        %v2386 = vsel %vm2385, 0, %v2384
        %v2387 = vsub.s32 32, %v2386
        %v2388 = vshll.u32 %v2379, %v2386
        %v2389 = vshrl.u32 %v2371, %v2387
        %v2390 = vor.u32 %v2388, %v2389
        %v2391 = vsub.s32 4294967266, %v2386
        %v2392 = vadd.s32 %v2391, 127
        %v2393 = vshll.u32 %v2392, 23
        %v2394 = vor.u32 4788187, %v2393
        %v2395 = vand.u32 2147483647, %v2394
        %v2397 = vcvt.s32.f32 %v2390
        %v2398 = vmul.f32 %v2397, %v2395
        %v2399 = vxor.u32 %v2398, 2147483648
        %v2400 = vsel %vm2317, %v2399, %v2398
        %v2401 = vsub.s32 4, %v2377
        %v2402 = vsel %vm2317, %v2401, %v2377
        %v2403 = vsel %vm2316, %v647, %v2400
        %v2404 = vsel %vm2316, 0, %v2402
        %v2405 = vcosq.f32.pop %v2403
        %v2406 = vsinq.f32.pop %v2403
        %vm2407 = vweird.f32 %v647
        %v2408 = vadd.s32 %v2404, 3
        %v2409 = vand.u32 %v2408, 3
        %vm2410 = vcmp.lt.s32.totalorder %v2409, 2
        %vm2411 = vcmp.eq.s32.totalorder %v2409, 0
        %v2412 = vxor.u32 %v2406, 2147483648
        %v2413 = vsel %vm2411, %v2405, %v2412
        %vm2414 = vcmp.eq.s32.totalorder %v2409, 2
        %v2415 = vxor.u32 %v2405, 2147483648
        %v2416 = vsel %vm2414, %v2415, %v2406
        %v2417 = vsel %vm2410, %v2413, %v2416
        %v2418 = vsel %vm2407, nan, %v2417
        %v2419 = vsel %vm739, %v858, 0.0
        %v2420 = vsel %vm740, %v962, 0.0
        %v2421 = vsel %vm741, %v1066, 0.0
        %v2422 = vsel %vm742, %v1170, 0.0
        %v2423 = vsel %vm743, %v1274, 0.0
        %v2424 = vsel %vm744, %v1378, 0.0
        %v2425 = vsel %vm745, %v1482, 0.0
        %v2426 = vsel %vm746, %v1586, 0.0
        %v2427 = vsel %vm747, %v1690, 0.0
        %v2428 = vsel %vm748, %v1794, 0.0
        %v2429 = vsel %vm749, %v1898, 0.0
        %v2430 = vsel %vm750, %v2002, 0.0
        %v2431 = vsel %vm751, %v2106, 0.0
        %v2432 = vsel %vm752, %v2210, 0.0
        %v2433 = vsel %vm753, %v2314, 0.0
        %v2434 = vsel %vm754, %v2418, 0.0
        %2435 = vadd.xlane.f32.xlu0 %v2419
        %v2436 = vpop.xlane.xlu0 %2435
        %2437 = vadd.xlane.f32.xlu0 %v2420
        %v2438 = vpop.xlane.xlu0 %2437
        %2439 = vadd.xlane.f32.xlu0 %v2421
        %v2440 = vpop.xlane.xlu0 %2439
        %2441 = vadd.xlane.f32.xlu0 %v2422
        %v2442 = vpop.xlane.xlu0 %2441
        %2443 = vadd.xlane.f32.xlu0 %v2423
        %v2444 = vpop.xlane.xlu0 %2443
        %2445 = vadd.xlane.f32.xlu0 %v2424
        %v2446 = vpop.xlane.xlu0 %2445
        %2447 = vadd.xlane.f32.xlu0 %v2425
        %v2448 = vpop.xlane.xlu0 %2447
        %2449 = vadd.xlane.f32.xlu0 %v2426
        %v2450 = vpop.xlane.xlu0 %2449
        %2451 = vadd.xlane.f32.xlu0 %v2427
        %v2452 = vpop.xlane.xlu0 %2451
        %2453 = vadd.xlane.f32.xlu0 %v2428
        %v2454 = vpop.xlane.xlu0 %2453
        %2455 = vadd.xlane.f32.xlu0 %v2429
        %v2456 = vpop.xlane.xlu0 %2455
        %2457 = vadd.xlane.f32.xlu0 %v2430
        %v2458 = vpop.xlane.xlu0 %2457
        %2459 = vadd.xlane.f32.xlu0 %v2431
        %v2460 = vpop.xlane.xlu0 %2459
        %2461 = vadd.xlane.f32.xlu0 %v2432
        %v2462 = vpop.xlane.xlu0 %2461
        %2463 = vadd.xlane.f32.xlu0 %v2433
        %v2464 = vpop.xlane.xlu0 %2463
        %2465 = vadd.xlane.f32.xlu0 %v2434
        %v2466 = vpop.xlane.xlu0 %2465
        %v2467 = vadd.f32 %v2419, %v2420
        %v2468 = vadd.f32 %v2467, %v2421
        %v2469 = vadd.f32 %v2468, %v2422
        %v2470 = vadd.f32 %v2469, %v2423
        %v2471 = vadd.f32 %v2470, %v2424
        %v2472 = vadd.f32 %v2471, %v2425
        %v2473 = vadd.f32 %v2472, %v2426
        %v2474 = vadd.f32 %v2473, %v2427
        %v2475 = vadd.f32 %v2474, %v2428
        %v2476 = vadd.f32 %v2475, %v2429
        %v2477 = vadd.f32 %v2476, %v2430
        %v2478 = vadd.f32 %v2477, %v2431
        %v2479 = vadd.f32 %v2478, %v2432
        %v2480 = vadd.f32 %v2479, %v2433
        %v2481 = vadd.f32 %v2480, %v2434
        %v2482 = vrot.slane %v2481, 4
        %v2483 = vadd.f32 %v2481, %v2482
        %v2484 = vrot.slane %v2483, 2
        %v2485 = vadd.f32 %v2483, %v2484
        %v2486 = vrot.slane %v2485, 1
        %v2487 = vadd.f32 %v2485, %v2486
        %v2488 = vand.u32 2147483647, %v542
        %vm2489 = vcmp.le.f32.partialorder %v2488, 0.7853982
        %vm2490 = vcmp.lt.s32.totalorder %v542, 0
        %v2491 = vand.u32 %v542, 2139095040
        %v2492 = vshrl.u32 %v2491, 23
        %v2493 = vsub.s32 %v2492, 127
        %v2494 = vand.u32 2147483647, %v542
        %v2495 = vand.u32 %v2494, 8388607
        %v2496 = vor.u32 %v2495, 8388608
        %v2497 = vsub.s32 0, %v2496
        %v2498 = vadd.s32 %v2493, 1
        %vm2499 = vcmp.gt.s32.totalorder %v2498, 0
        %v2500 = vsel %vm2499, %v2498, 0
        %v2501 = vshrl.u32 %v2500, 5
        %v2502 = vand.u32 %v2500, 31
        %v2503 = vsub.s32 32, %v2502
        %v2504 = vshrl.u32 683565275, %v2503
        %v2505 = vshll.u32 683565275, %v2502
        %v2506 = vshrl.u32 2475754826, %v2503
        %v2507 = vor.u32 %v2505, %v2506
        %v2508 = vshll.u32 2475754826, %v2502
        %v2509 = vshrl.u32 2131351028, %v2503
        %v2510 = vor.u32 %v2508, %v2509
        %v2511 = vshll.u32 2131351028, %v2502
        %v2512 = vshrl.u32 2102212464, %v2503
        %v2513 = vor.u32 %v2511, %v2512
        %v2514 = vshll.u32 2102212464, %v2502
        %v2515 = vshrl.u32 920167782, %v2503
        %v2516 = vor.u32 %v2514, %v2515
        %v2517 = vshll.u32 920167782, %v2502
        %v2518 = vshrl.u32 1326507024, %v2503
        %v2519 = vor.u32 %v2517, %v2518
        %vm2520 = vcmp.lt.s32.totalorder %v2501, 1
        %vm2521 = vcmp.lt.s32.totalorder %v2501, 2
        %vm2522 = vcmp.lt.s32.totalorder %v2501, 3
        %vm2523 = vcmp.lt.s32.totalorder %v2501, 4
        %v2524 = vsel %vm2520, %v2504, %v2507
        %v2525 = vsel %vm2523, %v2513, 2102212464
        %v2526 = vsel %vm2522, %v2510, %v2525
        %v2527 = vsel %vm2521, %v2524, %v2526
        %v2528 = vsel %vm2520, %v2507, %v2510
        %v2529 = vsel %vm2523, %v2516, 920167782
        %v2530 = vsel %vm2522, %v2513, %v2529
        %v2531 = vsel %vm2521, %v2528, %v2530
        %v2532 = vsel %vm2520, %v2510, %v2513
        %v2533 = vsel %vm2523, %v2519, 1326507024
        %v2534 = vsel %vm2522, %v2516, %v2533
        %v2535 = vsel %vm2521, %v2532, %v2534
        %v2536 = vshll.u32 %v2496, 8
        %v2537 = vmul.u32.u64.compose %v2536, %v2535
        %v2538 = vextract.low.u32 %v2537
        %v2539 = vextract.high.u32 %v2537
        %v2540 = vmul.u32.u64.compose %v2536, %v2531
        %v2541 = vextract.low.u32 %v2540
        %v2542 = vextract.high.u32 %v2540
        %v2543 = vmul.u32 %v2536, %v2527
        %v2544 = vadd.s32 %v2539, %v2541
        %vm2545 = vc.u32 %v2539, %v2541
        %v2546 = vadd.s32 %v2542, 1
        %v2547 = vsel %vm2545, %v2546, %v2542
        %v2548 = vadd.s32 %v2543, %v2547
        %v2549 = vadd.s32 %v2548, 536870912
        %v2550 = vshrl.u32 %v2549, 30
        %v2551 = vshll.u32 %v2550, 30
        %v2552 = vsub.s32 %v2548, %v2551
        %vm2553 = vcmp.lt.s32.totalorder %v2552, 0
        %v2554 = vsub.s32 0, %v2552
        %v2555 = vsel %vm2553, %v2554, %v2552
        %v2556 = vclz %v2555
        %v2557 = vsub.s32 %v2556, 2
        %vm2558 = vcmp.gt.s32.totalorder 0, %v2557
        %v2559 = vsel %vm2558, 0, %v2557
        %v2560 = vsub.s32 32, %v2559
        %v2561 = vshll.u32 %v2552, %v2559
        %v2562 = vshrl.u32 %v2544, %v2560
        %v2563 = vor.u32 %v2561, %v2562
        %v2564 = vsub.s32 4294967266, %v2559
        %v2565 = vadd.s32 %v2564, 127
        %v2566 = vshll.u32 %v2565, 23
        %v2567 = vor.u32 4788187, %v2566
        %v2568 = vand.u32 2147483647, %v2567
        %v2570 = vcvt.s32.f32 %v2563
        %v2571 = vmul.f32 %v2570, %v2568
        %v2572 = vxor.u32 %v2571, 2147483648
        %v2573 = vsel %vm2490, %v2572, %v2571
        %v2574 = vsub.s32 4, %v2550
        %v2575 = vsel %vm2490, %v2574, %v2550
        %v2576 = vsel %vm2489, %v542, %v2573
        %v2577 = vsel %vm2489, 0, %v2575
        %v2578 = vcosq.f32.pop %v2576
        %v2579 = vsinq.f32.pop %v2576
        %vm2580 = vweird.f32 %v542
        %v2581 = vand.u32 %v2577, 3
        %vm2582 = vcmp.lt.s32.totalorder %v2581, 2
        %vm2583 = vcmp.eq.s32.totalorder %v2581, 0
        %v2584 = vxor.u32 %v2579, 2147483648
        %v2585 = vsel %vm2583, %v2578, %v2584
        %vm2586 = vcmp.eq.s32.totalorder %v2581, 2
        %v2587 = vxor.u32 %v2578, 2147483648
        %v2588 = vsel %vm2586, %v2587, %v2579
        %v2589 = vsel %vm2582, %v2585, %v2588
        %v2590 = vsel %vm2580, nan, %v2589
        %v2591 = vand.u32 2147483647, %v549
        %vm2592 = vcmp.le.f32.partialorder %v2591, 0.7853982
        %vm2593 = vcmp.lt.s32.totalorder %v549, 0
        %v2594 = vand.u32 %v549, 2139095040
        %v2595 = vshrl.u32 %v2594, 23
        %v2596 = vsub.s32 %v2595, 127
        %v2597 = vand.u32 2147483647, %v549
        %v2598 = vand.u32 %v2597, 8388607
        %v2599 = vor.u32 %v2598, 8388608
        %v2600 = vsub.s32 0, %v2599
        %v2601 = vadd.s32 %v2596, 1
        %vm2602 = vcmp.gt.s32.totalorder %v2601, 0
        %v2603 = vsel %vm2602, %v2601, 0
        %v2604 = vshrl.u32 %v2603, 5
        %v2605 = vand.u32 %v2603, 31
        %v2606 = vsub.s32 32, %v2605
        %v2607 = vshrl.u32 683565275, %v2606
        %v2608 = vshll.u32 683565275, %v2605
        %v2609 = vshrl.u32 2475754826, %v2606
        %v2610 = vor.u32 %v2608, %v2609
        %v2611 = vshll.u32 2475754826, %v2605
        %v2612 = vshrl.u32 2131351028, %v2606
        %v2613 = vor.u32 %v2611, %v2612
        %v2614 = vshll.u32 2131351028, %v2605
        %v2615 = vshrl.u32 2102212464, %v2606
        %v2616 = vor.u32 %v2614, %v2615
        %v2617 = vshll.u32 2102212464, %v2605
        %v2618 = vshrl.u32 920167782, %v2606
        %v2619 = vor.u32 %v2617, %v2618
        %v2620 = vshll.u32 920167782, %v2605
        %v2621 = vshrl.u32 1326507024, %v2606
        %v2622 = vor.u32 %v2620, %v2621
        %vm2623 = vcmp.lt.s32.totalorder %v2604, 1
        %vm2624 = vcmp.lt.s32.totalorder %v2604, 2
        %vm2625 = vcmp.lt.s32.totalorder %v2604, 3
        %vm2626 = vcmp.lt.s32.totalorder %v2604, 4
        %v2627 = vsel %vm2623, %v2607, %v2610
        %v2628 = vsel %vm2626, %v2616, 2102212464
        %v2629 = vsel %vm2625, %v2613, %v2628
        %v2630 = vsel %vm2624, %v2627, %v2629
        %v2631 = vsel %vm2623, %v2610, %v2613
        %v2632 = vsel %vm2626, %v2619, 920167782
        %v2633 = vsel %vm2625, %v2616, %v2632
        %v2634 = vsel %vm2624, %v2631, %v2633
        %v2635 = vsel %vm2623, %v2613, %v2616
        %v2636 = vsel %vm2626, %v2622, 1326507024
        %v2637 = vsel %vm2625, %v2619, %v2636
        %v2638 = vsel %vm2624, %v2635, %v2637
        %v2639 = vshll.u32 %v2599, 8
        %v2640 = vmul.u32.u64.compose %v2639, %v2638
        %v2641 = vextract.low.u32 %v2640
        %v2642 = vextract.high.u32 %v2640
        %v2643 = vmul.u32.u64.compose %v2639, %v2634
        %v2644 = vextract.low.u32 %v2643
        %v2645 = vextract.high.u32 %v2643
        %v2646 = vmul.u32 %v2639, %v2630
        %v2647 = vadd.s32 %v2642, %v2644
        %vm2648 = vc.u32 %v2642, %v2644
        %v2649 = vadd.s32 %v2645, 1
        %v2650 = vsel %vm2648, %v2649, %v2645
        %v2651 = vadd.s32 %v2646, %v2650
        %v2652 = vadd.s32 %v2651, 536870912
        %v2653 = vshrl.u32 %v2652, 30
        %v2654 = vshll.u32 %v2653, 30
        %v2655 = vsub.s32 %v2651, %v2654
        %vm2656 = vcmp.lt.s32.totalorder %v2655, 0
        %v2657 = vsub.s32 0, %v2655
        %v2658 = vsel %vm2656, %v2657, %v2655
        %v2659 = vclz %v2658
        %v2660 = vsub.s32 %v2659, 2
        %vm2661 = vcmp.gt.s32.totalorder 0, %v2660
        %v2662 = vsel %vm2661, 0, %v2660
        %v2663 = vsub.s32 32, %v2662
        %v2664 = vshll.u32 %v2655, %v2662
        %v2665 = vshrl.u32 %v2647, %v2663
        %v2666 = vor.u32 %v2664, %v2665
        %v2667 = vsub.s32 4294967266, %v2662
        %v2668 = vadd.s32 %v2667, 127
        %v2669 = vshll.u32 %v2668, 23
        %v2670 = vor.u32 4788187, %v2669
        %v2671 = vand.u32 2147483647, %v2670
        %v2673 = vcvt.s32.f32 %v2666
        %v2674 = vmul.f32 %v2673, %v2671
        %v2675 = vxor.u32 %v2674, 2147483648
        %v2676 = vsel %vm2593, %v2675, %v2674
        %v2677 = vsub.s32 4, %v2653
        %v2678 = vsel %vm2593, %v2677, %v2653
        %v2679 = vsel %vm2592, %v549, %v2676
        %v2680 = vsel %vm2592, 0, %v2678
        %v2681 = vcosq.f32.pop %v2679
        %v2682 = vsinq.f32.pop %v2679
        %vm2683 = vweird.f32 %v549
        %v2684 = vand.u32 %v2680, 3
        %vm2685 = vcmp.lt.s32.totalorder %v2684, 2
        %vm2686 = vcmp.eq.s32.totalorder %v2684, 0
        %v2687 = vxor.u32 %v2682, 2147483648
        %v2688 = vsel %vm2686, %v2681, %v2687
        %vm2689 = vcmp.eq.s32.totalorder %v2684, 2
        %v2690 = vxor.u32 %v2681, 2147483648
        %v2691 = vsel %vm2689, %v2690, %v2682
        %v2692 = vsel %vm2685, %v2688, %v2691
        %v2693 = vsel %vm2683, nan, %v2692
        %v2694 = vand.u32 2147483647, %v556
        %vm2695 = vcmp.le.f32.partialorder %v2694, 0.7853982
        %vm2696 = vcmp.lt.s32.totalorder %v556, 0
        %v2697 = vand.u32 %v556, 2139095040
        %v2698 = vshrl.u32 %v2697, 23
        %v2699 = vsub.s32 %v2698, 127
        %v2700 = vand.u32 2147483647, %v556
        %v2701 = vand.u32 %v2700, 8388607
        %v2702 = vor.u32 %v2701, 8388608
        %v2703 = vsub.s32 0, %v2702
        %v2704 = vadd.s32 %v2699, 1
        %vm2705 = vcmp.gt.s32.totalorder %v2704, 0
        %v2706 = vsel %vm2705, %v2704, 0
        %v2707 = vshrl.u32 %v2706, 5
        %v2708 = vand.u32 %v2706, 31
        %v2709 = vsub.s32 32, %v2708
        %v2710 = vshrl.u32 683565275, %v2709
        %v2711 = vshll.u32 683565275, %v2708
        %v2712 = vshrl.u32 2475754826, %v2709
        %v2713 = vor.u32 %v2711, %v2712
        %v2714 = vshll.u32 2475754826, %v2708
        %v2715 = vshrl.u32 2131351028, %v2709
        %v2716 = vor.u32 %v2714, %v2715
        %v2717 = vshll.u32 2131351028, %v2708
        %v2718 = vshrl.u32 2102212464, %v2709
        %v2719 = vor.u32 %v2717, %v2718
        %v2720 = vshll.u32 2102212464, %v2708
        %v2721 = vshrl.u32 920167782, %v2709
        %v2722 = vor.u32 %v2720, %v2721
        %v2723 = vshll.u32 920167782, %v2708
        %v2724 = vshrl.u32 1326507024, %v2709
        %v2725 = vor.u32 %v2723, %v2724
        %vm2726 = vcmp.lt.s32.totalorder %v2707, 1
        %vm2727 = vcmp.lt.s32.totalorder %v2707, 2
        %vm2728 = vcmp.lt.s32.totalorder %v2707, 3
        %vm2729 = vcmp.lt.s32.totalorder %v2707, 4
        %v2730 = vsel %vm2726, %v2710, %v2713
        %v2731 = vsel %vm2729, %v2719, 2102212464
        %v2732 = vsel %vm2728, %v2716, %v2731
        %v2733 = vsel %vm2727, %v2730, %v2732
        %v2734 = vsel %vm2726, %v2713, %v2716
        %v2735 = vsel %vm2729, %v2722, 920167782
        %v2736 = vsel %vm2728, %v2719, %v2735
        %v2737 = vsel %vm2727, %v2734, %v2736
        %v2738 = vsel %vm2726, %v2716, %v2719
        %v2739 = vsel %vm2729, %v2725, 1326507024
        %v2740 = vsel %vm2728, %v2722, %v2739
        %v2741 = vsel %vm2727, %v2738, %v2740
        %v2742 = vshll.u32 %v2702, 8
        %v2743 = vmul.u32.u64.compose %v2742, %v2741
        %v2744 = vextract.low.u32 %v2743
        %v2745 = vextract.high.u32 %v2743
        %v2746 = vmul.u32.u64.compose %v2742, %v2737
        %v2747 = vextract.low.u32 %v2746
        %v2748 = vextract.high.u32 %v2746
        %v2749 = vmul.u32 %v2742, %v2733
        %v2750 = vadd.s32 %v2745, %v2747
        %vm2751 = vc.u32 %v2745, %v2747
        %v2752 = vadd.s32 %v2748, 1
        %v2753 = vsel %vm2751, %v2752, %v2748
        %v2754 = vadd.s32 %v2749, %v2753
        %v2755 = vadd.s32 %v2754, 536870912
        %v2756 = vshrl.u32 %v2755, 30
        %v2757 = vshll.u32 %v2756, 30
        %v2758 = vsub.s32 %v2754, %v2757
        %vm2759 = vcmp.lt.s32.totalorder %v2758, 0
        %v2760 = vsub.s32 0, %v2758
        %v2761 = vsel %vm2759, %v2760, %v2758
        %v2762 = vclz %v2761
        %v2763 = vsub.s32 %v2762, 2
        %vm2764 = vcmp.gt.s32.totalorder 0, %v2763
        %v2765 = vsel %vm2764, 0, %v2763
        %v2766 = vsub.s32 32, %v2765
        %v2767 = vshll.u32 %v2758, %v2765
        %v2768 = vshrl.u32 %v2750, %v2766
        %v2769 = vor.u32 %v2767, %v2768
        %v2770 = vsub.s32 4294967266, %v2765
        %v2771 = vadd.s32 %v2770, 127
        %v2772 = vshll.u32 %v2771, 23
        %v2773 = vor.u32 4788187, %v2772
        %v2774 = vand.u32 2147483647, %v2773
        %v2776 = vcvt.s32.f32 %v2769
        %v2777 = vmul.f32 %v2776, %v2774
        %v2778 = vxor.u32 %v2777, 2147483648
        %v2779 = vsel %vm2696, %v2778, %v2777
        %v2780 = vsub.s32 4, %v2756
        %v2781 = vsel %vm2696, %v2780, %v2756
        %v2782 = vsel %vm2695, %v556, %v2779
        %v2783 = vsel %vm2695, 0, %v2781
        %v2784 = vcosq.f32.pop %v2782
        %v2785 = vsinq.f32.pop %v2782
        %vm2786 = vweird.f32 %v556
        %v2787 = vand.u32 %v2783, 3
        %vm2788 = vcmp.lt.s32.totalorder %v2787, 2
        %vm2789 = vcmp.eq.s32.totalorder %v2787, 0
        %v2790 = vxor.u32 %v2785, 2147483648
        %v2791 = vsel %vm2789, %v2784, %v2790
        %vm2792 = vcmp.eq.s32.totalorder %v2787, 2
        %v2793 = vxor.u32 %v2784, 2147483648
        %v2794 = vsel %vm2792, %v2793, %v2785
        %v2795 = vsel %vm2788, %v2791, %v2794
        %v2796 = vsel %vm2786, nan, %v2795
        %v2797 = vand.u32 2147483647, %v563
        %vm2798 = vcmp.le.f32.partialorder %v2797, 0.7853982
        %vm2799 = vcmp.lt.s32.totalorder %v563, 0
        %v2800 = vand.u32 %v563, 2139095040
        %v2801 = vshrl.u32 %v2800, 23
        %v2802 = vsub.s32 %v2801, 127
        %v2803 = vand.u32 2147483647, %v563
        %v2804 = vand.u32 %v2803, 8388607
        %v2805 = vor.u32 %v2804, 8388608
        %v2806 = vsub.s32 0, %v2805
        %v2807 = vadd.s32 %v2802, 1
        %vm2808 = vcmp.gt.s32.totalorder %v2807, 0
        %v2809 = vsel %vm2808, %v2807, 0
        %v2810 = vshrl.u32 %v2809, 5
        %v2811 = vand.u32 %v2809, 31
        %v2812 = vsub.s32 32, %v2811
        %v2813 = vshrl.u32 683565275, %v2812
        %v2814 = vshll.u32 683565275, %v2811
        %v2815 = vshrl.u32 2475754826, %v2812
        %v2816 = vor.u32 %v2814, %v2815
        %v2817 = vshll.u32 2475754826, %v2811
        %v2818 = vshrl.u32 2131351028, %v2812
        %v2819 = vor.u32 %v2817, %v2818
        %v2820 = vshll.u32 2131351028, %v2811
        %v2821 = vshrl.u32 2102212464, %v2812
        %v2822 = vor.u32 %v2820, %v2821
        %v2823 = vshll.u32 2102212464, %v2811
        %v2824 = vshrl.u32 920167782, %v2812
        %v2825 = vor.u32 %v2823, %v2824
        %v2826 = vshll.u32 920167782, %v2811
        %v2827 = vshrl.u32 1326507024, %v2812
        %v2828 = vor.u32 %v2826, %v2827
        %vm2829 = vcmp.lt.s32.totalorder %v2810, 1
        %vm2830 = vcmp.lt.s32.totalorder %v2810, 2
        %vm2831 = vcmp.lt.s32.totalorder %v2810, 3
        %vm2832 = vcmp.lt.s32.totalorder %v2810, 4
        %v2833 = vsel %vm2829, %v2813, %v2816
        %v2834 = vsel %vm2832, %v2822, 2102212464
        %v2835 = vsel %vm2831, %v2819, %v2834
        %v2836 = vsel %vm2830, %v2833, %v2835
        %v2837 = vsel %vm2829, %v2816, %v2819
        %v2838 = vsel %vm2832, %v2825, 920167782
        %v2839 = vsel %vm2831, %v2822, %v2838
        %v2840 = vsel %vm2830, %v2837, %v2839
        %v2841 = vsel %vm2829, %v2819, %v2822
        %v2842 = vsel %vm2832, %v2828, 1326507024
        %v2843 = vsel %vm2831, %v2825, %v2842
        %v2844 = vsel %vm2830, %v2841, %v2843
        %v2845 = vshll.u32 %v2805, 8
        %v2846 = vmul.u32.u64.compose %v2845, %v2844
        %v2847 = vextract.low.u32 %v2846
        %v2848 = vextract.high.u32 %v2846
        %v2849 = vmul.u32.u64.compose %v2845, %v2840
        %v2850 = vextract.low.u32 %v2849
        %v2851 = vextract.high.u32 %v2849
        %v2852 = vmul.u32 %v2845, %v2836
        %v2853 = vadd.s32 %v2848, %v2850
        %vm2854 = vc.u32 %v2848, %v2850
        %v2855 = vadd.s32 %v2851, 1
        %v2856 = vsel %vm2854, %v2855, %v2851
        %v2857 = vadd.s32 %v2852, %v2856
        %v2858 = vadd.s32 %v2857, 536870912
        %v2859 = vshrl.u32 %v2858, 30
        %v2860 = vshll.u32 %v2859, 30
        %v2861 = vsub.s32 %v2857, %v2860
        %vm2862 = vcmp.lt.s32.totalorder %v2861, 0
        %v2863 = vsub.s32 0, %v2861
        %v2864 = vsel %vm2862, %v2863, %v2861
        %v2865 = vclz %v2864
        %v2866 = vsub.s32 %v2865, 2
        %vm2867 = vcmp.gt.s32.totalorder 0, %v2866
        %v2868 = vsel %vm2867, 0, %v2866
        %v2869 = vsub.s32 32, %v2868
        %v2870 = vshll.u32 %v2861, %v2868
        %v2871 = vshrl.u32 %v2853, %v2869
        %v2872 = vor.u32 %v2870, %v2871
        %v2873 = vsub.s32 4294967266, %v2868
        %v2874 = vadd.s32 %v2873, 127
        %v2875 = vshll.u32 %v2874, 23
        %v2876 = vor.u32 4788187, %v2875
        %v2877 = vand.u32 2147483647, %v2876
        %v2879 = vcvt.s32.f32 %v2872
        %v2880 = vmul.f32 %v2879, %v2877
        %v2881 = vxor.u32 %v2880, 2147483648
        %v2882 = vsel %vm2799, %v2881, %v2880
        %v2883 = vsub.s32 4, %v2859
        %v2884 = vsel %vm2799, %v2883, %v2859
        %v2885 = vsel %vm2798, %v563, %v2882
        %v2886 = vsel %vm2798, 0, %v2884
        %v2887 = vcosq.f32.pop %v2885
        %v2888 = vsinq.f32.pop %v2885
        %vm2889 = vweird.f32 %v563
        %v2890 = vand.u32 %v2886, 3
        %vm2891 = vcmp.lt.s32.totalorder %v2890, 2
        %vm2892 = vcmp.eq.s32.totalorder %v2890, 0
        %v2893 = vxor.u32 %v2888, 2147483648
        %v2894 = vsel %vm2892, %v2887, %v2893
        %vm2895 = vcmp.eq.s32.totalorder %v2890, 2
        %v2896 = vxor.u32 %v2887, 2147483648
        %v2897 = vsel %vm2895, %v2896, %v2888
        %v2898 = vsel %vm2891, %v2894, %v2897
        %v2899 = vsel %vm2889, nan, %v2898
        %v2900 = vand.u32 2147483647, %v570
        %vm2901 = vcmp.le.f32.partialorder %v2900, 0.7853982
        %vm2902 = vcmp.lt.s32.totalorder %v570, 0
        %v2903 = vand.u32 %v570, 2139095040
        %v2904 = vshrl.u32 %v2903, 23
        %v2905 = vsub.s32 %v2904, 127
        %v2906 = vand.u32 2147483647, %v570
        %v2907 = vand.u32 %v2906, 8388607
        %v2908 = vor.u32 %v2907, 8388608
        %v2909 = vsub.s32 0, %v2908
        %v2910 = vadd.s32 %v2905, 1
        %vm2911 = vcmp.gt.s32.totalorder %v2910, 0
        %v2912 = vsel %vm2911, %v2910, 0
        %v2913 = vshrl.u32 %v2912, 5
        %v2914 = vand.u32 %v2912, 31
        %v2915 = vsub.s32 32, %v2914
        %v2916 = vshrl.u32 683565275, %v2915
        %v2917 = vshll.u32 683565275, %v2914
        %v2918 = vshrl.u32 2475754826, %v2915
        %v2919 = vor.u32 %v2917, %v2918
        %v2920 = vshll.u32 2475754826, %v2914
        %v2921 = vshrl.u32 2131351028, %v2915
        %v2922 = vor.u32 %v2920, %v2921
        %v2923 = vshll.u32 2131351028, %v2914
        %v2924 = vshrl.u32 2102212464, %v2915
        %v2925 = vor.u32 %v2923, %v2924
        %v2926 = vshll.u32 2102212464, %v2914
        %v2927 = vshrl.u32 920167782, %v2915
        %v2928 = vor.u32 %v2926, %v2927
        %v2929 = vshll.u32 920167782, %v2914
        %v2930 = vshrl.u32 1326507024, %v2915
        %v2931 = vor.u32 %v2929, %v2930
        %vm2932 = vcmp.lt.s32.totalorder %v2913, 1
        %vm2933 = vcmp.lt.s32.totalorder %v2913, 2
        %vm2934 = vcmp.lt.s32.totalorder %v2913, 3
        %vm2935 = vcmp.lt.s32.totalorder %v2913, 4
        %v2936 = vsel %vm2932, %v2916, %v2919
        %v2937 = vsel %vm2935, %v2925, 2102212464
        %v2938 = vsel %vm2934, %v2922, %v2937
        %v2939 = vsel %vm2933, %v2936, %v2938
        %v2940 = vsel %vm2932, %v2919, %v2922
        %v2941 = vsel %vm2935, %v2928, 920167782
        %v2942 = vsel %vm2934, %v2925, %v2941
        %v2943 = vsel %vm2933, %v2940, %v2942
        %v2944 = vsel %vm2932, %v2922, %v2925
        %v2945 = vsel %vm2935, %v2931, 1326507024
        %v2946 = vsel %vm2934, %v2928, %v2945
        %v2947 = vsel %vm2933, %v2944, %v2946
        %v2948 = vshll.u32 %v2908, 8
        %v2949 = vmul.u32.u64.compose %v2948, %v2947
        %v2950 = vextract.low.u32 %v2949
        %v2951 = vextract.high.u32 %v2949
        %v2952 = vmul.u32.u64.compose %v2948, %v2943
        %v2953 = vextract.low.u32 %v2952
        %v2954 = vextract.high.u32 %v2952
        %v2955 = vmul.u32 %v2948, %v2939
        %v2956 = vadd.s32 %v2951, %v2953
        %vm2957 = vc.u32 %v2951, %v2953
        %v2958 = vadd.s32 %v2954, 1
        %v2959 = vsel %vm2957, %v2958, %v2954
        %v2960 = vadd.s32 %v2955, %v2959
        %v2961 = vadd.s32 %v2960, 536870912
        %v2962 = vshrl.u32 %v2961, 30
        %v2963 = vshll.u32 %v2962, 30
        %v2964 = vsub.s32 %v2960, %v2963
        %vm2965 = vcmp.lt.s32.totalorder %v2964, 0
        %v2966 = vsub.s32 0, %v2964
        %v2967 = vsel %vm2965, %v2966, %v2964
        %v2968 = vclz %v2967
        %v2969 = vsub.s32 %v2968, 2
        %vm2970 = vcmp.gt.s32.totalorder 0, %v2969
        %v2971 = vsel %vm2970, 0, %v2969
        %v2972 = vsub.s32 32, %v2971
        %v2973 = vshll.u32 %v2964, %v2971
        %v2974 = vshrl.u32 %v2956, %v2972
        %v2975 = vor.u32 %v2973, %v2974
        %v2976 = vsub.s32 4294967266, %v2971
        %v2977 = vadd.s32 %v2976, 127
        %v2978 = vshll.u32 %v2977, 23
        %v2979 = vor.u32 4788187, %v2978
        %v2980 = vand.u32 2147483647, %v2979
        %v2982 = vcvt.s32.f32 %v2975
        %v2983 = vmul.f32 %v2982, %v2980
        %v2984 = vxor.u32 %v2983, 2147483648
        %v2985 = vsel %vm2902, %v2984, %v2983
        %v2986 = vsub.s32 4, %v2962
        %v2987 = vsel %vm2902, %v2986, %v2962
        %v2988 = vsel %vm2901, %v570, %v2985
        %v2989 = vsel %vm2901, 0, %v2987
        %v2990 = vcosq.f32.pop %v2988
        %v2991 = vsinq.f32.pop %v2988
        %vm2992 = vweird.f32 %v570
        %v2993 = vand.u32 %v2989, 3
        %vm2994 = vcmp.lt.s32.totalorder %v2993, 2
        %vm2995 = vcmp.eq.s32.totalorder %v2993, 0
        %v2996 = vxor.u32 %v2991, 2147483648
        %v2997 = vsel %vm2995, %v2990, %v2996
        %vm2998 = vcmp.eq.s32.totalorder %v2993, 2
        %v2999 = vxor.u32 %v2990, 2147483648
        %v3000 = vsel %vm2998, %v2999, %v2991
        %v3001 = vsel %vm2994, %v2997, %v3000
        %v3002 = vsel %vm2992, nan, %v3001
        %v3003 = vand.u32 2147483647, %v577
        %vm3004 = vcmp.le.f32.partialorder %v3003, 0.7853982
        %vm3005 = vcmp.lt.s32.totalorder %v577, 0
        %v3006 = vand.u32 %v577, 2139095040
        %v3007 = vshrl.u32 %v3006, 23
        %v3008 = vsub.s32 %v3007, 127
        %v3009 = vand.u32 2147483647, %v577
        %v3010 = vand.u32 %v3009, 8388607
        %v3011 = vor.u32 %v3010, 8388608
        %v3012 = vsub.s32 0, %v3011
        %v3013 = vadd.s32 %v3008, 1
        %vm3014 = vcmp.gt.s32.totalorder %v3013, 0
        %v3015 = vsel %vm3014, %v3013, 0
        %v3016 = vshrl.u32 %v3015, 5
        %v3017 = vand.u32 %v3015, 31
        %v3018 = vsub.s32 32, %v3017
        %v3019 = vshrl.u32 683565275, %v3018
        %v3020 = vshll.u32 683565275, %v3017
        %v3021 = vshrl.u32 2475754826, %v3018
        %v3022 = vor.u32 %v3020, %v3021
        %v3023 = vshll.u32 2475754826, %v3017
        %v3024 = vshrl.u32 2131351028, %v3018
        %v3025 = vor.u32 %v3023, %v3024
        %v3026 = vshll.u32 2131351028, %v3017
        %v3027 = vshrl.u32 2102212464, %v3018
        %v3028 = vor.u32 %v3026, %v3027
        %v3029 = vshll.u32 2102212464, %v3017
        %v3030 = vshrl.u32 920167782, %v3018
        %v3031 = vor.u32 %v3029, %v3030
        %v3032 = vshll.u32 920167782, %v3017
        %v3033 = vshrl.u32 1326507024, %v3018
        %v3034 = vor.u32 %v3032, %v3033
        %vm3035 = vcmp.lt.s32.totalorder %v3016, 1
        %vm3036 = vcmp.lt.s32.totalorder %v3016, 2
        %vm3037 = vcmp.lt.s32.totalorder %v3016, 3
        %vm3038 = vcmp.lt.s32.totalorder %v3016, 4
        %v3039 = vsel %vm3035, %v3019, %v3022
        %v3040 = vsel %vm3038, %v3028, 2102212464
        %v3041 = vsel %vm3037, %v3025, %v3040
        %v3042 = vsel %vm3036, %v3039, %v3041
        %v3043 = vsel %vm3035, %v3022, %v3025
        %v3044 = vsel %vm3038, %v3031, 920167782
        %v3045 = vsel %vm3037, %v3028, %v3044
        %v3046 = vsel %vm3036, %v3043, %v3045
        %v3047 = vsel %vm3035, %v3025, %v3028
        %v3048 = vsel %vm3038, %v3034, 1326507024
        %v3049 = vsel %vm3037, %v3031, %v3048
        %v3050 = vsel %vm3036, %v3047, %v3049
        %v3051 = vshll.u32 %v3011, 8
        %v3052 = vmul.u32.u64.compose %v3051, %v3050
        %v3053 = vextract.low.u32 %v3052
        %v3054 = vextract.high.u32 %v3052
        %v3055 = vmul.u32.u64.compose %v3051, %v3046
        %v3056 = vextract.low.u32 %v3055
        %v3057 = vextract.high.u32 %v3055
        %v3058 = vmul.u32 %v3051, %v3042
        %v3059 = vadd.s32 %v3054, %v3056
        %vm3060 = vc.u32 %v3054, %v3056
        %v3061 = vadd.s32 %v3057, 1
        %v3062 = vsel %vm3060, %v3061, %v3057
        %v3063 = vadd.s32 %v3058, %v3062
        %v3064 = vadd.s32 %v3063, 536870912
        %v3065 = vshrl.u32 %v3064, 30
        %v3066 = vshll.u32 %v3065, 30
        %v3067 = vsub.s32 %v3063, %v3066
        %vm3068 = vcmp.lt.s32.totalorder %v3067, 0
        %v3069 = vsub.s32 0, %v3067
        %v3070 = vsel %vm3068, %v3069, %v3067
        %v3071 = vclz %v3070
        %v3072 = vsub.s32 %v3071, 2
        %vm3073 = vcmp.gt.s32.totalorder 0, %v3072
        %v3074 = vsel %vm3073, 0, %v3072
        %v3075 = vsub.s32 32, %v3074
        %v3076 = vshll.u32 %v3067, %v3074
        %v3077 = vshrl.u32 %v3059, %v3075
        %v3078 = vor.u32 %v3076, %v3077
        %v3079 = vsub.s32 4294967266, %v3074
        %v3080 = vadd.s32 %v3079, 127
        %v3081 = vshll.u32 %v3080, 23
        %v3082 = vor.u32 4788187, %v3081
        %v3083 = vand.u32 2147483647, %v3082
        %v3085 = vcvt.s32.f32 %v3078
        %v3086 = vmul.f32 %v3085, %v3083
        %v3087 = vxor.u32 %v3086, 2147483648
        %v3088 = vsel %vm3005, %v3087, %v3086
        %v3089 = vsub.s32 4, %v3065
        %v3090 = vsel %vm3005, %v3089, %v3065
        %v3091 = vsel %vm3004, %v577, %v3088
        %v3092 = vsel %vm3004, 0, %v3090
        %v3093 = vcosq.f32.pop %v3091
        %v3094 = vsinq.f32.pop %v3091
        %vm3095 = vweird.f32 %v577
        %v3096 = vand.u32 %v3092, 3
        %vm3097 = vcmp.lt.s32.totalorder %v3096, 2
        %vm3098 = vcmp.eq.s32.totalorder %v3096, 0
        %v3099 = vxor.u32 %v3094, 2147483648
        %v3100 = vsel %vm3098, %v3093, %v3099
        %vm3101 = vcmp.eq.s32.totalorder %v3096, 2
        %v3102 = vxor.u32 %v3093, 2147483648
        %v3103 = vsel %vm3101, %v3102, %v3094
        %v3104 = vsel %vm3097, %v3100, %v3103
        %v3105 = vsel %vm3095, nan, %v3104
        %v3106 = vand.u32 2147483647, %v584
        %vm3107 = vcmp.le.f32.partialorder %v3106, 0.7853982
        %vm3108 = vcmp.lt.s32.totalorder %v584, 0
        %v3109 = vand.u32 %v584, 2139095040
        %v3110 = vshrl.u32 %v3109, 23
        %v3111 = vsub.s32 %v3110, 127
        %v3112 = vand.u32 2147483647, %v584
        %v3113 = vand.u32 %v3112, 8388607
        %v3114 = vor.u32 %v3113, 8388608
        %v3115 = vsub.s32 0, %v3114
        %v3116 = vadd.s32 %v3111, 1
        %vm3117 = vcmp.gt.s32.totalorder %v3116, 0
        %v3118 = vsel %vm3117, %v3116, 0
        %v3119 = vshrl.u32 %v3118, 5
        %v3120 = vand.u32 %v3118, 31
        %v3121 = vsub.s32 32, %v3120
        %v3122 = vshrl.u32 683565275, %v3121
        %v3123 = vshll.u32 683565275, %v3120
        %v3124 = vshrl.u32 2475754826, %v3121
        %v3125 = vor.u32 %v3123, %v3124
        %v3126 = vshll.u32 2475754826, %v3120
        %v3127 = vshrl.u32 2131351028, %v3121
        %v3128 = vor.u32 %v3126, %v3127
        %v3129 = vshll.u32 2131351028, %v3120
        %v3130 = vshrl.u32 2102212464, %v3121
        %v3131 = vor.u32 %v3129, %v3130
        %v3132 = vshll.u32 2102212464, %v3120
        %v3133 = vshrl.u32 920167782, %v3121
        %v3134 = vor.u32 %v3132, %v3133
        %v3135 = vshll.u32 920167782, %v3120
        %v3136 = vshrl.u32 1326507024, %v3121
        %v3137 = vor.u32 %v3135, %v3136
        %vm3138 = vcmp.lt.s32.totalorder %v3119, 1
        %vm3139 = vcmp.lt.s32.totalorder %v3119, 2
        %vm3140 = vcmp.lt.s32.totalorder %v3119, 3
        %vm3141 = vcmp.lt.s32.totalorder %v3119, 4
        %v3142 = vsel %vm3138, %v3122, %v3125
        %v3143 = vsel %vm3141, %v3131, 2102212464
        %v3144 = vsel %vm3140, %v3128, %v3143
        %v3145 = vsel %vm3139, %v3142, %v3144
        %v3146 = vsel %vm3138, %v3125, %v3128
        %v3147 = vsel %vm3141, %v3134, 920167782
        %v3148 = vsel %vm3140, %v3131, %v3147
        %v3149 = vsel %vm3139, %v3146, %v3148
        %v3150 = vsel %vm3138, %v3128, %v3131
        %v3151 = vsel %vm3141, %v3137, 1326507024
        %v3152 = vsel %vm3140, %v3134, %v3151
        %v3153 = vsel %vm3139, %v3150, %v3152
        %v3154 = vshll.u32 %v3114, 8
        %v3155 = vmul.u32.u64.compose %v3154, %v3153
        %v3156 = vextract.low.u32 %v3155
        %v3157 = vextract.high.u32 %v3155
        %v3158 = vmul.u32.u64.compose %v3154, %v3149
        %v3159 = vextract.low.u32 %v3158
        %v3160 = vextract.high.u32 %v3158
        %v3161 = vmul.u32 %v3154, %v3145
        %v3162 = vadd.s32 %v3157, %v3159
        %vm3163 = vc.u32 %v3157, %v3159
        %v3164 = vadd.s32 %v3160, 1
        %v3165 = vsel %vm3163, %v3164, %v3160
        %v3166 = vadd.s32 %v3161, %v3165
        %v3167 = vadd.s32 %v3166, 536870912
        %v3168 = vshrl.u32 %v3167, 30
        %v3169 = vshll.u32 %v3168, 30
        %v3170 = vsub.s32 %v3166, %v3169
        %vm3171 = vcmp.lt.s32.totalorder %v3170, 0
        %v3172 = vsub.s32 0, %v3170
        %v3173 = vsel %vm3171, %v3172, %v3170
        %v3174 = vclz %v3173
        %v3175 = vsub.s32 %v3174, 2
        %vm3176 = vcmp.gt.s32.totalorder 0, %v3175
        %v3177 = vsel %vm3176, 0, %v3175
        %v3178 = vsub.s32 32, %v3177
        %v3179 = vshll.u32 %v3170, %v3177
        %v3180 = vshrl.u32 %v3162, %v3178
        %v3181 = vor.u32 %v3179, %v3180
        %v3182 = vsub.s32 4294967266, %v3177
        %v3183 = vadd.s32 %v3182, 127
        %v3184 = vshll.u32 %v3183, 23
        %v3185 = vor.u32 4788187, %v3184
        %v3186 = vand.u32 2147483647, %v3185
        %v3188 = vcvt.s32.f32 %v3181
        %v3189 = vmul.f32 %v3188, %v3186
        %v3190 = vxor.u32 %v3189, 2147483648
        %v3191 = vsel %vm3108, %v3190, %v3189
        %v3192 = vsub.s32 4, %v3168
        %v3193 = vsel %vm3108, %v3192, %v3168
        %v3194 = vsel %vm3107, %v584, %v3191
        %v3195 = vsel %vm3107, 0, %v3193
        %v3196 = vcosq.f32.pop %v3194
        %v3197 = vsinq.f32.pop %v3194
        %vm3198 = vweird.f32 %v584
        %v3199 = vand.u32 %v3195, 3
        %vm3200 = vcmp.lt.s32.totalorder %v3199, 2
        %vm3201 = vcmp.eq.s32.totalorder %v3199, 0
        %v3202 = vxor.u32 %v3197, 2147483648
        %v3203 = vsel %vm3201, %v3196, %v3202
        %vm3204 = vcmp.eq.s32.totalorder %v3199, 2
        %v3205 = vxor.u32 %v3196, 2147483648
        %v3206 = vsel %vm3204, %v3205, %v3197
        %v3207 = vsel %vm3200, %v3203, %v3206
        %v3208 = vsel %vm3198, nan, %v3207
        %v3209 = vand.u32 2147483647, %v591
        %vm3210 = vcmp.le.f32.partialorder %v3209, 0.7853982
        %vm3211 = vcmp.lt.s32.totalorder %v591, 0
        %v3212 = vand.u32 %v591, 2139095040
        %v3213 = vshrl.u32 %v3212, 23
        %v3214 = vsub.s32 %v3213, 127
        %v3215 = vand.u32 2147483647, %v591
        %v3216 = vand.u32 %v3215, 8388607
        %v3217 = vor.u32 %v3216, 8388608
        %v3218 = vsub.s32 0, %v3217
        %v3219 = vadd.s32 %v3214, 1
        %vm3220 = vcmp.gt.s32.totalorder %v3219, 0
        %v3221 = vsel %vm3220, %v3219, 0
        %v3222 = vshrl.u32 %v3221, 5
        %v3223 = vand.u32 %v3221, 31
        %v3224 = vsub.s32 32, %v3223
        %v3225 = vshrl.u32 683565275, %v3224
        %v3226 = vshll.u32 683565275, %v3223
        %v3227 = vshrl.u32 2475754826, %v3224
        %v3228 = vor.u32 %v3226, %v3227
        %v3229 = vshll.u32 2475754826, %v3223
        %v3230 = vshrl.u32 2131351028, %v3224
        %v3231 = vor.u32 %v3229, %v3230
        %v3232 = vshll.u32 2131351028, %v3223
        %v3233 = vshrl.u32 2102212464, %v3224
        %v3234 = vor.u32 %v3232, %v3233
        %v3235 = vshll.u32 2102212464, %v3223
        %v3236 = vshrl.u32 920167782, %v3224
        %v3237 = vor.u32 %v3235, %v3236
        %v3238 = vshll.u32 920167782, %v3223
        %v3239 = vshrl.u32 1326507024, %v3224
        %v3240 = vor.u32 %v3238, %v3239
        %vm3241 = vcmp.lt.s32.totalorder %v3222, 1
        %vm3242 = vcmp.lt.s32.totalorder %v3222, 2
        %vm3243 = vcmp.lt.s32.totalorder %v3222, 3
        %vm3244 = vcmp.lt.s32.totalorder %v3222, 4
        %v3245 = vsel %vm3241, %v3225, %v3228
        %v3246 = vsel %vm3244, %v3234, 2102212464
        %v3247 = vsel %vm3243, %v3231, %v3246
        %v3248 = vsel %vm3242, %v3245, %v3247
        %v3249 = vsel %vm3241, %v3228, %v3231
        %v3250 = vsel %vm3244, %v3237, 920167782
        %v3251 = vsel %vm3243, %v3234, %v3250
        %v3252 = vsel %vm3242, %v3249, %v3251
        %v3253 = vsel %vm3241, %v3231, %v3234
        %v3254 = vsel %vm3244, %v3240, 1326507024
        %v3255 = vsel %vm3243, %v3237, %v3254
        %v3256 = vsel %vm3242, %v3253, %v3255
        %v3257 = vshll.u32 %v3217, 8
        %v3258 = vmul.u32.u64.compose %v3257, %v3256
        %v3259 = vextract.low.u32 %v3258
        %v3260 = vextract.high.u32 %v3258
        %v3261 = vmul.u32.u64.compose %v3257, %v3252
        %v3262 = vextract.low.u32 %v3261
        %v3263 = vextract.high.u32 %v3261
        %v3264 = vmul.u32 %v3257, %v3248
        %v3265 = vadd.s32 %v3260, %v3262
        %vm3266 = vc.u32 %v3260, %v3262
        %v3267 = vadd.s32 %v3263, 1
        %v3268 = vsel %vm3266, %v3267, %v3263
        %v3269 = vadd.s32 %v3264, %v3268
        %v3270 = vadd.s32 %v3269, 536870912
        %v3271 = vshrl.u32 %v3270, 30
        %v3272 = vshll.u32 %v3271, 30
        %v3273 = vsub.s32 %v3269, %v3272
        %vm3274 = vcmp.lt.s32.totalorder %v3273, 0
        %v3275 = vsub.s32 0, %v3273
        %v3276 = vsel %vm3274, %v3275, %v3273
        %v3277 = vclz %v3276
        %v3278 = vsub.s32 %v3277, 2
        %vm3279 = vcmp.gt.s32.totalorder 0, %v3278
        %v3280 = vsel %vm3279, 0, %v3278
        %v3281 = vsub.s32 32, %v3280
        %v3282 = vshll.u32 %v3273, %v3280
        %v3283 = vshrl.u32 %v3265, %v3281
        %v3284 = vor.u32 %v3282, %v3283
        %v3285 = vsub.s32 4294967266, %v3280
        %v3286 = vadd.s32 %v3285, 127
        %v3287 = vshll.u32 %v3286, 23
        %v3288 = vor.u32 4788187, %v3287
        %v3289 = vand.u32 2147483647, %v3288
        %v3291 = vcvt.s32.f32 %v3284
        %v3292 = vmul.f32 %v3291, %v3289
        %v3293 = vxor.u32 %v3292, 2147483648
        %v3294 = vsel %vm3211, %v3293, %v3292
        %v3295 = vsub.s32 4, %v3271
        %v3296 = vsel %vm3211, %v3295, %v3271
        %v3297 = vsel %vm3210, %v591, %v3294
        %v3298 = vsel %vm3210, 0, %v3296
        %v3299 = vcosq.f32.pop %v3297
        %v3300 = vsinq.f32.pop %v3297
        %vm3301 = vweird.f32 %v591
        %v3302 = vand.u32 %v3298, 3
        %vm3303 = vcmp.lt.s32.totalorder %v3302, 2
        %vm3304 = vcmp.eq.s32.totalorder %v3302, 0
        %v3305 = vxor.u32 %v3300, 2147483648
        %v3306 = vsel %vm3304, %v3299, %v3305
        %vm3307 = vcmp.eq.s32.totalorder %v3302, 2
        %v3308 = vxor.u32 %v3299, 2147483648
        %v3309 = vsel %vm3307, %v3308, %v3300
        %v3310 = vsel %vm3303, %v3306, %v3309
        %v3311 = vsel %vm3301, nan, %v3310
        %v3312 = vand.u32 2147483647, %v598
        %vm3313 = vcmp.le.f32.partialorder %v3312, 0.7853982
        %vm3314 = vcmp.lt.s32.totalorder %v598, 0
        %v3315 = vand.u32 %v598, 2139095040
        %v3316 = vshrl.u32 %v3315, 23
        %v3317 = vsub.s32 %v3316, 127
        %v3318 = vand.u32 2147483647, %v598
        %v3319 = vand.u32 %v3318, 8388607
        %v3320 = vor.u32 %v3319, 8388608
        %v3321 = vsub.s32 0, %v3320
        %v3322 = vadd.s32 %v3317, 1
        %vm3323 = vcmp.gt.s32.totalorder %v3322, 0
        %v3324 = vsel %vm3323, %v3322, 0
        %v3325 = vshrl.u32 %v3324, 5
        %v3326 = vand.u32 %v3324, 31
        %v3327 = vsub.s32 32, %v3326
        %v3328 = vshrl.u32 683565275, %v3327
        %v3329 = vshll.u32 683565275, %v3326
        %v3330 = vshrl.u32 2475754826, %v3327
        %v3331 = vor.u32 %v3329, %v3330
        %v3332 = vshll.u32 2475754826, %v3326
        %v3333 = vshrl.u32 2131351028, %v3327
        %v3334 = vor.u32 %v3332, %v3333
        %v3335 = vshll.u32 2131351028, %v3326
        %v3336 = vshrl.u32 2102212464, %v3327
        %v3337 = vor.u32 %v3335, %v3336
        %v3338 = vshll.u32 2102212464, %v3326
        %v3339 = vshrl.u32 920167782, %v3327
        %v3340 = vor.u32 %v3338, %v3339
        %v3341 = vshll.u32 920167782, %v3326
        %v3342 = vshrl.u32 1326507024, %v3327
        %v3343 = vor.u32 %v3341, %v3342
        %vm3344 = vcmp.lt.s32.totalorder %v3325, 1
        %vm3345 = vcmp.lt.s32.totalorder %v3325, 2
        %vm3346 = vcmp.lt.s32.totalorder %v3325, 3
        %vm3347 = vcmp.lt.s32.totalorder %v3325, 4
        %v3348 = vsel %vm3344, %v3328, %v3331
        %v3349 = vsel %vm3347, %v3337, 2102212464
        %v3350 = vsel %vm3346, %v3334, %v3349
        %v3351 = vsel %vm3345, %v3348, %v3350
        %v3352 = vsel %vm3344, %v3331, %v3334
        %v3353 = vsel %vm3347, %v3340, 920167782
        %v3354 = vsel %vm3346, %v3337, %v3353
        %v3355 = vsel %vm3345, %v3352, %v3354
        %v3356 = vsel %vm3344, %v3334, %v3337
        %v3357 = vsel %vm3347, %v3343, 1326507024
        %v3358 = vsel %vm3346, %v3340, %v3357
        %v3359 = vsel %vm3345, %v3356, %v3358
        %v3360 = vshll.u32 %v3320, 8
        %v3361 = vmul.u32.u64.compose %v3360, %v3359
        %v3362 = vextract.low.u32 %v3361
        %v3363 = vextract.high.u32 %v3361
        %v3364 = vmul.u32.u64.compose %v3360, %v3355
        %v3365 = vextract.low.u32 %v3364
        %v3366 = vextract.high.u32 %v3364
        %v3367 = vmul.u32 %v3360, %v3351
        %v3368 = vadd.s32 %v3363, %v3365
        %vm3369 = vc.u32 %v3363, %v3365
        %v3370 = vadd.s32 %v3366, 1
        %v3371 = vsel %vm3369, %v3370, %v3366
        %v3372 = vadd.s32 %v3367, %v3371
        %v3373 = vadd.s32 %v3372, 536870912
        %v3374 = vshrl.u32 %v3373, 30
        %v3375 = vshll.u32 %v3374, 30
        %v3376 = vsub.s32 %v3372, %v3375
        %vm3377 = vcmp.lt.s32.totalorder %v3376, 0
        %v3378 = vsub.s32 0, %v3376
        %v3379 = vsel %vm3377, %v3378, %v3376
        %v3380 = vclz %v3379
        %v3381 = vsub.s32 %v3380, 2
        %vm3382 = vcmp.gt.s32.totalorder 0, %v3381
        %v3383 = vsel %vm3382, 0, %v3381
        %v3384 = vsub.s32 32, %v3383
        %v3385 = vshll.u32 %v3376, %v3383
        %v3386 = vshrl.u32 %v3368, %v3384
        %v3387 = vor.u32 %v3385, %v3386
        %v3388 = vsub.s32 4294967266, %v3383
        %v3389 = vadd.s32 %v3388, 127
        %v3390 = vshll.u32 %v3389, 23
        %v3391 = vor.u32 4788187, %v3390
        %v3392 = vand.u32 2147483647, %v3391
        %v3394 = vcvt.s32.f32 %v3387
        %v3395 = vmul.f32 %v3394, %v3392
        %v3396 = vxor.u32 %v3395, 2147483648
        %v3397 = vsel %vm3314, %v3396, %v3395
        %v3398 = vsub.s32 4, %v3374
        %v3399 = vsel %vm3314, %v3398, %v3374
        %v3400 = vsel %vm3313, %v598, %v3397
        %v3401 = vsel %vm3313, 0, %v3399
        %v3402 = vcosq.f32.pop %v3400
        %v3403 = vsinq.f32.pop %v3400
        %vm3404 = vweird.f32 %v598
        %v3405 = vand.u32 %v3401, 3
        %vm3406 = vcmp.lt.s32.totalorder %v3405, 2
        %vm3407 = vcmp.eq.s32.totalorder %v3405, 0
        %v3408 = vxor.u32 %v3403, 2147483648
        %v3409 = vsel %vm3407, %v3402, %v3408
        %vm3410 = vcmp.eq.s32.totalorder %v3405, 2
        %v3411 = vxor.u32 %v3402, 2147483648
        %v3412 = vsel %vm3410, %v3411, %v3403
        %v3413 = vsel %vm3406, %v3409, %v3412
        %v3414 = vsel %vm3404, nan, %v3413
        %v3415 = vand.u32 2147483647, %v605
        %vm3416 = vcmp.le.f32.partialorder %v3415, 0.7853982
        %vm3417 = vcmp.lt.s32.totalorder %v605, 0
        %v3418 = vand.u32 %v605, 2139095040
        %v3419 = vshrl.u32 %v3418, 23
        %v3420 = vsub.s32 %v3419, 127
        %v3421 = vand.u32 2147483647, %v605
        %v3422 = vand.u32 %v3421, 8388607
        %v3423 = vor.u32 %v3422, 8388608
        %v3424 = vsub.s32 0, %v3423
        %v3425 = vadd.s32 %v3420, 1
        %vm3426 = vcmp.gt.s32.totalorder %v3425, 0
        %v3427 = vsel %vm3426, %v3425, 0
        %v3428 = vshrl.u32 %v3427, 5
        %v3429 = vand.u32 %v3427, 31
        %v3430 = vsub.s32 32, %v3429
        %v3431 = vshrl.u32 683565275, %v3430
        %v3432 = vshll.u32 683565275, %v3429
        %v3433 = vshrl.u32 2475754826, %v3430
        %v3434 = vor.u32 %v3432, %v3433
        %v3435 = vshll.u32 2475754826, %v3429
        %v3436 = vshrl.u32 2131351028, %v3430
        %v3437 = vor.u32 %v3435, %v3436
        %v3438 = vshll.u32 2131351028, %v3429
        %v3439 = vshrl.u32 2102212464, %v3430
        %v3440 = vor.u32 %v3438, %v3439
        %v3441 = vshll.u32 2102212464, %v3429
        %v3442 = vshrl.u32 920167782, %v3430
        %v3443 = vor.u32 %v3441, %v3442
        %v3444 = vshll.u32 920167782, %v3429
        %v3445 = vshrl.u32 1326507024, %v3430
        %v3446 = vor.u32 %v3444, %v3445
        %vm3447 = vcmp.lt.s32.totalorder %v3428, 1
        %vm3448 = vcmp.lt.s32.totalorder %v3428, 2
        %vm3449 = vcmp.lt.s32.totalorder %v3428, 3
        %vm3450 = vcmp.lt.s32.totalorder %v3428, 4
        %v3451 = vsel %vm3447, %v3431, %v3434
        %v3452 = vsel %vm3450, %v3440, 2102212464
        %v3453 = vsel %vm3449, %v3437, %v3452
        %v3454 = vsel %vm3448, %v3451, %v3453
        %v3455 = vsel %vm3447, %v3434, %v3437
        %v3456 = vsel %vm3450, %v3443, 920167782
        %v3457 = vsel %vm3449, %v3440, %v3456
        %v3458 = vsel %vm3448, %v3455, %v3457
        %v3459 = vsel %vm3447, %v3437, %v3440
        %v3460 = vsel %vm3450, %v3446, 1326507024
        %v3461 = vsel %vm3449, %v3443, %v3460
        %v3462 = vsel %vm3448, %v3459, %v3461
        %v3463 = vshll.u32 %v3423, 8
        %v3464 = vmul.u32.u64.compose %v3463, %v3462
        %v3465 = vextract.low.u32 %v3464
        %v3466 = vextract.high.u32 %v3464
        %v3467 = vmul.u32.u64.compose %v3463, %v3458
        %v3468 = vextract.low.u32 %v3467
        %v3469 = vextract.high.u32 %v3467
        %v3470 = vmul.u32 %v3463, %v3454
        %v3471 = vadd.s32 %v3466, %v3468
        %vm3472 = vc.u32 %v3466, %v3468
        %v3473 = vadd.s32 %v3469, 1
        %v3474 = vsel %vm3472, %v3473, %v3469
        %v3475 = vadd.s32 %v3470, %v3474
        %v3476 = vadd.s32 %v3475, 536870912
        %v3477 = vshrl.u32 %v3476, 30
        %v3478 = vshll.u32 %v3477, 30
        %v3479 = vsub.s32 %v3475, %v3478
        %vm3480 = vcmp.lt.s32.totalorder %v3479, 0
        %v3481 = vsub.s32 0, %v3479
        %v3482 = vsel %vm3480, %v3481, %v3479
        %v3483 = vclz %v3482
        %v3484 = vsub.s32 %v3483, 2
        %vm3485 = vcmp.gt.s32.totalorder 0, %v3484
        %v3486 = vsel %vm3485, 0, %v3484
        %v3487 = vsub.s32 32, %v3486
        %v3488 = vshll.u32 %v3479, %v3486
        %v3489 = vshrl.u32 %v3471, %v3487
        %v3490 = vor.u32 %v3488, %v3489
        %v3491 = vsub.s32 4294967266, %v3486
        %v3492 = vadd.s32 %v3491, 127
        %v3493 = vshll.u32 %v3492, 23
        %v3494 = vor.u32 4788187, %v3493
        %v3495 = vand.u32 2147483647, %v3494
        %v3497 = vcvt.s32.f32 %v3490
        %v3498 = vmul.f32 %v3497, %v3495
        %v3499 = vxor.u32 %v3498, 2147483648
        %v3500 = vsel %vm3417, %v3499, %v3498
        %v3501 = vsub.s32 4, %v3477
        %v3502 = vsel %vm3417, %v3501, %v3477
        %v3503 = vsel %vm3416, %v605, %v3500
        %v3504 = vsel %vm3416, 0, %v3502
        %v3505 = vcosq.f32.pop %v3503
        %v3506 = vsinq.f32.pop %v3503
        %vm3507 = vweird.f32 %v605
        %v3508 = vand.u32 %v3504, 3
        %vm3509 = vcmp.lt.s32.totalorder %v3508, 2
        %vm3510 = vcmp.eq.s32.totalorder %v3508, 0
        %v3511 = vxor.u32 %v3506, 2147483648
        %v3512 = vsel %vm3510, %v3505, %v3511
        %vm3513 = vcmp.eq.s32.totalorder %v3508, 2
        %v3514 = vxor.u32 %v3505, 2147483648
        %v3515 = vsel %vm3513, %v3514, %v3506
        %v3516 = vsel %vm3509, %v3512, %v3515
        %v3517 = vsel %vm3507, nan, %v3516
        %v3518 = vand.u32 2147483647, %v612
        %vm3519 = vcmp.le.f32.partialorder %v3518, 0.7853982
        %vm3520 = vcmp.lt.s32.totalorder %v612, 0
        %v3521 = vand.u32 %v612, 2139095040
        %v3522 = vshrl.u32 %v3521, 23
        %v3523 = vsub.s32 %v3522, 127
        %v3524 = vand.u32 2147483647, %v612
        %v3525 = vand.u32 %v3524, 8388607
        %v3526 = vor.u32 %v3525, 8388608
        %v3527 = vsub.s32 0, %v3526
        %v3528 = vadd.s32 %v3523, 1
        %vm3529 = vcmp.gt.s32.totalorder %v3528, 0
        %v3530 = vsel %vm3529, %v3528, 0
        %v3531 = vshrl.u32 %v3530, 5
        %v3532 = vand.u32 %v3530, 31
        %v3533 = vsub.s32 32, %v3532
        %v3534 = vshrl.u32 683565275, %v3533
        %v3535 = vshll.u32 683565275, %v3532
        %v3536 = vshrl.u32 2475754826, %v3533
        %v3537 = vor.u32 %v3535, %v3536
        %v3538 = vshll.u32 2475754826, %v3532
        %v3539 = vshrl.u32 2131351028, %v3533
        %v3540 = vor.u32 %v3538, %v3539
        %v3541 = vshll.u32 2131351028, %v3532
        %v3542 = vshrl.u32 2102212464, %v3533
        %v3543 = vor.u32 %v3541, %v3542
        %v3544 = vshll.u32 2102212464, %v3532
        %v3545 = vshrl.u32 920167782, %v3533
        %v3546 = vor.u32 %v3544, %v3545
        %v3547 = vshll.u32 920167782, %v3532
        %v3548 = vshrl.u32 1326507024, %v3533
        %v3549 = vor.u32 %v3547, %v3548
        %vm3550 = vcmp.lt.s32.totalorder %v3531, 1
        %vm3551 = vcmp.lt.s32.totalorder %v3531, 2
        %vm3552 = vcmp.lt.s32.totalorder %v3531, 3
        %vm3553 = vcmp.lt.s32.totalorder %v3531, 4
        %v3554 = vsel %vm3550, %v3534, %v3537
        %v3555 = vsel %vm3553, %v3543, 2102212464
        %v3556 = vsel %vm3552, %v3540, %v3555
        %v3557 = vsel %vm3551, %v3554, %v3556
        %v3558 = vsel %vm3550, %v3537, %v3540
        %v3559 = vsel %vm3553, %v3546, 920167782
        %v3560 = vsel %vm3552, %v3543, %v3559
        %v3561 = vsel %vm3551, %v3558, %v3560
        %v3562 = vsel %vm3550, %v3540, %v3543
        %v3563 = vsel %vm3553, %v3549, 1326507024
        %v3564 = vsel %vm3552, %v3546, %v3563
        %v3565 = vsel %vm3551, %v3562, %v3564
        %v3566 = vshll.u32 %v3526, 8
        %v3567 = vmul.u32.u64.compose %v3566, %v3565
        %v3568 = vextract.low.u32 %v3567
        %v3569 = vextract.high.u32 %v3567
        %v3570 = vmul.u32.u64.compose %v3566, %v3561
        %v3571 = vextract.low.u32 %v3570
        %v3572 = vextract.high.u32 %v3570
        %v3573 = vmul.u32 %v3566, %v3557
        %v3574 = vadd.s32 %v3569, %v3571
        %vm3575 = vc.u32 %v3569, %v3571
        %v3576 = vadd.s32 %v3572, 1
        %v3577 = vsel %vm3575, %v3576, %v3572
        %v3578 = vadd.s32 %v3573, %v3577
        %v3579 = vadd.s32 %v3578, 536870912
        %v3580 = vshrl.u32 %v3579, 30
        %v3581 = vshll.u32 %v3580, 30
        %v3582 = vsub.s32 %v3578, %v3581
        %vm3583 = vcmp.lt.s32.totalorder %v3582, 0
        %v3584 = vsub.s32 0, %v3582
        %v3585 = vsel %vm3583, %v3584, %v3582
        %v3586 = vclz %v3585
        %v3587 = vsub.s32 %v3586, 2
        %vm3588 = vcmp.gt.s32.totalorder 0, %v3587
        %v3589 = vsel %vm3588, 0, %v3587
        %v3590 = vsub.s32 32, %v3589
        %v3591 = vshll.u32 %v3582, %v3589
        %v3592 = vshrl.u32 %v3574, %v3590
        %v3593 = vor.u32 %v3591, %v3592
        %v3594 = vsub.s32 4294967266, %v3589
        %v3595 = vadd.s32 %v3594, 127
        %v3596 = vshll.u32 %v3595, 23
        %v3597 = vor.u32 4788187, %v3596
        %v3598 = vand.u32 2147483647, %v3597
        %v3600 = vcvt.s32.f32 %v3593
        %v3601 = vmul.f32 %v3600, %v3598
        %v3602 = vxor.u32 %v3601, 2147483648
        %v3603 = vsel %vm3520, %v3602, %v3601
        %v3604 = vsub.s32 4, %v3580
        %v3605 = vsel %vm3520, %v3604, %v3580
        %v3606 = vsel %vm3519, %v612, %v3603
        %v3607 = vsel %vm3519, 0, %v3605
        %v3608 = vcosq.f32.pop %v3606
        %v3609 = vsinq.f32.pop %v3606
        %vm3610 = vweird.f32 %v612
        %v3611 = vand.u32 %v3607, 3
        %vm3612 = vcmp.lt.s32.totalorder %v3611, 2
        %vm3613 = vcmp.eq.s32.totalorder %v3611, 0
        %v3614 = vxor.u32 %v3609, 2147483648
        %v3615 = vsel %vm3613, %v3608, %v3614
        %vm3616 = vcmp.eq.s32.totalorder %v3611, 2
        %v3617 = vxor.u32 %v3608, 2147483648
        %v3618 = vsel %vm3616, %v3617, %v3609
        %v3619 = vsel %vm3612, %v3615, %v3618
        %v3620 = vsel %vm3610, nan, %v3619
        %v3621 = vand.u32 2147483647, %v619
        %vm3622 = vcmp.le.f32.partialorder %v3621, 0.7853982
        %vm3623 = vcmp.lt.s32.totalorder %v619, 0
        %v3624 = vand.u32 %v619, 2139095040
        %v3625 = vshrl.u32 %v3624, 23
        %v3626 = vsub.s32 %v3625, 127
        %v3627 = vand.u32 2147483647, %v619
        %v3628 = vand.u32 %v3627, 8388607
        %v3629 = vor.u32 %v3628, 8388608
        %v3630 = vsub.s32 0, %v3629
        %v3631 = vadd.s32 %v3626, 1
        %vm3632 = vcmp.gt.s32.totalorder %v3631, 0
        %v3633 = vsel %vm3632, %v3631, 0
        %v3634 = vshrl.u32 %v3633, 5
        %v3635 = vand.u32 %v3633, 31
        %v3636 = vsub.s32 32, %v3635
        %v3637 = vshrl.u32 683565275, %v3636
        %v3638 = vshll.u32 683565275, %v3635
        %v3639 = vshrl.u32 2475754826, %v3636
        %v3640 = vor.u32 %v3638, %v3639
        %v3641 = vshll.u32 2475754826, %v3635
        %v3642 = vshrl.u32 2131351028, %v3636
        %v3643 = vor.u32 %v3641, %v3642
        %v3644 = vshll.u32 2131351028, %v3635
        %v3645 = vshrl.u32 2102212464, %v3636
        %v3646 = vor.u32 %v3644, %v3645
        %v3647 = vshll.u32 2102212464, %v3635
        %v3648 = vshrl.u32 920167782, %v3636
        %v3649 = vor.u32 %v3647, %v3648
        %v3650 = vshll.u32 920167782, %v3635
        %v3651 = vshrl.u32 1326507024, %v3636
        %v3652 = vor.u32 %v3650, %v3651
        %vm3653 = vcmp.lt.s32.totalorder %v3634, 1
        %vm3654 = vcmp.lt.s32.totalorder %v3634, 2
        %vm3655 = vcmp.lt.s32.totalorder %v3634, 3
        %vm3656 = vcmp.lt.s32.totalorder %v3634, 4
        %v3657 = vsel %vm3653, %v3637, %v3640
        %v3658 = vsel %vm3656, %v3646, 2102212464
        %v3659 = vsel %vm3655, %v3643, %v3658
        %v3660 = vsel %vm3654, %v3657, %v3659
        %v3661 = vsel %vm3653, %v3640, %v3643
        %v3662 = vsel %vm3656, %v3649, 920167782
        %v3663 = vsel %vm3655, %v3646, %v3662
        %v3664 = vsel %vm3654, %v3661, %v3663
        %v3665 = vsel %vm3653, %v3643, %v3646
        %v3666 = vsel %vm3656, %v3652, 1326507024
        %v3667 = vsel %vm3655, %v3649, %v3666
        %v3668 = vsel %vm3654, %v3665, %v3667
        %v3669 = vshll.u32 %v3629, 8
        %v3670 = vmul.u32.u64.compose %v3669, %v3668
        %v3671 = vextract.low.u32 %v3670
        %v3672 = vextract.high.u32 %v3670
        %v3673 = vmul.u32.u64.compose %v3669, %v3664
        %v3674 = vextract.low.u32 %v3673
        %v3675 = vextract.high.u32 %v3673
        %v3676 = vmul.u32 %v3669, %v3660
        %v3677 = vadd.s32 %v3672, %v3674
        %vm3678 = vc.u32 %v3672, %v3674
        %v3679 = vadd.s32 %v3675, 1
        %v3680 = vsel %vm3678, %v3679, %v3675
        %v3681 = vadd.s32 %v3676, %v3680
        %v3682 = vadd.s32 %v3681, 536870912
        %v3683 = vshrl.u32 %v3682, 30
        %v3684 = vshll.u32 %v3683, 30
        %v3685 = vsub.s32 %v3681, %v3684
        %vm3686 = vcmp.lt.s32.totalorder %v3685, 0
        %v3687 = vsub.s32 0, %v3685
        %v3688 = vsel %vm3686, %v3687, %v3685
        %v3689 = vclz %v3688
        %v3690 = vsub.s32 %v3689, 2
        %vm3691 = vcmp.gt.s32.totalorder 0, %v3690
        %v3692 = vsel %vm3691, 0, %v3690
        %v3693 = vsub.s32 32, %v3692
        %v3694 = vshll.u32 %v3685, %v3692
        %v3695 = vshrl.u32 %v3677, %v3693
        %v3696 = vor.u32 %v3694, %v3695
        %v3697 = vsub.s32 4294967266, %v3692
        %v3698 = vadd.s32 %v3697, 127
        %v3699 = vshll.u32 %v3698, 23
        %v3700 = vor.u32 4788187, %v3699
        %v3701 = vand.u32 2147483647, %v3700
        %v3703 = vcvt.s32.f32 %v3696
        %v3704 = vmul.f32 %v3703, %v3701
        %v3705 = vxor.u32 %v3704, 2147483648
        %v3706 = vsel %vm3623, %v3705, %v3704
        %v3707 = vsub.s32 4, %v3683
        %v3708 = vsel %vm3623, %v3707, %v3683
        %v3709 = vsel %vm3622, %v619, %v3706
        %v3710 = vsel %vm3622, 0, %v3708
        %v3711 = vcosq.f32.pop %v3709
        %v3712 = vsinq.f32.pop %v3709
        %vm3713 = vweird.f32 %v619
        %v3714 = vand.u32 %v3710, 3
        %vm3715 = vcmp.lt.s32.totalorder %v3714, 2
        %vm3716 = vcmp.eq.s32.totalorder %v3714, 0
        %v3717 = vxor.u32 %v3712, 2147483648
        %v3718 = vsel %vm3716, %v3711, %v3717
        %vm3719 = vcmp.eq.s32.totalorder %v3714, 2
        %v3720 = vxor.u32 %v3711, 2147483648
        %v3721 = vsel %vm3719, %v3720, %v3712
        %v3722 = vsel %vm3715, %v3718, %v3721
        %v3723 = vsel %vm3713, nan, %v3722
        %v3724 = vand.u32 2147483647, %v626
        %vm3725 = vcmp.le.f32.partialorder %v3724, 0.7853982
        %vm3726 = vcmp.lt.s32.totalorder %v626, 0
        %v3727 = vand.u32 %v626, 2139095040
        %v3728 = vshrl.u32 %v3727, 23
        %v3729 = vsub.s32 %v3728, 127
        %v3730 = vand.u32 2147483647, %v626
        %v3731 = vand.u32 %v3730, 8388607
        %v3732 = vor.u32 %v3731, 8388608
        %v3733 = vsub.s32 0, %v3732
        %v3734 = vadd.s32 %v3729, 1
        %vm3735 = vcmp.gt.s32.totalorder %v3734, 0
        %v3736 = vsel %vm3735, %v3734, 0
        %v3737 = vshrl.u32 %v3736, 5
        %v3738 = vand.u32 %v3736, 31
        %v3739 = vsub.s32 32, %v3738
        %v3740 = vshrl.u32 683565275, %v3739
        %v3741 = vshll.u32 683565275, %v3738
        %v3742 = vshrl.u32 2475754826, %v3739
        %v3743 = vor.u32 %v3741, %v3742
        %v3744 = vshll.u32 2475754826, %v3738
        %v3745 = vshrl.u32 2131351028, %v3739
        %v3746 = vor.u32 %v3744, %v3745
        %v3747 = vshll.u32 2131351028, %v3738
        %v3748 = vshrl.u32 2102212464, %v3739
        %v3749 = vor.u32 %v3747, %v3748
        %v3750 = vshll.u32 2102212464, %v3738
        %v3751 = vshrl.u32 920167782, %v3739
        %v3752 = vor.u32 %v3750, %v3751
        %v3753 = vshll.u32 920167782, %v3738
        %v3754 = vshrl.u32 1326507024, %v3739
        %v3755 = vor.u32 %v3753, %v3754
        %vm3756 = vcmp.lt.s32.totalorder %v3737, 1
        %vm3757 = vcmp.lt.s32.totalorder %v3737, 2
        %vm3758 = vcmp.lt.s32.totalorder %v3737, 3
        %vm3759 = vcmp.lt.s32.totalorder %v3737, 4
        %v3760 = vsel %vm3756, %v3740, %v3743
        %v3761 = vsel %vm3759, %v3749, 2102212464
        %v3762 = vsel %vm3758, %v3746, %v3761
        %v3763 = vsel %vm3757, %v3760, %v3762
        %v3764 = vsel %vm3756, %v3743, %v3746
        %v3765 = vsel %vm3759, %v3752, 920167782
        %v3766 = vsel %vm3758, %v3749, %v3765
        %v3767 = vsel %vm3757, %v3764, %v3766
        %v3768 = vsel %vm3756, %v3746, %v3749
        %v3769 = vsel %vm3759, %v3755, 1326507024
        %v3770 = vsel %vm3758, %v3752, %v3769
        %v3771 = vsel %vm3757, %v3768, %v3770
        %v3772 = vshll.u32 %v3732, 8
        %v3773 = vmul.u32.u64.compose %v3772, %v3771
        %v3774 = vextract.low.u32 %v3773
        %v3775 = vextract.high.u32 %v3773
        %v3776 = vmul.u32.u64.compose %v3772, %v3767
        %v3777 = vextract.low.u32 %v3776
        %v3778 = vextract.high.u32 %v3776
        %v3779 = vmul.u32 %v3772, %v3763
        %v3780 = vadd.s32 %v3775, %v3777
        %vm3781 = vc.u32 %v3775, %v3777
        %v3782 = vadd.s32 %v3778, 1
        %v3783 = vsel %vm3781, %v3782, %v3778
        %v3784 = vadd.s32 %v3779, %v3783
        %v3785 = vadd.s32 %v3784, 536870912
        %v3786 = vshrl.u32 %v3785, 30
        %v3787 = vshll.u32 %v3786, 30
        %v3788 = vsub.s32 %v3784, %v3787
        %vm3789 = vcmp.lt.s32.totalorder %v3788, 0
        %v3790 = vsub.s32 0, %v3788
        %v3791 = vsel %vm3789, %v3790, %v3788
        %v3792 = vclz %v3791
        %v3793 = vsub.s32 %v3792, 2
        %vm3794 = vcmp.gt.s32.totalorder 0, %v3793
        %v3795 = vsel %vm3794, 0, %v3793
        %v3796 = vsub.s32 32, %v3795
        %v3797 = vshll.u32 %v3788, %v3795
        %v3798 = vshrl.u32 %v3780, %v3796
        %v3799 = vor.u32 %v3797, %v3798
        %v3800 = vsub.s32 4294967266, %v3795
        %v3801 = vadd.s32 %v3800, 127
        %v3802 = vshll.u32 %v3801, 23
        %v3803 = vor.u32 4788187, %v3802
        %v3804 = vand.u32 2147483647, %v3803
        %v3806 = vcvt.s32.f32 %v3799
        %v3807 = vmul.f32 %v3806, %v3804
        %v3808 = vxor.u32 %v3807, 2147483648
        %v3809 = vsel %vm3726, %v3808, %v3807
        %v3810 = vsub.s32 4, %v3786
        %v3811 = vsel %vm3726, %v3810, %v3786
        %v3812 = vsel %vm3725, %v626, %v3809
        %v3813 = vsel %vm3725, 0, %v3811
        %v3814 = vcosq.f32.pop %v3812
        %v3815 = vsinq.f32.pop %v3812
        %vm3816 = vweird.f32 %v626
        %v3817 = vand.u32 %v3813, 3
        %vm3818 = vcmp.lt.s32.totalorder %v3817, 2
        %vm3819 = vcmp.eq.s32.totalorder %v3817, 0
        %v3820 = vxor.u32 %v3815, 2147483648
        %v3821 = vsel %vm3819, %v3814, %v3820
        %vm3822 = vcmp.eq.s32.totalorder %v3817, 2
        %v3823 = vxor.u32 %v3814, 2147483648
        %v3824 = vsel %vm3822, %v3823, %v3815
        %v3825 = vsel %vm3818, %v3821, %v3824
        %v3826 = vsel %vm3816, nan, %v3825
        %v3827 = vand.u32 2147483647, %v633
        %vm3828 = vcmp.le.f32.partialorder %v3827, 0.7853982
        %vm3829 = vcmp.lt.s32.totalorder %v633, 0
        %v3830 = vand.u32 %v633, 2139095040
        %v3831 = vshrl.u32 %v3830, 23
        %v3832 = vsub.s32 %v3831, 127
        %v3833 = vand.u32 2147483647, %v633
        %v3834 = vand.u32 %v3833, 8388607
        %v3835 = vor.u32 %v3834, 8388608
        %v3836 = vsub.s32 0, %v3835
        %v3837 = vadd.s32 %v3832, 1
        %vm3838 = vcmp.gt.s32.totalorder %v3837, 0
        %v3839 = vsel %vm3838, %v3837, 0
        %v3840 = vshrl.u32 %v3839, 5
        %v3841 = vand.u32 %v3839, 31
        %v3842 = vsub.s32 32, %v3841
        %v3843 = vshrl.u32 683565275, %v3842
        %v3844 = vshll.u32 683565275, %v3841
        %v3845 = vshrl.u32 2475754826, %v3842
        %v3846 = vor.u32 %v3844, %v3845
        %v3847 = vshll.u32 2475754826, %v3841
        %v3848 = vshrl.u32 2131351028, %v3842
        %v3849 = vor.u32 %v3847, %v3848
        %v3850 = vshll.u32 2131351028, %v3841
        %v3851 = vshrl.u32 2102212464, %v3842
        %v3852 = vor.u32 %v3850, %v3851
        %v3853 = vshll.u32 2102212464, %v3841
        %v3854 = vshrl.u32 920167782, %v3842
        %v3855 = vor.u32 %v3853, %v3854
        %v3856 = vshll.u32 920167782, %v3841
        %v3857 = vshrl.u32 1326507024, %v3842
        %v3858 = vor.u32 %v3856, %v3857
        %vm3859 = vcmp.lt.s32.totalorder %v3840, 1
        %vm3860 = vcmp.lt.s32.totalorder %v3840, 2
        %vm3861 = vcmp.lt.s32.totalorder %v3840, 3
        %vm3862 = vcmp.lt.s32.totalorder %v3840, 4
        %v3863 = vsel %vm3859, %v3843, %v3846
        %v3864 = vsel %vm3862, %v3852, 2102212464
        %v3865 = vsel %vm3861, %v3849, %v3864
        %v3866 = vsel %vm3860, %v3863, %v3865
        %v3867 = vsel %vm3859, %v3846, %v3849
        %v3868 = vsel %vm3862, %v3855, 920167782
        %v3869 = vsel %vm3861, %v3852, %v3868
        %v3870 = vsel %vm3860, %v3867, %v3869
        %v3871 = vsel %vm3859, %v3849, %v3852
        %v3872 = vsel %vm3862, %v3858, 1326507024
        %v3873 = vsel %vm3861, %v3855, %v3872
        %v3874 = vsel %vm3860, %v3871, %v3873
        %v3875 = vshll.u32 %v3835, 8
        %v3876 = vmul.u32.u64.compose %v3875, %v3874
        %v3877 = vextract.low.u32 %v3876
        %v3878 = vextract.high.u32 %v3876
        %v3879 = vmul.u32.u64.compose %v3875, %v3870
        %v3880 = vextract.low.u32 %v3879
        %v3881 = vextract.high.u32 %v3879
        %v3882 = vmul.u32 %v3875, %v3866
        %v3883 = vadd.s32 %v3878, %v3880
        %vm3884 = vc.u32 %v3878, %v3880
        %v3885 = vadd.s32 %v3881, 1
        %v3886 = vsel %vm3884, %v3885, %v3881
        %v3887 = vadd.s32 %v3882, %v3886
        %v3888 = vadd.s32 %v3887, 536870912
        %v3889 = vshrl.u32 %v3888, 30
        %v3890 = vshll.u32 %v3889, 30
        %v3891 = vsub.s32 %v3887, %v3890
        %vm3892 = vcmp.lt.s32.totalorder %v3891, 0
        %v3893 = vsub.s32 0, %v3891
        %v3894 = vsel %vm3892, %v3893, %v3891
        %v3895 = vclz %v3894
        %v3896 = vsub.s32 %v3895, 2
        %vm3897 = vcmp.gt.s32.totalorder 0, %v3896
        %v3898 = vsel %vm3897, 0, %v3896
        %v3899 = vsub.s32 32, %v3898
        %v3900 = vshll.u32 %v3891, %v3898
        %v3901 = vshrl.u32 %v3883, %v3899
        %v3902 = vor.u32 %v3900, %v3901
        %v3903 = vsub.s32 4294967266, %v3898
        %v3904 = vadd.s32 %v3903, 127
        %v3905 = vshll.u32 %v3904, 23
        %v3906 = vor.u32 4788187, %v3905
        %v3907 = vand.u32 2147483647, %v3906
        %v3909 = vcvt.s32.f32 %v3902
        %v3910 = vmul.f32 %v3909, %v3907
        %v3911 = vxor.u32 %v3910, 2147483648
        %v3912 = vsel %vm3829, %v3911, %v3910
        %v3913 = vsub.s32 4, %v3889
        %v3914 = vsel %vm3829, %v3913, %v3889
        %v3915 = vsel %vm3828, %v633, %v3912
        %v3916 = vsel %vm3828, 0, %v3914
        %v3917 = vcosq.f32.pop %v3915
        %v3918 = vsinq.f32.pop %v3915
        %vm3919 = vweird.f32 %v633
        %v3920 = vand.u32 %v3916, 3
        %vm3921 = vcmp.lt.s32.totalorder %v3920, 2
        %vm3922 = vcmp.eq.s32.totalorder %v3920, 0
        %v3923 = vxor.u32 %v3918, 2147483648
        %v3924 = vsel %vm3922, %v3917, %v3923
        %vm3925 = vcmp.eq.s32.totalorder %v3920, 2
        %v3926 = vxor.u32 %v3917, 2147483648
        %v3927 = vsel %vm3925, %v3926, %v3918
        %v3928 = vsel %vm3921, %v3924, %v3927
        %v3929 = vsel %vm3919, nan, %v3928
        %v3930 = vand.u32 2147483647, %v640
        %vm3931 = vcmp.le.f32.partialorder %v3930, 0.7853982
        %vm3932 = vcmp.lt.s32.totalorder %v640, 0
        %v3933 = vand.u32 %v640, 2139095040
        %v3934 = vshrl.u32 %v3933, 23
        %v3935 = vsub.s32 %v3934, 127
        %v3936 = vand.u32 2147483647, %v640
        %v3937 = vand.u32 %v3936, 8388607
        %v3938 = vor.u32 %v3937, 8388608
        %v3939 = vsub.s32 0, %v3938
        %v3940 = vadd.s32 %v3935, 1
        %vm3941 = vcmp.gt.s32.totalorder %v3940, 0
        %v3942 = vsel %vm3941, %v3940, 0
        %v3943 = vshrl.u32 %v3942, 5
        %v3944 = vand.u32 %v3942, 31
        %v3945 = vsub.s32 32, %v3944
        %v3946 = vshrl.u32 683565275, %v3945
        %v3947 = vshll.u32 683565275, %v3944
        %v3948 = vshrl.u32 2475754826, %v3945
        %v3949 = vor.u32 %v3947, %v3948
        %v3950 = vshll.u32 2475754826, %v3944
        %v3951 = vshrl.u32 2131351028, %v3945
        %v3952 = vor.u32 %v3950, %v3951
        %v3953 = vshll.u32 2131351028, %v3944
        %v3954 = vshrl.u32 2102212464, %v3945
        %v3955 = vor.u32 %v3953, %v3954
        %v3956 = vshll.u32 2102212464, %v3944
        %v3957 = vshrl.u32 920167782, %v3945
        %v3958 = vor.u32 %v3956, %v3957
        %v3959 = vshll.u32 920167782, %v3944
        %v3960 = vshrl.u32 1326507024, %v3945
        %v3961 = vor.u32 %v3959, %v3960
        %vm3962 = vcmp.lt.s32.totalorder %v3943, 1
        %vm3963 = vcmp.lt.s32.totalorder %v3943, 2
        %vm3964 = vcmp.lt.s32.totalorder %v3943, 3
        %vm3965 = vcmp.lt.s32.totalorder %v3943, 4
        %v3966 = vsel %vm3962, %v3946, %v3949
        %v3967 = vsel %vm3965, %v3955, 2102212464
        %v3968 = vsel %vm3964, %v3952, %v3967
        %v3969 = vsel %vm3963, %v3966, %v3968
        %v3970 = vsel %vm3962, %v3949, %v3952
        %v3971 = vsel %vm3965, %v3958, 920167782
        %v3972 = vsel %vm3964, %v3955, %v3971
        %v3973 = vsel %vm3963, %v3970, %v3972
        %v3974 = vsel %vm3962, %v3952, %v3955
        %v3975 = vsel %vm3965, %v3961, 1326507024
        %v3976 = vsel %vm3964, %v3958, %v3975
        %v3977 = vsel %vm3963, %v3974, %v3976
        %v3978 = vshll.u32 %v3938, 8
        %v3979 = vmul.u32.u64.compose %v3978, %v3977
        %v3980 = vextract.low.u32 %v3979
        %v3981 = vextract.high.u32 %v3979
        %v3982 = vmul.u32.u64.compose %v3978, %v3973
        %v3983 = vextract.low.u32 %v3982
        %v3984 = vextract.high.u32 %v3982
        %v3985 = vmul.u32 %v3978, %v3969
        %v3986 = vadd.s32 %v3981, %v3983
        %vm3987 = vc.u32 %v3981, %v3983
        %v3988 = vadd.s32 %v3984, 1
        %v3989 = vsel %vm3987, %v3988, %v3984
        %v3990 = vadd.s32 %v3985, %v3989
        %v3991 = vadd.s32 %v3990, 536870912
        %v3992 = vshrl.u32 %v3991, 30
        %v3993 = vshll.u32 %v3992, 30
        %v3994 = vsub.s32 %v3990, %v3993
        %vm3995 = vcmp.lt.s32.totalorder %v3994, 0
        %v3996 = vsub.s32 0, %v3994
        %v3997 = vsel %vm3995, %v3996, %v3994
        %v3998 = vclz %v3997
        %v3999 = vsub.s32 %v3998, 2
        %vm4000 = vcmp.gt.s32.totalorder 0, %v3999
        %v4001 = vsel %vm4000, 0, %v3999
        %v4002 = vsub.s32 32, %v4001
        %v4003 = vshll.u32 %v3994, %v4001
        %v4004 = vshrl.u32 %v3986, %v4002
        %v4005 = vor.u32 %v4003, %v4004
        %v4006 = vsub.s32 4294967266, %v4001
        %v4007 = vadd.s32 %v4006, 127
        %v4008 = vshll.u32 %v4007, 23
        %v4009 = vor.u32 4788187, %v4008
        %v4010 = vand.u32 2147483647, %v4009
        %v4012 = vcvt.s32.f32 %v4005
        %v4013 = vmul.f32 %v4012, %v4010
        %v4014 = vxor.u32 %v4013, 2147483648
        %v4015 = vsel %vm3932, %v4014, %v4013
        %v4016 = vsub.s32 4, %v3992
        %v4017 = vsel %vm3932, %v4016, %v3992
        %v4018 = vsel %vm3931, %v640, %v4015
        %v4019 = vsel %vm3931, 0, %v4017
        %v4020 = vcosq.f32.pop %v4018
        %v4021 = vsinq.f32.pop %v4018
        %vm4022 = vweird.f32 %v640
        %v4023 = vand.u32 %v4019, 3
        %vm4024 = vcmp.lt.s32.totalorder %v4023, 2
        %vm4025 = vcmp.eq.s32.totalorder %v4023, 0
        %v4026 = vxor.u32 %v4021, 2147483648
        %v4027 = vsel %vm4025, %v4020, %v4026
        %vm4028 = vcmp.eq.s32.totalorder %v4023, 2
        %v4029 = vxor.u32 %v4020, 2147483648
        %v4030 = vsel %vm4028, %v4029, %v4021
        %v4031 = vsel %vm4024, %v4027, %v4030
        %v4032 = vsel %vm4022, nan, %v4031
        %v4033 = vand.u32 2147483647, %v647
        %vm4034 = vcmp.le.f32.partialorder %v4033, 0.7853982
        %vm4035 = vcmp.lt.s32.totalorder %v647, 0
        %v4036 = vand.u32 %v647, 2139095040
        %v4037 = vshrl.u32 %v4036, 23
        %v4038 = vsub.s32 %v4037, 127
        %v4039 = vand.u32 2147483647, %v647
        %v4040 = vand.u32 %v4039, 8388607
        %v4041 = vor.u32 %v4040, 8388608
        %v4042 = vsub.s32 0, %v4041
        %v4043 = vadd.s32 %v4038, 1
        %vm4044 = vcmp.gt.s32.totalorder %v4043, 0
        %v4045 = vsel %vm4044, %v4043, 0
        %v4046 = vshrl.u32 %v4045, 5
        %v4047 = vand.u32 %v4045, 31
        %v4048 = vsub.s32 32, %v4047
        %v4049 = vshrl.u32 683565275, %v4048
        %v4050 = vshll.u32 683565275, %v4047
        %v4051 = vshrl.u32 2475754826, %v4048
        %v4052 = vor.u32 %v4050, %v4051
        %v4053 = vshll.u32 2475754826, %v4047
        %v4054 = vshrl.u32 2131351028, %v4048
        %v4055 = vor.u32 %v4053, %v4054
        %v4056 = vshll.u32 2131351028, %v4047
        %v4057 = vshrl.u32 2102212464, %v4048
        %v4058 = vor.u32 %v4056, %v4057
        %v4059 = vshll.u32 2102212464, %v4047
        %v4060 = vshrl.u32 920167782, %v4048
        %v4061 = vor.u32 %v4059, %v4060
        %v4062 = vshll.u32 920167782, %v4047
        %v4063 = vshrl.u32 1326507024, %v4048
        %v4064 = vor.u32 %v4062, %v4063
        %vm4065 = vcmp.lt.s32.totalorder %v4046, 1
        %vm4066 = vcmp.lt.s32.totalorder %v4046, 2
        %vm4067 = vcmp.lt.s32.totalorder %v4046, 3
        %vm4068 = vcmp.lt.s32.totalorder %v4046, 4
        %v4069 = vsel %vm4065, %v4049, %v4052
        %v4070 = vsel %vm4068, %v4058, 2102212464
        %v4071 = vsel %vm4067, %v4055, %v4070
        %v4072 = vsel %vm4066, %v4069, %v4071
        %v4073 = vsel %vm4065, %v4052, %v4055
        %v4074 = vsel %vm4068, %v4061, 920167782
        %v4075 = vsel %vm4067, %v4058, %v4074
        %v4076 = vsel %vm4066, %v4073, %v4075
        %v4077 = vsel %vm4065, %v4055, %v4058
        %v4078 = vsel %vm4068, %v4064, 1326507024
        %v4079 = vsel %vm4067, %v4061, %v4078
        %v4080 = vsel %vm4066, %v4077, %v4079
        %v4081 = vshll.u32 %v4041, 8
        %v4082 = vmul.u32.u64.compose %v4081, %v4080
        %v4083 = vextract.low.u32 %v4082
        %v4084 = vextract.high.u32 %v4082
        %v4085 = vmul.u32.u64.compose %v4081, %v4076
        %v4086 = vextract.low.u32 %v4085
        %v4087 = vextract.high.u32 %v4085
        %v4088 = vmul.u32 %v4081, %v4072
        %v4089 = vadd.s32 %v4084, %v4086
        %vm4090 = vc.u32 %v4084, %v4086
        %v4091 = vadd.s32 %v4087, 1
        %v4092 = vsel %vm4090, %v4091, %v4087
        %v4093 = vadd.s32 %v4088, %v4092
        %v4094 = vadd.s32 %v4093, 536870912
        %v4095 = vshrl.u32 %v4094, 30
        %v4096 = vshll.u32 %v4095, 30
        %v4097 = vsub.s32 %v4093, %v4096
        %vm4098 = vcmp.lt.s32.totalorder %v4097, 0
        %v4099 = vsub.s32 0, %v4097
        %v4100 = vsel %vm4098, %v4099, %v4097
        %v4101 = vclz %v4100
        %v4102 = vsub.s32 %v4101, 2
        %vm4103 = vcmp.gt.s32.totalorder 0, %v4102
        %v4104 = vsel %vm4103, 0, %v4102
        %v4105 = vsub.s32 32, %v4104
        %v4106 = vshll.u32 %v4097, %v4104
        %v4107 = vshrl.u32 %v4089, %v4105
        %v4108 = vor.u32 %v4106, %v4107
        %v4109 = vsub.s32 4294967266, %v4104
        %v4110 = vadd.s32 %v4109, 127
        %v4111 = vshll.u32 %v4110, 23
        %v4112 = vor.u32 4788187, %v4111
        %v4113 = vand.u32 2147483647, %v4112
        %v4115 = vcvt.s32.f32 %v4108
        %v4116 = vmul.f32 %v4115, %v4113
        %v4117 = vxor.u32 %v4116, 2147483648
        %v4118 = vsel %vm4035, %v4117, %v4116
        %v4119 = vsub.s32 4, %v4095
        %v4120 = vsel %vm4035, %v4119, %v4095
        %v4121 = vsel %vm4034, %v647, %v4118
        %v4122 = vsel %vm4034, 0, %v4120
        %v4123 = vcosq.f32.pop %v4121
        %v4124 = vsinq.f32.pop %v4121
        %vm4125 = vweird.f32 %v647
        %v4126 = vand.u32 %v4122, 3
        %vm4127 = vcmp.lt.s32.totalorder %v4126, 2
        %vm4128 = vcmp.eq.s32.totalorder %v4126, 0
        %v4129 = vxor.u32 %v4124, 2147483648
        %v4130 = vsel %vm4128, %v4123, %v4129
        %vm4131 = vcmp.eq.s32.totalorder %v4126, 2
        %v4132 = vxor.u32 %v4123, 2147483648
        %v4133 = vsel %vm4131, %v4132, %v4124
        %v4134 = vsel %vm4127, %v4130, %v4133
        %v4135 = vsel %vm4125, nan, %v4134
        %v4136 = vsel %vm739, %v2590, 0.0
        %v4137 = vsel %vm740, %v2693, 0.0
        %v4138 = vsel %vm741, %v2796, 0.0
        %v4139 = vsel %vm742, %v2899, 0.0
        %v4140 = vsel %vm743, %v3002, 0.0
        %v4141 = vsel %vm744, %v3105, 0.0
        %v4142 = vsel %vm745, %v3208, 0.0
        %v4143 = vsel %vm746, %v3311, 0.0
        %v4144 = vsel %vm747, %v3414, 0.0
        %v4145 = vsel %vm748, %v3517, 0.0
        %v4146 = vsel %vm749, %v3620, 0.0
        %v4147 = vsel %vm750, %v3723, 0.0
        %v4148 = vsel %vm751, %v3826, 0.0
        %v4149 = vsel %vm752, %v3929, 0.0
        %v4150 = vsel %vm753, %v4032, 0.0
        %v4151 = vsel %vm754, %v4135, 0.0
        %4152 = vadd.xlane.f32.xlu0 %v4136
        %v4153 = vpop.xlane.xlu0 %4152
        %4154 = vadd.xlane.f32.xlu0 %v4137
        %v4155 = vpop.xlane.xlu0 %4154
        %4156 = vadd.xlane.f32.xlu0 %v4138
        %v4157 = vpop.xlane.xlu0 %4156
        %4158 = vadd.xlane.f32.xlu0 %v4139
        %v4159 = vpop.xlane.xlu0 %4158
        %4160 = vadd.xlane.f32.xlu0 %v4140
        %v4161 = vpop.xlane.xlu0 %4160
        %4162 = vadd.xlane.f32.xlu0 %v4141
        %v4163 = vpop.xlane.xlu0 %4162
        %4164 = vadd.xlane.f32.xlu0 %v4142
        %v4165 = vpop.xlane.xlu0 %4164
        %4166 = vadd.xlane.f32.xlu0 %v4143
        %v4167 = vpop.xlane.xlu0 %4166
        %4168 = vadd.xlane.f32.xlu0 %v4144
        %v4169 = vpop.xlane.xlu0 %4168
        %4170 = vadd.xlane.f32.xlu0 %v4145
        %v4171 = vpop.xlane.xlu0 %4170
        %4172 = vadd.xlane.f32.xlu0 %v4146
        %v4173 = vpop.xlane.xlu0 %4172
        %4174 = vadd.xlane.f32.xlu0 %v4147
        %v4175 = vpop.xlane.xlu0 %4174
        %4176 = vadd.xlane.f32.xlu0 %v4148
        %v4177 = vpop.xlane.xlu0 %4176
        %4178 = vadd.xlane.f32.xlu0 %v4149
        %v4179 = vpop.xlane.xlu0 %4178
        %4180 = vadd.xlane.f32.xlu0 %v4150
        %v4181 = vpop.xlane.xlu0 %4180
        %4182 = vadd.xlane.f32.xlu0 %v4151
        %v4183 = vpop.xlane.xlu0 %4182
        %v4184 = vadd.f32 %v4136, %v4137
        %v4185 = vadd.f32 %v4184, %v4138
        %v4186 = vadd.f32 %v4185, %v4139
        %v4187 = vadd.f32 %v4186, %v4140
        %v4188 = vadd.f32 %v4187, %v4141
        %v4189 = vadd.f32 %v4188, %v4142
        %v4190 = vadd.f32 %v4189, %v4143
        %v4191 = vadd.f32 %v4190, %v4144
        %v4192 = vadd.f32 %v4191, %v4145
        %v4193 = vadd.f32 %v4192, %v4146
        %v4194 = vadd.f32 %v4193, %v4147
        %v4195 = vadd.f32 %v4194, %v4148
        %v4196 = vadd.f32 %v4195, %v4149
        %v4197 = vadd.f32 %v4196, %v4150
        %v4198 = vadd.f32 %v4197, %v4151
        %v4199 = vrot.slane %v4198, 4
        %v4200 = vadd.f32 %v4198, %v4199
        %v4201 = vrot.slane %v4200, 2
        %v4202 = vadd.f32 %v4200, %v4201
        %v4203 = vrot.slane %v4202, 1
        %v4204 = vadd.f32 %v4202, %v4203
        %vm4205 = vcmask 7168
        %v4206 = vsel %vm4205, %v2436, %v4153
        %v4207 = vsel %vm4205, %v2438, %v4155
        %v4208 = vsel %vm4205, %v2440, %v4157
        %v4209 = vsel %vm4205, %v2442, %v4159
        %v4210 = vsel %vm4205, %v2444, %v4161
        %v4211 = vsel %vm4205, %v2446, %v4163
        %v4212 = vsel %vm4205, %v2448, %v4165
        %v4213 = vsel %vm4205, %v2450, %v4167
        %v4214 = vsel %vm4205, %v2452, %v4169
        %v4215 = vsel %vm4205, %v2454, %v4171
        %v4216 = vsel %vm4205, %v2456, %v4173
        %v4217 = vsel %vm4205, %v2458, %v4175
        %v4218 = vsel %vm4205, %v2460, %v4177
        %v4219 = vsel %vm4205, %v2462, %v4179
        %v4220 = vsel %vm4205, %v2464, %v4181
        %v4221 = vsel %vm4205, %v2466, %v4183
        %vm4222 = vcmask 1040384
        %v4223 = vsel %vm4222, %v2487, %v4204
        %p4224 = scmp.eq.s32.totalorder %s25, 0
        // Predicated region
        $region29: #{tpu_custom_call.1} parent=27 // pred_check
          %p4225 = pneg %p4224
        $region30: #{tpu_custom_call.1} parent=27 // pred_check_branch
          %4227 = sbr.rel (%p4225) target = $region32
        $region31: #{tpu_custom_call.1} parent=27 // pred_region
          %vm4228 = vcmask 15360
          %4229 = vst.msk [vmem:[#allocation2] sm:$0xff] %vm4228, %v4206
          %4230 = vst.msk [vmem:[#allocation2 + $0x8] sm:$0xff] %vm4228, %v4207
          %4231 = vst.msk [vmem:[#allocation2 + $0x10] sm:$0xff] %vm4228, %v4208
          %4232 = vst.msk [vmem:[#allocation2 + $0x18] sm:$0xff] %vm4228, %v4209
          %4233 = vst.msk [vmem:[#allocation2 + $0x20] sm:$0xff] %vm4228, %v4210
          %4234 = vst.msk [vmem:[#allocation2 + $0x28] sm:$0xff] %vm4228, %v4211
          %4235 = vst.msk [vmem:[#allocation2 + $0x30] sm:$0xff] %vm4228, %v4212
          %4236 = vst.msk [vmem:[#allocation2 + $0x38] sm:$0xff] %vm4228, %v4213
          %4237 = vst.msk [vmem:[#allocation2 + $0x40] sm:$0xff] %vm4228, %v4214
          %4238 = vst.msk [vmem:[#allocation2 + $0x48] sm:$0xff] %vm4228, %v4215
          %4239 = vst.msk [vmem:[#allocation2 + $0x50] sm:$0xff] %vm4228, %v4216
          %4240 = vst.msk [vmem:[#allocation2 + $0x58] sm:$0xff] %vm4228, %v4217
          %4241 = vst.msk [vmem:[#allocation2 + $0x60] sm:$0xff] %vm4228, %v4218
          %4242 = vst.msk [vmem:[#allocation2 + $0x68] sm:$0xff] %vm4228, %v4219
          %4243 = vst.msk [vmem:[#allocation2 + $0x70] sm:$0xff] %vm4228, %v4220
          %4244 = vst.msk [vmem:[#allocation2 + $0x78] sm:$0xff] %vm4228, %v4221
        $region32: #{tpu_custom_call.1} parent=27 // pred_fallthru
          _
        %p4245 = scmp.gt.s32.totalorder %s25, 0
        // Predicated region
        $region33: #{tpu_custom_call.1} parent=27 // pred_check
          %p4246 = pneg %p4245
        $region34: #{tpu_custom_call.1} parent=27 // pred_check_branch
          %4248 = sbr.rel (%p4246) target = $region36
        $region35: #{tpu_custom_call.1} parent=27 // pred_region
          %v4249 = vld [vmem:[#allocation2] sm:$0xff]
          %v4250 = vld [vmem:[#allocation2 + $0x8] sm:$0xff]
          %v4251 = vld [vmem:[#allocation2 + $0x10] sm:$0xff]
          %v4252 = vld [vmem:[#allocation2 + $0x18] sm:$0xff]
          %v4253 = vld [vmem:[#allocation2 + $0x20] sm:$0xff]
          %v4254 = vld [vmem:[#allocation2 + $0x28] sm:$0xff]
          %v4255 = vld [vmem:[#allocation2 + $0x30] sm:$0xff]
          %v4256 = vld [vmem:[#allocation2 + $0x38] sm:$0xff]
          %v4257 = vld [vmem:[#allocation2 + $0x40] sm:$0xff]
          %v4258 = vld [vmem:[#allocation2 + $0x48] sm:$0xff]
          %v4259 = vld [vmem:[#allocation2 + $0x50] sm:$0xff]
          %v4260 = vld [vmem:[#allocation2 + $0x58] sm:$0xff]
          %v4261 = vld [vmem:[#allocation2 + $0x60] sm:$0xff]
          %v4262 = vld [vmem:[#allocation2 + $0x68] sm:$0xff]
          %v4263 = vld [vmem:[#allocation2 + $0x70] sm:$0xff]
          %v4264 = vld [vmem:[#allocation2 + $0x78] sm:$0xff]
          %v4265 = vadd.f32 %v4249, %v4206
          %v4266 = vadd.f32 %v4250, %v4207
          %v4267 = vadd.f32 %v4251, %v4208
          %v4268 = vadd.f32 %v4252, %v4209
          %v4269 = vadd.f32 %v4253, %v4210
          %v4270 = vadd.f32 %v4254, %v4211
          %v4271 = vadd.f32 %v4255, %v4212
          %v4272 = vadd.f32 %v4256, %v4213
          %v4273 = vadd.f32 %v4257, %v4214
          %v4274 = vadd.f32 %v4258, %v4215
          %v4275 = vadd.f32 %v4259, %v4216
          %v4276 = vadd.f32 %v4260, %v4217
          %v4277 = vadd.f32 %v4261, %v4218
          %v4278 = vadd.f32 %v4262, %v4219
          %v4279 = vadd.f32 %v4263, %v4220
          %v4280 = vadd.f32 %v4264, %v4221
          %vm4281 = vcmask 15360
          %4282 = vst.msk [vmem:[#allocation2] sm:$0xff] %vm4281, %v4265
          %4283 = vst.msk [vmem:[#allocation2 + $0x8] sm:$0xff] %vm4281, %v4266
          %4284 = vst.msk [vmem:[#allocation2 + $0x10] sm:$0xff] %vm4281, %v4267
          %4285 = vst.msk [vmem:[#allocation2 + $0x18] sm:$0xff] %vm4281, %v4268
          %4286 = vst.msk [vmem:[#allocation2 + $0x20] sm:$0xff] %vm4281, %v4269
          %4287 = vst.msk [vmem:[#allocation2 + $0x28] sm:$0xff] %vm4281, %v4270
          %4288 = vst.msk [vmem:[#allocation2 + $0x30] sm:$0xff] %vm4281, %v4271
          %4289 = vst.msk [vmem:[#allocation2 + $0x38] sm:$0xff] %vm4281, %v4272
          %4290 = vst.msk [vmem:[#allocation2 + $0x40] sm:$0xff] %vm4281, %v4273
          %4291 = vst.msk [vmem:[#allocation2 + $0x48] sm:$0xff] %vm4281, %v4274
          %4292 = vst.msk [vmem:[#allocation2 + $0x50] sm:$0xff] %vm4281, %v4275
          %4293 = vst.msk [vmem:[#allocation2 + $0x58] sm:$0xff] %vm4281, %v4276
          %4294 = vst.msk [vmem:[#allocation2 + $0x60] sm:$0xff] %vm4281, %v4277
          %4295 = vst.msk [vmem:[#allocation2 + $0x68] sm:$0xff] %vm4281, %v4278
          %4296 = vst.msk [vmem:[#allocation2 + $0x70] sm:$0xff] %vm4281, %v4279
          %4297 = vst.msk [vmem:[#allocation2 + $0x78] sm:$0xff] %vm4281, %v4280
        $region36: #{tpu_custom_call.1} parent=27 // pred_fallthru
          _
        %p4298 = scmp.eq.s32.totalorder %s25, 2
        // Predicated region
        $region37: #{tpu_custom_call.1} parent=27 // pred_check
          %p4299 = pneg %p4298
        $region38: #{tpu_custom_call.1} parent=27 // pred_check_branch
          %4301 = sbr.rel (%p4299) target = $region40
        $region39: #{tpu_custom_call.1} parent=27 // pred_region
          %v4302 = vld [vmem:[#allocation2] sm:$0xff]
          %v4303 = vld [vmem:[#allocation2 + $0x8] sm:$0xff]
          %v4304 = vld [vmem:[#allocation2 + $0x10] sm:$0xff]
          %v4305 = vld [vmem:[#allocation2 + $0x18] sm:$0xff]
          %v4306 = vld [vmem:[#allocation2 + $0x20] sm:$0xff]
          %v4307 = vld [vmem:[#allocation2 + $0x28] sm:$0xff]
          %v4308 = vld [vmem:[#allocation2 + $0x30] sm:$0xff]
          %v4309 = vld [vmem:[#allocation2 + $0x38] sm:$0xff]
          %v4310 = vld [vmem:[#allocation2 + $0x40] sm:$0xff]
          %v4311 = vld [vmem:[#allocation2 + $0x48] sm:$0xff]
          %v4312 = vld [vmem:[#allocation2 + $0x50] sm:$0xff]
          %v4313 = vld [vmem:[#allocation2 + $0x58] sm:$0xff]
          %v4314 = vld [vmem:[#allocation2 + $0x60] sm:$0xff]
          %v4315 = vld [vmem:[#allocation2 + $0x68] sm:$0xff]
          %v4316 = vld [vmem:[#allocation2 + $0x70] sm:$0xff]
          %v4317 = vld [vmem:[#allocation2 + $0x78] sm:$0xff]
          %v4318 = vmul.f32 %v271, %v4302
          %v4319 = vmul.f32 %v272, %v4303
          %v4320 = vmul.f32 %v273, %v4304
          %v4321 = vmul.f32 %v274, %v4305
          %v4322 = vmul.f32 %v275, %v4306
          %v4323 = vmul.f32 %v276, %v4307
          %v4324 = vmul.f32 %v277, %v4308
          %v4325 = vmul.f32 %v278, %v4309
          %v4326 = vmul.f32 %v279, %v4310
          %v4327 = vmul.f32 %v280, %v4311
          %v4328 = vmul.f32 %v281, %v4312
          %v4329 = vmul.f32 %v282, %v4313
          %v4330 = vmul.f32 %v283, %v4314
          %v4331 = vmul.f32 %v284, %v4315
          %v4332 = vmul.f32 %v285, %v4316
          %v4333 = vmul.f32 %v286, %v4317
          %vm4334 = vcmask 15360
          %4335 = vst.msk [vmem:[%s232] sm:$0xff] %vm4334, %v4318
          %4336 = vst.msk [vmem:[%s232 + $0x8] sm:$0xff] %vm4334, %v4319
          %4337 = vst.msk [vmem:[%s232 + $0x10] sm:$0xff] %vm4334, %v4320
          %4338 = vst.msk [vmem:[%s232 + $0x18] sm:$0xff] %vm4334, %v4321
          %4339 = vst.msk [vmem:[%s232 + $0x20] sm:$0xff] %vm4334, %v4322
          %4340 = vst.msk [vmem:[%s232 + $0x28] sm:$0xff] %vm4334, %v4323
          %4341 = vst.msk [vmem:[%s232 + $0x30] sm:$0xff] %vm4334, %v4324
          %4342 = vst.msk [vmem:[%s232 + $0x38] sm:$0xff] %vm4334, %v4325
          %4343 = vst.msk [vmem:[%s232 + $0x40] sm:$0xff] %vm4334, %v4326
          %4344 = vst.msk [vmem:[%s232 + $0x48] sm:$0xff] %vm4334, %v4327
          %4345 = vst.msk [vmem:[%s232 + $0x50] sm:$0xff] %vm4334, %v4328
          %4346 = vst.msk [vmem:[%s232 + $0x58] sm:$0xff] %vm4334, %v4329
          %4347 = vst.msk [vmem:[%s232 + $0x60] sm:$0xff] %vm4334, %v4330
          %4348 = vst.msk [vmem:[%s232 + $0x68] sm:$0xff] %vm4334, %v4331
          %4349 = vst.msk [vmem:[%s232 + $0x70] sm:$0xff] %vm4334, %v4332
          %4350 = vst.msk [vmem:[%s232 + $0x78] sm:$0xff] %vm4334, %v4333
        $region40: #{tpu_custom_call.1} parent=27 // pred_fallthru
          _
        %p4351 = scmp.eq.s32.totalorder %s24, 0
        // Predicated region
        $region41: #{tpu_custom_call.1} parent=27 // pred_check
          %p4352 = pneg %p4351
        $region42: #{tpu_custom_call.1} parent=27 // pred_check_branch
          %4354 = sbr.rel (%p4352) target = $region44
        $region43: #{tpu_custom_call.1} parent=27 // pred_region
          %s4355 = smul.u32 %s25, 2
          %s4356 = scalar_lea.vmem [#allocation3], %s4355
          %4357 = vst [vmem:[%s4356] sm:$0x3] %v4223
        $region44: #{tpu_custom_call.1} parent=27 // pred_fallthru
          _
        %p4358 = scmp.gt.s32.totalorder %s24, 0
        // Predicated region
        $region45: #{tpu_custom_call.1} parent=27 // pred_check
          %p4359 = pneg %p4358
        $region46: #{tpu_custom_call.1} parent=27 // pred_check_branch
          %4361 = sbr.rel (%p4359) target = $region48
        $region47: #{tpu_custom_call.1} parent=27 // pred_region
          %s4362 = smul.u32 %s25, 2
          %s4363 = scalar_lea.vmem [#allocation3], %s4362
          %v4364 = vld [vmem:[%s4363] sm:$0x3]
          %v4365 = vadd.f32 %v4364, %v4223
          %4366 = vst [vmem:[%s4363] sm:$0x3] %v4365
        $region48: #{tpu_custom_call.1} parent=27 // pred_fallthru
          _
        %s4367 = smul.u32 %s25, 2
        %s4368 = scalar_lea.vmem [#allocation3], %s4367
        %v4369 = vld [vmem:[%s4368] sm:$0x3]
        %v4370 = vmul.f32 %v287, %v4369
        %4371 = vst [vmem:[%s239] sm:$0x3] %v4370
        %s4372 = sand.u32 %s103, 1
        %s4373 = sand.u32 %s103, 1
        %s4374 = smul.addr %s4373, 128
        %s4375 = scalar_lea.vmem [#allocation4], %s4374
        %s4376 = sand.u32 %s131, 1
        %s4377 = scalar_lea.sflag [#allocation6], %s4376
        %s4378 = sand.u32 %s131, 1
        %s4379 = smul.addr %s4378, 2
        %s4380 = scalar_lea.vmem [#allocation5], %s4379
        // Predicated region
        $region49: #{tpu_custom_call.1} parent=27 // pred_check
          %p4381 = pneg %p113
        $region50: #{tpu_custom_call.1} parent=27 // pred_check_branch
          %4383 = sbr.rel (%p4381) target = $region52
        $region51: #{tpu_custom_call.1} parent=27 // pred_region
          %s4384 = smul.u32 16, %s24
          %s4385 = ssub.s32 25, %s4384
          %p4386 = scmp.lt.s32.totalorder %s4385, 16
          %s4387 = scalar_select %p4386, %s4385, 16
          %s4388 = smul.u32 128, %s4387
          %p4389 = scmp.ne.s32.totalorder 0, %s4388
          %s4390 = smul.addr %s23, 25
          %s4391 = sadd.s32 %s4384, %s4390
          %s4392 = smul.addr %s4391, 8
          %s4393 = scalar_lea.vmem %s2, %s4392
          // Predicated region
          $region53: #{tpu_custom_call.1} parent=51 // pred_check
            %p4394 = pneg %p4389
          $region54: #{tpu_custom_call.1} parent=51 // pred_check_branch
            %4396 = sbr.rel (%p4394) target = $region56
          $region55: #{tpu_custom_call.1} parent=51 // pred_region
            // Predicated region
            $region57: #{tpu_custom_call.1} parent=55 // pred_check
              _
            $region58: #{tpu_custom_call.1} parent=55 // pred_check_branch
              %4398 = sbr.rel (0) target = $region60
            $region59: #{tpu_custom_call.1} parent=55 // pred_region
              // Predicated region
              $region79: #{tpu_custom_call.1} parent=59 // pred_check
                _
              $region80: #{tpu_custom_call.1} parent=59 // pred_check_branch
                %4478 = sbr.rel (0) target = $region82
              $region81: #{tpu_custom_call.1} parent=59 // pred_region
                %s4479 = sshrl.u32 %s4387, 4
                // While loop
                $region83: #{tpu_custom_call.1} parent=81 // loop_pre_header
                  _
                $region84: #{tpu_custom_call.1} parent=81 // loop_header
                  %s4481 = sphi 0, %s4483
                  %p4482 = scmp.ge.s32.totalorder %s4481, %s4479
                  %s4486 = sphi 0, %s4523
                  %s4487 = sphi %s4375, %s4526
                  %s4488 = sphi %s4393, %s4527
                $region85: #{tpu_custom_call.1} parent=81 // loop_header_branch
                  %4485 = sbr.rel (%p4482) target = $region89
                $region86: #{tpu_custom_call.1} parent=81 // loop_body
                  %v4489 = vld [vmem:[%s4487] sm:$0xff]
                  %4490 = vst [vmem:[%s4488] sm:$0xff] %v4489
                  %v4491 = vld [vmem:[%s4487 + $0x8] sm:$0xff]
                  %4492 = vst [vmem:[%s4488 + $0x8] sm:$0xff] %v4491
                  %v4493 = vld [vmem:[%s4487 + $0x10] sm:$0xff]
                  %4494 = vst [vmem:[%s4488 + $0x10] sm:$0xff] %v4493
                  %v4495 = vld [vmem:[%s4487 + $0x18] sm:$0xff]
                  %4496 = vst [vmem:[%s4488 + $0x18] sm:$0xff] %v4495
                  %v4497 = vld [vmem:[%s4487 + $0x20] sm:$0xff]
                  %4498 = vst [vmem:[%s4488 + $0x20] sm:$0xff] %v4497
                  %v4499 = vld [vmem:[%s4487 + $0x28] sm:$0xff]
                  %4500 = vst [vmem:[%s4488 + $0x28] sm:$0xff] %v4499
                  %v4501 = vld [vmem:[%s4487 + $0x30] sm:$0xff]
                  %4502 = vst [vmem:[%s4488 + $0x30] sm:$0xff] %v4501
                  %v4503 = vld [vmem:[%s4487 + $0x38] sm:$0xff]
                  %4504 = vst [vmem:[%s4488 + $0x38] sm:$0xff] %v4503
                  %v4505 = vld [vmem:[%s4487 + $0x40] sm:$0xff]
                  %4506 = vst [vmem:[%s4488 + $0x40] sm:$0xff] %v4505
                  %v4507 = vld [vmem:[%s4487 + $0x48] sm:$0xff]
                  %4508 = vst [vmem:[%s4488 + $0x48] sm:$0xff] %v4507
                  %v4509 = vld [vmem:[%s4487 + $0x50] sm:$0xff]
                  %4510 = vst [vmem:[%s4488 + $0x50] sm:$0xff] %v4509
                  %v4511 = vld [vmem:[%s4487 + $0x58] sm:$0xff]
                  %4512 = vst [vmem:[%s4488 + $0x58] sm:$0xff] %v4511
                  %v4513 = vld [vmem:[%s4487 + $0x60] sm:$0xff]
                  %4514 = vst [vmem:[%s4488 + $0x60] sm:$0xff] %v4513
                  %v4515 = vld [vmem:[%s4487 + $0x68] sm:$0xff]
                  %4516 = vst [vmem:[%s4488 + $0x68] sm:$0xff] %v4515
                  %v4517 = vld [vmem:[%s4487 + $0x70] sm:$0xff]
                  %4518 = vst [vmem:[%s4488 + $0x70] sm:$0xff] %v4517
                  %v4519 = vld [vmem:[%s4487 + $0x78] sm:$0xff]
                  %4520 = vst [vmem:[%s4488 + $0x78] sm:$0xff] %v4519
                  %s4521 = sadd.s32 1, %s4486
                  %p4522 = scmp.ge.s32.totalorder %s4521, %s4479
                  %s4523 = scalar_select %p4522, 0, %s4521
                  %s4524 = smul.u32 %s4523, 128
                  %s4525 = smul.u32 %s4523, 128
                  %s4526 = scalar_lea.vmem %s4375, %s4524 [#allocation4]
                  %s4527 = scalar_lea.vmem %s4393, %s4525
                $region87: #{tpu_custom_call.1} parent=81 // loop_footer
                  %s4483 = sadd.s32 %s4481, 1
                $region88: #{tpu_custom_call.1} parent=81 // loop_footer_branch
                  %4480 = sbr.rel target = $region84
                $region89: #{tpu_custom_call.1} parent=81 // loop_exit
                  _
                %s4528 = sshrl.u32 %s4387, 4
                %s4529 = sand.u32 %s4387, 15
                %s4530 = smul.u32 %s4528, 16
                %s4531 = smul.u32 8, %s4530
                %s4532 = scalar_lea.vmem %s4375, %s4531 [#allocation4]
                %s4533 = smul.u32 8, %s4530
                %s4534 = scalar_lea.vmem %s4393, %s4533
                // While loop
                $region90: #{tpu_custom_call.1} parent=81 // loop_pre_header
                  _
                $region91: #{tpu_custom_call.1} parent=81 // loop_header
                  %s4536 = sphi 0, %s4538
                  %p4537 = scmp.ge.s32.totalorder %s4536, %s4529
                  %s4541 = sphi 0, %s4548
                  %s4542 = sphi %s4532, %s4551
                  %s4543 = sphi %s4534, %s4552
                $region92: #{tpu_custom_call.1} parent=81 // loop_header_branch
                  %4540 = sbr.rel (%p4537) target = $region96
                $region93: #{tpu_custom_call.1} parent=81 // loop_body
                  %v4544 = vld [vmem:[%s4542] sm:$0xff]
                  %4545 = vst [vmem:[%s4543] sm:$0xff] %v4544
                  %s4546 = sadd.s32 1, %s4541
                  %p4547 = scmp.ge.s32.totalorder %s4546, %s4529
                  %s4548 = scalar_select %p4547, 0, %s4546
                  %s4549 = smul.u32 %s4548, 8
                  %s4550 = smul.u32 %s4548, 8
                  %s4551 = scalar_lea.vmem %s4532, %s4549 [#allocation4]
                  %s4552 = scalar_lea.vmem %s4534, %s4550
                $region94: #{tpu_custom_call.1} parent=81 // loop_footer
                  %s4538 = sadd.s32 %s4536, 1
                $region95: #{tpu_custom_call.1} parent=81 // loop_footer_branch
                  %4535 = sbr.rel target = $region91
                $region96: #{tpu_custom_call.1} parent=81 // loop_exit
                  _
              $region82: #{tpu_custom_call.1} parent=59 // pred_fallthru
                _
              // Predicated region
              $region97: #{tpu_custom_call.1} parent=59 // pred_check
                _
              $region98: #{tpu_custom_call.1} parent=59 // pred_check_branch
                %4554 = sbr.rel target = $region100
              $region99: #{tpu_custom_call.1} parent=59 // pred_region
                _
              $region100: #{tpu_custom_call.1} parent=59 // pred_fallthru
                _
            $region60: #{tpu_custom_call.1} parent=55 // pred_fallthru
              _
            // Predicated region
            $region61: #{tpu_custom_call.1} parent=55 // pred_check
              _
            $region62: #{tpu_custom_call.1} parent=55 // pred_check_branch
              %4400 = sbr.rel target = $region64
            $region63: #{tpu_custom_call.1} parent=55 // pred_region
              %s4402 = ssub.s32 256, 1
              %s4403 = sshrl.u32 %s4387, 4
              // While loop
              $region65: #{tpu_custom_call.1} parent=63 // loop_pre_header
                _
              $region66: #{tpu_custom_call.1} parent=63 // loop_header
                %s4405 = sphi 0, %s4407
                %p4406 = scmp.ge.s32.totalorder %s4405, %s4403
                %s4410 = sphi 0, %s4447
                %s4411 = sphi %s4375, %s4450
                %s4412 = sphi %s4393, %s4451
              $region67: #{tpu_custom_call.1} parent=63 // loop_header_branch
                %4409 = sbr.rel (%p4406) target = $region71
              $region68: #{tpu_custom_call.1} parent=63 // loop_body
                %v4413 = vld [vmem:[%s4411] sm:%s4402]
                %4414 = vst [vmem:[%s4412] sm:%s4402] %v4413
                %v4415 = vld [vmem:[%s4411 + $0x8] sm:%s4402]
                %4416 = vst [vmem:[%s4412 + $0x8] sm:%s4402] %v4415
                %v4417 = vld [vmem:[%s4411 + $0x10] sm:%s4402]
                %4418 = vst [vmem:[%s4412 + $0x10] sm:%s4402] %v4417
                %v4419 = vld [vmem:[%s4411 + $0x18] sm:%s4402]
                %4420 = vst [vmem:[%s4412 + $0x18] sm:%s4402] %v4419
                %v4421 = vld [vmem:[%s4411 + $0x20] sm:%s4402]
                %4422 = vst [vmem:[%s4412 + $0x20] sm:%s4402] %v4421
                %v4423 = vld [vmem:[%s4411 + $0x28] sm:%s4402]
                %4424 = vst [vmem:[%s4412 + $0x28] sm:%s4402] %v4423
                %v4425 = vld [vmem:[%s4411 + $0x30] sm:%s4402]
                %4426 = vst [vmem:[%s4412 + $0x30] sm:%s4402] %v4425
                %v4427 = vld [vmem:[%s4411 + $0x38] sm:%s4402]
                %4428 = vst [vmem:[%s4412 + $0x38] sm:%s4402] %v4427
                %v4429 = vld [vmem:[%s4411 + $0x40] sm:%s4402]
                %4430 = vst [vmem:[%s4412 + $0x40] sm:%s4402] %v4429
                %v4431 = vld [vmem:[%s4411 + $0x48] sm:%s4402]
                %4432 = vst [vmem:[%s4412 + $0x48] sm:%s4402] %v4431
                %v4433 = vld [vmem:[%s4411 + $0x50] sm:%s4402]
                %4434 = vst [vmem:[%s4412 + $0x50] sm:%s4402] %v4433
                %v4435 = vld [vmem:[%s4411 + $0x58] sm:%s4402]
                %4436 = vst [vmem:[%s4412 + $0x58] sm:%s4402] %v4435
                %v4437 = vld [vmem:[%s4411 + $0x60] sm:%s4402]
                %4438 = vst [vmem:[%s4412 + $0x60] sm:%s4402] %v4437
                %v4439 = vld [vmem:[%s4411 + $0x68] sm:%s4402]
                %4440 = vst [vmem:[%s4412 + $0x68] sm:%s4402] %v4439
                %v4441 = vld [vmem:[%s4411 + $0x70] sm:%s4402]
                %4442 = vst [vmem:[%s4412 + $0x70] sm:%s4402] %v4441
                %v4443 = vld [vmem:[%s4411 + $0x78] sm:%s4402]
                %4444 = vst [vmem:[%s4412 + $0x78] sm:%s4402] %v4443
                %s4445 = sadd.s32 1, %s4410
                %p4446 = scmp.ge.s32.totalorder %s4445, %s4403
                %s4447 = scalar_select %p4446, 0, %s4445
                %s4448 = smul.u32 %s4447, 128
                %s4449 = smul.u32 %s4447, 128
                %s4450 = scalar_lea.vmem %s4375, %s4448 [#allocation4]
                %s4451 = scalar_lea.vmem %s4393, %s4449
              $region69: #{tpu_custom_call.1} parent=63 // loop_footer
                %s4407 = sadd.s32 %s4405, 1
              $region70: #{tpu_custom_call.1} parent=63 // loop_footer_branch
                %4404 = sbr.rel target = $region66
              $region71: #{tpu_custom_call.1} parent=63 // loop_exit
                _
              %s4452 = sshrl.u32 %s4387, 4
              %s4453 = sand.u32 %s4387, 15
              %s4454 = smul.u32 %s4452, 16
              %s4455 = smul.u32 8, %s4454
              %s4456 = scalar_lea.vmem %s4375, %s4455 [#allocation4]
              %s4457 = smul.u32 8, %s4454
              %s4458 = scalar_lea.vmem %s4393, %s4457
              // While loop
              $region72: #{tpu_custom_call.1} parent=63 // loop_pre_header
                _
              $region73: #{tpu_custom_call.1} parent=63 // loop_header
                %s4460 = sphi 0, %s4462
                %p4461 = scmp.ge.s32.totalorder %s4460, %s4453
                %s4465 = sphi 0, %s4472
                %s4466 = sphi %s4456, %s4475
                %s4467 = sphi %s4458, %s4476
              $region74: #{tpu_custom_call.1} parent=63 // loop_header_branch
                %4464 = sbr.rel (%p4461) target = $region78
              $region75: #{tpu_custom_call.1} parent=63 // loop_body
                %v4468 = vld [vmem:[%s4466] sm:%s4402]
                %4469 = vst [vmem:[%s4467] sm:%s4402] %v4468
                %s4470 = sadd.s32 1, %s4465
                %p4471 = scmp.ge.s32.totalorder %s4470, %s4453
                %s4472 = scalar_select %p4471, 0, %s4470
                %s4473 = smul.u32 %s4472, 8
                %s4474 = smul.u32 %s4472, 8
                %s4475 = scalar_lea.vmem %s4456, %s4473 [#allocation4]
                %s4476 = scalar_lea.vmem %s4458, %s4474
              $region76: #{tpu_custom_call.1} parent=63 // loop_footer
                %s4462 = sadd.s32 %s4460, 1
              $region77: #{tpu_custom_call.1} parent=63 // loop_footer_branch
                %4459 = sbr.rel target = $region73
              $region78: #{tpu_custom_call.1} parent=63 // loop_exit
                _
            $region64: #{tpu_custom_call.1} parent=55 // pred_fallthru
              _
          $region56: #{tpu_custom_call.1} parent=51 // pred_fallthru
            _
          %4555 = vnop
        $region52: #{tpu_custom_call.1} parent=27 // pred_fallthru
          _
        // Predicated region
        $region101: #{tpu_custom_call.1} parent=27 // pred_check
          %p4556 = pneg %p141
        $region102: #{tpu_custom_call.1} parent=27 // pred_check_branch
          %4558 = sbr.rel (%p4556) target = $region104
        $region103: #{tpu_custom_call.1} parent=27 // pred_region
          %s4560 = ssub.s32 32, 32
          %4561 = vsyncadd %s4377, %s4560
          %s4562 = smul.addr %s23, 3
          %s4563 = sadd.s32 %s25, %s4562
          %s4564 = smul.addr %s4563, 32
          %s4565 = scalar_lea.hbm %s3, %s4564
          %s4567 = sshll.u32 %s4380, 4
          %s4568 = int_to_ptr.vmem [resolvable:$true] %s4567
          %4570 = dma.vmem_to_hbm [thread:$0]  %s4568, 32, %s4565, %s4377
        $region104: #{tpu_custom_call.1} parent=27 // pred_fallthru
          _
      $region28: #{tpu_custom_call.1} parent=5 // pred_fallthru
        _
      %p4571 = scmp.le.s32.totalorder 2, %s13
      // Predicated region
      $region105: #{tpu_custom_call.1} parent=5 // pred_check
        %p4572 = pneg %p4571
      $region106: #{tpu_custom_call.1} parent=5 // pred_check_branch
        %4574 = sbr.rel (%p4572) target = $region108
      $region107: #{tpu_custom_call.1} parent=5 // pred_region
        %s4575 = ssub.s32 %s13, 2
        // Predicated region
        $region109: #{tpu_custom_call.1} parent=107 // pred_check
          %p4576 = pneg %p119
        $region110: #{tpu_custom_call.1} parent=107 // pred_check_branch
          %4578 = sbr.rel (%p4576) target = $region112
        $region111: #{tpu_custom_call.1} parent=107 // pred_region
          %s4579 = sand.u32 %s104, 1
          %s4580 = sand.u32 %s104, 1
          %s4581 = smul.addr %s4580, 128
          %s4582 = scalar_lea.vmem [#allocation4], %s4581
        $region112: #{tpu_custom_call.1} parent=107 // pred_fallthru
          _
        // Predicated region
        $region113: #{tpu_custom_call.1} parent=107 // pred_check
          %p4583 = pneg %p147
        $region114: #{tpu_custom_call.1} parent=107 // pred_check_branch
          %4585 = sbr.rel (%p4583) target = $region116
        $region115: #{tpu_custom_call.1} parent=107 // pred_region
          %s4586 = sand.u32 %s132, 1
          %s4587 = scalar_lea.sflag [#allocation6], %s4586
          %s4588 = sand.u32 %s132, 1
          %s4589 = smul.addr %s4588, 2
          %s4590 = scalar_lea.vmem [#allocation5], %s4589
          %4591 = dma.done %s4587, 32
        $region116: #{tpu_custom_call.1} parent=107 // pred_fallthru
          _
      $region108: #{tpu_custom_call.1} parent=5 // pred_fallthru
        _
    $region6: #{tpu_custom_call.1} parent=1 // loop_footer
      %s17 = sadd.s32 1, %s13
    $region7: #{tpu_custom_call.1} parent=1 // loop_footer_branch
      %12 = sbr.rel target = $region3
    $region8: #{tpu_custom_call.1} parent=1 // loop_exit
      _
    %4592 = vsyncpa [#allocation6], 1
    %s4593 = scalar_lea.sflag [#allocation6], 1
    %4594 = vsyncpa %s4593, 1

</llo_original>
